<compile_context>
chip_gen: v6e
topology: v6e:2x2x1
jax: 0.10.0
libtpu: 0.0.40
codegen_flags: <defaults>
</compile_context>

<pallas_src>
import functools

import jax
import jax.numpy as jnp
from jax import lax
from jax.experimental import pallas as pl
from jax.experimental.pallas import tpu as pltpu

# ---------------- scaled-down model config ----------------
IMG = 16            # spatial size (H = W)
IN_CH = 3           # input channels
PATCH = 4           # patch size  -> 16 patches
EMBED_DIM = 32      # ViT embed dim (stand-in for 768)
DEPTH = 2           # transformer blocks (stand-in for 12)
NUM_HEADS = 2
HEAD_DIM = EMBED_DIM // NUM_HEADS
MLP_DIM = 64        # block MLP hidden
HIDDEN = 64         # classifier hidden (stand-in for 512)
NUM_CLASSES = 2
NUM_PATCHES = (IMG // PATCH) ** 2          # 16
SEQ = 1 + NUM_PATCHES                      # 17
SEQ_PAD = 24                               # SEQ rounded up to a sublane multiple
PATCH_K = IN_CH * PATCH * PATCH            # 48
PATCH_K_PAD = 64                           # im2col contraction dim padded for clean MXU tiling
BVEC_W = max(EMBED_DIM, MLP_DIM)           # packed per-block vector width
HVEC_W = max(2 * EMBED_DIM, HIDDEN)        # packed head vector width


def _vmem_specs(n):
    return [pl.BlockSpec(memory_space=pltpu.MemorySpace.VMEM) for _ in range(n)]


def _layernorm(v, g, b, eps=1e-6):
    mu = jnp.mean(v, axis=-1, keepdims=True)
    var = jnp.mean(jnp.square(v - mu), axis=-1, keepdims=True)
    return (v - mu) * lax.rsqrt(var + eps) * g + b


# ---------------- single fused Pallas kernel ----------------

def fused_vit_kernel(patches_ref, pw_ref, pb_ref, clspos_ref, pospatch_ref,
                     wqkv_ref, wo_ref, w1_ref, w2_ref, bvec_ref,
                     hvec_ref, fc1_ref, fc2_ref,
                     logits_ref, attnw_ref, *, batch):
    B = batch
    D, dh, H = EMBED_DIM, HEAD_DIM, NUM_HEADS
    P, S, SP = NUM_PATCHES, SEQ, SEQ_PAD
    bf16 = jnp.bfloat16
    f32 = jnp.float32

    # ---- patch embedding: one flattened (B*P, K) x (K, D) matmul ----
    pe = jnp.dot(patches_ref[...].astype(bf16), pw_ref[...],
                 preferred_element_type=f32) + pb_ref[...]               # (B*P, D)

    # ---- assemble padded token slab (B*SP, D) ----
    # Per-batch segment layout: [P patch tokens | cls token | zero padding].
    # (Self-attention is order-agnostic given pos-embeds are already attached;
    #  this ordering keeps every later row slice sublane-aligned.)
    pad_rows = jnp.zeros((SP - 1 - P, D), f32)
    rows = []
    for b in range(B):
        rows.append(pe[b * P:(b + 1) * P, :] + pospatch_ref[...])        # (P, D)
        rows.append(clspos_ref[...])                                     # (1, D)
        rows.append(pad_rows)                                            # (SP-1-P, D)
    tok = jnp.concatenate(rows, axis=0)                                  # (B*SP, D)

    # ---- transformer blocks (static layer loop; everything stays in VMEM/vregs) ----
    for l in range(DEPTH):
        ln1_g = bvec_ref[l, 0:1, 0:D]
        ln1_b = bvec_ref[l, 1:2, 0:D]
        bq = bvec_ref[l, 2:3, 0:D]          # pre-scaled by 1/sqrt(dh)
        bk = bvec_ref[l, 3:4, 0:D]
        bv = bvec_ref[l, 4:5, 0:D]
        bo = bvec_ref[l, 5:6, 0:D]
        ln2_g = bvec_ref[l, 6:7, 0:D]
        ln2_b = bvec_ref[l, 7:8, 0:D]
        b2 = bvec_ref[l, 8:9, 0:D]
        b1 = bvec_ref[l, 9:10, 0:MLP_DIM]

        h = _layernorm(tok, ln1_g, ln1_b)                                # f32
        h_bf = h.astype(bf16)

        acc = [None] * B
        for hh in range(H):
            sl = slice(hh * dh, (hh + 1) * dh)
            qh = jnp.dot(h_bf, wqkv_ref[l, 0, hh],
                         preferred_element_type=f32) + bq[:, sl]         # (B*SP, dh)
            kh = jnp.dot(h_bf, wqkv_ref[l, 1, hh],
                         preferred_element_type=f32) + bk[:, sl]
            vh = jnp.dot(h_bf, wqkv_ref[l, 2, hh],
                         preferred_element_type=f32) + bv[:, sl]
            woh = wo_ref[l, hh]                                          # (dh, D) bf16
            for b in range(B):
                q_b = qh[b * SP:(b + 1) * SP, :].astype(bf16)            # pad queries harmless
                k_b = kh[b * SP:b * SP + S, :].astype(bf16)              # real tokens only
                v_b = vh[b * SP:b * SP + S, :].astype(bf16)
                s = lax.dot_general(q_b, k_b, (((1,), (1,)), ((), ())),
                                    preferred_element_type=f32)          # (SP, S)
                s = s - jnp.max(s, axis=-1, keepdims=True)
                p = jnp.exp(s)
                p = p * pl.reciprocal(jnp.sum(p, axis=-1, keepdims=True), approx=True)
                o = jnp.dot(p.astype(bf16), v_b, preferred_element_type=f32)   # (SP, dh)
                ho = jnp.dot(o.astype(bf16), woh, preferred_element_type=f32)  # (SP, D)
                acc[b] = ho if acc[b] is None else acc[b] + ho
        attn_out = jnp.concatenate([a + bo for a in acc], axis=0)        # (B*SP, D)
        tok = tok + attn_out

        h2 = _layernorm(tok, ln2_g, ln2_b)
        m = jnp.dot(h2.astype(bf16), w1_ref[l], preferred_element_type=f32) + b1
        # TODO(synk): timm ViT-Base uses exact (erf) GELU; tanh approximation used here.
        m = jax.nn.gelu(m, approximate=True)
        m = jnp.dot(m.astype(bf16), w2_ref[l], preferred_element_type=f32) + b2
        tok = tok + m

    # ---- ViT final LayerNorm ----
    norm_g = hvec_ref[0:1, 0:D]
    norm_b = hvec_ref[1:2, 0:D]
    t = _layernorm(tok, norm_g, norm_b)                                  # (B*SP, D)

    # ---- Grad-CAM head: attention pooling + LN + MLP classifier ----
    aw_bf = hvec_ref[2:3, 0:D].astype(bf16)          # attention_layer weight (as a row)
    ab = hvec_ref[3:4, 0:1]
    g_cls = hvec_ref[4:5, 0:D]
    g_wt = hvec_ref[4:5, D:2 * D]
    be_cls = hvec_ref[5:6, 0:D]
    be_wt = hvec_ref[5:6, D:2 * D]
    fb1 = hvec_ref[6:7, 0:HIDDEN]
    fb2 = hvec_ref[7:8, 0:NUM_CLASSES]
    fc1a = fc1_ref[0:D, :]                           # (D, HIDDEN) bf16 — cls half
    fc1b = fc1_ref[D:2 * D, :]                       # (D, HIDDEN) bf16 — weighted half

    logit_rows = []
    w_rows = []
    for b in range(B):
        patch_b = t[b * SP:b * SP + P, :]            # (P, D), aligned
        cls_b = t[b * SP + P:b * SP + P + 1, :]      # (1, D), aligned
        patch_bf = patch_b.astype(bf16)

        # lane-dense pooling scores (1, P), straight off the MXU
        s_row = lax.dot_general(aw_bf, patch_bf, (((1,), (1,)), ((), ())),
                                preferred_element_type=f32) + ab         # (1, P)
        s_row = s_row - jnp.max(s_row, axis=-1, keepdims=True)
        e = jnp.exp(s_row)
        w_row = e / jnp.sum(e, axis=-1, keepdims=True)   # exact divide: sum(w) == 1
        w_rows.append(w_row)

        weighted = jnp.dot(w_row.astype(bf16), patch_bf,
                           preferred_element_type=f32)                   # (1, D)

        # LayerNorm over the virtual concat [cls | weighted] (width 2D), no lane concat
        n_elems = 2.0 * D
        ssum = (jnp.sum(cls_b, axis=-1, keepdims=True)
                + jnp.sum(weighted, axis=-1, keepdims=True))
        sqsum = (jnp.sum(cls_b * cls_b, axis=-1, keepdims=True)
                 + jnp.sum(weighted * weighted, axis=-1, keepdims=True))
        mean = ssum / n_elems
        var = sqsum / n_elems - mean * mean
        inv = lax.rsqrt(var + 1e-5)                  # nn.LayerNorm default eps
        n_cls = (cls_b - mean) * inv * g_cls + be_cls
        n_wt = (weighted - mean) * inv * g_wt + be_wt

        hfc = (jnp.dot(n_cls.astype(bf16), fc1a, preferred_element_type=f32)
               + jnp.dot(n_wt.astype(bf16), fc1b, preferred_element_type=f32) + fb1)
        hfc = jnp.maximum(hfc, 0.0)                  # ReLU; dropout = identity in eval
        logit_rows.append(jnp.dot(hfc.astype(bf16), fc2_ref[...],
                                  preferred_element_type=f32) + fb2)

    logits_ref[...] = jnp.concatenate(logit_rows, axis=0)                # (B, NUM_CLASSES)
    attnw_ref[...] = jnp.concatenate(w_rows, axis=0)                     # (B, P) lane-dense


# ---------------- wrapper ----------------

def vit_gradcam_forward(x, params):
    B, C, Himg, Wimg = x.shape
    ps = PATCH
    P = (Himg // ps) * (Wimg // ps)

    # im2col (== Conv2d with kernel=stride=patch) -- glue, pure reshape/transpose.
    patches = (x.reshape(B, C, Himg // ps, ps, Wimg // ps, ps)
                 .transpose(0, 2, 4, 1, 3, 5)
                 .reshape(B * P, C * ps * ps))
    # pad contraction dim 48 -> 64 (patch_w rows 48:64 are zero, result unchanged)
    patches = jnp.pad(patches, ((0, 0), (0, PATCH_K_PAD - PATCH_K)))

    kernel = functools.partial(fused_vit_kernel, batch=B)
    logits, attnw = pl.pallas_call(
        kernel,
        out_shape=(jax.ShapeDtypeStruct((B, NUM_CLASSES), jnp.float32),
                   jax.ShapeDtypeStruct((B, P), jnp.float32)),
        in_specs=_vmem_specs(13),
        out_specs=(pl.BlockSpec(memory_space=pltpu.MemorySpace.VMEM),
                   pl.BlockSpec(memory_space=pltpu.MemorySpace.VMEM)),
    )(patches, params['patch_w'], params['patch_b'], params['cls_pos0'],
      params['pos_patch'], params['blk_wqkv'], params['blk_wo'],
      params['blk_w1'], params['blk_w2'], params['blk_vec'],
      params['head_vec'], params['fc1_w'], params['fc2_w'])

    # module API returns attn_weights as (B, P, 1); reshape outside the kernel
    return logits, attnw.reshape(B, P, 1)


# ---------------- deterministic parameter init (pre-packed / pre-split) ----------------

def init_params(key):
    keys = iter(jax.random.split(key, 64))

    def nrm(shape, std=0.02):
        return jax.random.normal(next(keys), shape, jnp.float32) * std

    D, H, dh = EMBED_DIM, NUM_HEADS, HEAD_DIM
    scale = 1.0 / float(dh) ** 0.5
    bf16 = jnp.bfloat16

    # patch embedding (Conv2d as matmul); contraction dim zero-padded to PATCH_K_PAD
    patch_w = jnp.zeros((PATCH_K_PAD, D), jnp.float32).at[:PATCH_K].set(nrm((PATCH_K, D)))
    patch_b = nrm((1, D))
    cls_token = nrm((1, D))
    pos_embed = nrm((SEQ, D))

    blk_wqkv = jnp.zeros((DEPTH, 3, H, D, dh), jnp.float32)   # per-head q/k/v weights
    blk_wo = jnp.zeros((DEPTH, H, dh, D), jnp.float32)        # per-head output-proj rows
    blk_w1 = jnp.zeros((DEPTH, D, MLP_DIM), jnp.float32)
    blk_w2 = jnp.zeros((DEPTH, MLP_DIM, D), jnp.float32)
    blk_vec = jnp.zeros((DEPTH, 10, BVEC_W), jnp.float32)     # packed LN params + biases
    for l in range(DEPTH):
        wqkv = nrm((D, 3 * D))
        bqkv = nrm((3 * D,))
        wo = nrm((D, D))
        bo = nrm((D,))
        w1 = nrm((D, MLP_DIM))
        b1 = nrm((MLP_DIM,))
        w2 = nrm((MLP_DIM, D))
        b2 = nrm((D,))
        # fold the 1/sqrt(dh) attention scale into wq / bq (trace-time, free)
        wq, wk, wv = wqkv[:, :D] * scale, wqkv[:, D:2 * D], wqkv[:, 2 * D:]
        bq, bk, bv = bqkv[:D] * scale, bqkv[D:2 * D], bqkv[2 * D:]
        for hh in range(H):
            sl = slice(hh * dh, (hh + 1) * dh)
            blk_wqkv = blk_wqkv.at[l, 0, hh].set(wq[:, sl])
            blk_wqkv = blk_wqkv.at[l, 1, hh].set(wk[:, sl])
            blk_wqkv = blk_wqkv.at[l, 2, hh].set(wv[:, sl])
            blk_wo = blk_wo.at[l, hh].set(wo[sl, :])
        blk_w1 = blk_w1.at[l].set(w1)
        blk_w2 = blk_w2.at[l].set(w2)
        vec_rows = [jnp.ones((D,)), jnp.zeros((D,)), bq, bk, bv, bo,
                    jnp.ones((D,)), jnp.zeros((D,)), b2]
        for i, v in enumerate(vec_rows):
            blk_vec = blk_vec.at[l, i, :D].set(v)
        blk_vec = blk_vec.at[l, 9, :MLP_DIM].set(b1)

    # head: attention pooling + classifier (LN -> Linear -> ReLU -> Linear)
    attn_w = nrm((D, 1))
    attn_b = nrm((1,))
    fc1_w = nrm((2 * D, HIDDEN))
    fc1_b = nrm((HIDDEN,))
    fc2_w = nrm((HIDDEN, NUM_CLASSES))
    fc2_b = nrm((NUM_CLASSES,))
    head_vec = jnp.zeros((8, HVEC_W), jnp.float32)
    head_vec = head_vec.at[0, :D].set(jnp.ones((D,)))        # ViT final-norm gamma
    head_vec = head_vec.at[1, :D].set(jnp.zeros((D,)))       # ViT final-norm beta
    head_vec = head_vec.at[2, :D].set(attn_w[:, 0])          # pooling weight (as a row)
    head_vec = head_vec.at[3, 0].set(attn_b[0])              # pooling bias
    head_vec = head_vec.at[4, :2 * D].set(jnp.ones((2 * D,)))   # classifier LN gamma
    head_vec = head_vec.at[5, :2 * D].set(jnp.zeros((2 * D,)))  # classifier LN beta
    head_vec = head_vec.at[6, :HIDDEN].set(fc1_b)
    head_vec = head_vec.at[7, :NUM_CLASSES].set(fc2_b)

    return {
        # matmul weights as bf16 (f32 accumulation in-kernel); vector params stay f32
        'patch_w': patch_w.astype(bf16),
        'patch_b': patch_b,
        'cls_pos0': cls_token + pos_embed[0:1, :],   # cls token + its pos-embed, pre-folded
        'pos_patch': pos_embed[1:, :],
        'blk_wqkv': blk_wqkv.astype(bf16),
        'blk_wo': blk_wo.astype(bf16),
        'blk_w1': blk_w1.astype(bf16),
        'blk_w2': blk_w2.astype(bf16),
        'blk_vec': blk_vec,
        'head_vec': head_vec,
        'fc1_w': fc1_w.astype(bf16),
        'fc2_w': fc2_w.astype(bf16),
    }


if __name__ == "__main__":
    key = jax.random.PRNGKey(0)
    kx, kp = jax.random.split(key)
    x = jax.random.normal(kx, (2, IN_CH, IMG, IMG), jnp.float32)   # NCHW like PyTorch
    params = init_params(kp)

    fwd = jax.jit(vit_gradcam_forward)
    logits, attn_weights = fwd(x, params)
    jax.block_until_ready((logits, attn_weights))

    assert logits.shape == (2, NUM_CLASSES)
    assert attn_weights.shape == (2, NUM_PATCHES, 1)
    assert bool(jnp.all(jnp.isfinite(logits)))
    assert bool(jnp.all(jnp.isfinite(attn_weights)))
    # softmax over patch dim sums to 1
    assert bool(jnp.allclose(jnp.sum(attn_weights, axis=1), 1.0, atol=1e-5))
    print("KERNEL_OK")
</pallas_src>

<mosaic_0001>
module attributes {stable_mosaic.version = 11 : i64} {
  func.func @fused_vit_kernel(%arg0: memref<32x64xf32, #tpu.memory_space<vmem>>, %arg1: memref<64x32xbf16, #tpu.memory_space<vmem>>, %arg2: memref<1x32xf32, #tpu.memory_space<vmem>>, %arg3: memref<1x32xf32, #tpu.memory_space<vmem>>, %arg4: memref<16x32xf32, #tpu.memory_space<vmem>>, %arg5: memref<2x3x2x32x16xbf16, #tpu.memory_space<vmem>>, %arg6: memref<2x2x16x32xbf16, #tpu.memory_space<vmem>>, %arg7: memref<2x32x64xbf16, #tpu.memory_space<vmem>>, %arg8: memref<2x64x32xbf16, #tpu.memory_space<vmem>>, %arg9: memref<2x10x64xf32, #tpu.memory_space<vmem>>, %arg10: memref<8x64xf32, #tpu.memory_space<vmem>>, %arg11: memref<64x64xbf16, #tpu.memory_space<vmem>>, %arg12: memref<64x2xbf16, #tpu.memory_space<vmem>>, %arg13: memref<2x2xf32, #tpu.memory_space<vmem>>, %arg14: memref<2x16xf32, #tpu.memory_space<vmem>>) attributes {dimension_semantics = [], scalar_prefetch = 0 : i64, scratch_operands = 0 : i64, tpu.core_type = #tpu.core_type<tc>} {
    %c0 = arith.constant 0 : index
    %c0_0 = arith.constant 0 : index
    %0 = vector.load %arg0[%c0, %c0_0] : memref<32x64xf32, #tpu.memory_space<vmem>>, vector<32x64xf32>
    %1 = arith.truncf %0 : vector<32x64xf32> to vector<32x64xbf16>
    %c0_1 = arith.constant 0 : index
    %c0_2 = arith.constant 0 : index
    %2 = vector.load %arg1[%c0_1, %c0_2] : memref<64x32xbf16, #tpu.memory_space<vmem>>, vector<64x32xbf16>
    %cst = arith.constant dense<0.000000e+00> : vector<32x32xf32>
    %3 = tpu.matmul %1, %2, %cst {dimension_numbers = #tpu.dot_dimension_numbers<[1], [0], [0], [1], [0, 0, 1, 1], [], []>} : vector<32x64xbf16>, vector<64x32xbf16>, vector<32x32xf32> -> vector<32x32xf32>
    %c0_3 = arith.constant 0 : index
    %c0_4 = arith.constant 0 : index
    %4 = vector.load %arg2[%c0_3, %c0_4] : memref<1x32xf32, #tpu.memory_space<vmem>>, vector<1x32xf32>
    %5 = vector.broadcast %4 : vector<1x32xf32> to vector<32x32xf32>
    %6 = arith.addf %3, %5 : vector<32x32xf32>
    %cst_5 = arith.constant 0.000000e+00 : f32
    %7 = vector.broadcast %cst_5 : f32 to vector<7x32xf32>
    %8 = vector.extract_strided_slice %6 {offsets = [0, 0], sizes = [16, 32], strides = [1, 1]} : vector<32x32xf32> to vector<16x32xf32>
    %c0_6 = arith.constant 0 : index
    %c0_7 = arith.constant 0 : index
    %9 = vector.load %arg4[%c0_6, %c0_7] : memref<16x32xf32, #tpu.memory_space<vmem>>, vector<16x32xf32>
    %10 = arith.addf %8, %9 : vector<16x32xf32>
    %c0_8 = arith.constant 0 : index
    %c0_9 = arith.constant 0 : index
    %11 = vector.load %arg3[%c0_8, %c0_9] : memref<1x32xf32, #tpu.memory_space<vmem>>, vector<1x32xf32>
    %12 = vector.extract_strided_slice %6 {offsets = [16, 0], sizes = [16, 32], strides = [1, 1]} : vector<32x32xf32> to vector<16x32xf32>
    %c0_10 = arith.constant 0 : index
    %c0_11 = arith.constant 0 : index
    %13 = vector.load %arg4[%c0_10, %c0_11] : memref<16x32xf32, #tpu.memory_space<vmem>>, vector<16x32xf32>
    %14 = arith.addf %12, %13 : vector<16x32xf32>
    %c0_12 = arith.constant 0 : index
    %c0_13 = arith.constant 0 : index
    %15 = vector.load %arg3[%c0_12, %c0_13] : memref<1x32xf32, #tpu.memory_space<vmem>>, vector<1x32xf32>
    %16 = tpu.concatenate %10, %11, %7, %14, %15, %7 in 0 : vector<16x32xf32>, vector<1x32xf32>, vector<7x32xf32>, vector<16x32xf32>, vector<1x32xf32>, vector<7x32xf32> -> vector<48x32xf32>
    %c0_14 = arith.constant 0 : index
    %c0_15 = arith.constant 0 : index
    %c0_16 = arith.constant 0 : index
    %17 = vector.load %arg9[%c0_14, %c0_15, %c0_16] : memref<2x10x64xf32, #tpu.memory_space<vmem>>, vector<1x1x32xf32>
    %18 = vector.shape_cast %17 : vector<1x1x32xf32> to vector<1x32xf32>
    %c0_17 = arith.constant 0 : index
    %c1 = arith.constant 1 : index
    %c0_18 = arith.constant 0 : index
    %19 = vector.load %arg9[%c0_17, %c1, %c0_18] : memref<2x10x64xf32, #tpu.memory_space<vmem>>, vector<1x1x32xf32>
    %20 = vector.shape_cast %19 : vector<1x1x32xf32> to vector<1x32xf32>
    %c0_19 = arith.constant 0 : index
    %c2 = arith.constant 2 : index
    %c0_20 = arith.constant 0 : index
    %21 = vector.load %arg9[%c0_19, %c2, %c0_20] : memref<2x10x64xf32, #tpu.memory_space<vmem>>, vector<1x1x32xf32>
    %22 = vector.shape_cast %21 : vector<1x1x32xf32> to vector<1x32xf32>
    %c0_21 = arith.constant 0 : index
    %c3 = arith.constant 3 : index
    %c0_22 = arith.constant 0 : index
    %23 = vector.load %arg9[%c0_21, %c3, %c0_22] : memref<2x10x64xf32, #tpu.memory_space<vmem>>, vector<1x1x32xf32>
    %24 = vector.shape_cast %23 : vector<1x1x32xf32> to vector<1x32xf32>
    %c0_23 = arith.constant 0 : index
    %c4 = arith.constant 4 : index
    %c0_24 = arith.constant 0 : index
    %25 = vector.load %arg9[%c0_23, %c4, %c0_24] : memref<2x10x64xf32, #tpu.memory_space<vmem>>, vector<1x1x32xf32>
    %26 = vector.shape_cast %25 : vector<1x1x32xf32> to vector<1x32xf32>
    %c0_25 = arith.constant 0 : index
    %c5 = arith.constant 5 : index
    %c0_26 = arith.constant 0 : index
    %27 = vector.load %arg9[%c0_25, %c5, %c0_26] : memref<2x10x64xf32, #tpu.memory_space<vmem>>, vector<1x1x32xf32>
    %28 = vector.shape_cast %27 : vector<1x1x32xf32> to vector<1x32xf32>
    %c0_27 = arith.constant 0 : index
    %c6 = arith.constant 6 : index
    %c0_28 = arith.constant 0 : index
    %29 = vector.load %arg9[%c0_27, %c6, %c0_28] : memref<2x10x64xf32, #tpu.memory_space<vmem>>, vector<1x1x32xf32>
    %30 = vector.shape_cast %29 : vector<1x1x32xf32> to vector<1x32xf32>
    %c0_29 = arith.constant 0 : index
    %c7 = arith.constant 7 : index
    %c0_30 = arith.constant 0 : index
    %31 = vector.load %arg9[%c0_29, %c7, %c0_30] : memref<2x10x64xf32, #tpu.memory_space<vmem>>, vector<1x1x32xf32>
    %32 = vector.shape_cast %31 : vector<1x1x32xf32> to vector<1x32xf32>
    %c0_31 = arith.constant 0 : index
    %c8 = arith.constant 8 : index
    %c0_32 = arith.constant 0 : index
    %33 = vector.load %arg9[%c0_31, %c8, %c0_32] : memref<2x10x64xf32, #tpu.memory_space<vmem>>, vector<1x1x32xf32>
    %34 = vector.shape_cast %33 : vector<1x1x32xf32> to vector<1x32xf32>
    %c0_33 = arith.constant 0 : index
    %c9 = arith.constant 9 : index
    %c0_34 = arith.constant 0 : index
    %35 = vector.load %arg9[%c0_33, %c9, %c0_34] : memref<2x10x64xf32, #tpu.memory_space<vmem>>, vector<1x1x64xf32>
    %36 = vector.shape_cast %35 : vector<1x1x64xf32> to vector<1x64xf32>
    %cst_35 = arith.constant dense<0.000000e+00> : vector<48xf32>
    %37 = vector.multi_reduction <add>, %16, %cst_35 [1] : vector<48x32xf32> to vector<48xf32>
    %38 = vector.shape_cast %37 : vector<48xf32> to vector<48x1xf32>
    %cst_36 = arith.constant 3.200000e+01 : f32
    %39 = vector.broadcast %cst_36 : f32 to vector<48x1xf32>
    %40 = arith.divf %38, %39 : vector<48x1xf32>
    %41 = vector.broadcast %40 : vector<48x1xf32> to vector<48x32xf32>
    %42 = arith.subf %16, %41 : vector<48x32xf32>
    %43 = arith.mulf %42, %42 : vector<48x32xf32>
    %cst_37 = arith.constant dense<0.000000e+00> : vector<48xf32>
    %44 = vector.multi_reduction <add>, %43, %cst_37 [1] : vector<48x32xf32> to vector<48xf32>
    %45 = vector.shape_cast %44 : vector<48xf32> to vector<48x1xf32>
    %cst_38 = arith.constant 3.200000e+01 : f32
    %46 = vector.broadcast %cst_38 : f32 to vector<48x1xf32>
    %47 = arith.divf %45, %46 : vector<48x1xf32>
    %48 = vector.broadcast %40 : vector<48x1xf32> to vector<48x32xf32>
    %49 = arith.subf %16, %48 : vector<48x32xf32>
    %cst_39 = arith.constant 9.99999997E-7 : f32
    %50 = vector.broadcast %cst_39 : f32 to vector<48x1xf32>
    %51 = arith.addf %47, %50 : vector<48x1xf32>
    %52 = math.rsqrt %51 : vector<48x1xf32>
    %53 = vector.broadcast %52 : vector<48x1xf32> to vector<48x32xf32>
    %54 = arith.mulf %49, %53 : vector<48x32xf32>
    %55 = vector.broadcast %18 : vector<1x32xf32> to vector<48x32xf32>
    %56 = arith.mulf %54, %55 : vector<48x32xf32>
    %57 = vector.broadcast %20 : vector<1x32xf32> to vector<48x32xf32>
    %58 = arith.addf %56, %57 : vector<48x32xf32>
    %59 = arith.truncf %58 : vector<48x32xf32> to vector<48x32xbf16>
    %c0_40 = arith.constant 0 : index
    %c0_41 = arith.constant 0 : index
    %c0_42 = arith.constant 0 : index
    %c0_43 = arith.constant 0 : index
    %c0_44 = arith.constant 0 : index
    %60 = vector.load %arg5[%c0_40, %c0_41, %c0_42, %c0_43, %c0_44] : memref<2x3x2x32x16xbf16, #tpu.memory_space<vmem>>, vector<1x1x1x32x16xbf16>
    %61 = vector.shape_cast %60 : vector<1x1x1x32x16xbf16> to vector<32x16xbf16>
    %cst_45 = arith.constant dense<0.000000e+00> : vector<48x16xf32>
    %62 = tpu.matmul %59, %61, %cst_45 {dimension_numbers = #tpu.dot_dimension_numbers<[1], [0], [0], [1], [0, 0, 1, 1], [], []>} : vector<48x32xbf16>, vector<32x16xbf16>, vector<48x16xf32> -> vector<48x16xf32>
    %63 = vector.extract_strided_slice %22 {offsets = [0, 0], sizes = [1, 16], strides = [1, 1]} : vector<1x32xf32> to vector<1x16xf32>
    %64 = vector.broadcast %63 : vector<1x16xf32> to vector<48x16xf32>
    %65 = arith.addf %62, %64 : vector<48x16xf32>
    %c0_46 = arith.constant 0 : index
    %c1_47 = arith.constant 1 : index
    %c0_48 = arith.constant 0 : index
    %c0_49 = arith.constant 0 : index
    %c0_50 = arith.constant 0 : index
    %66 = vector.load %arg5[%c0_46, %c1_47, %c0_48, %c0_49, %c0_50] : memref<2x3x2x32x16xbf16, #tpu.memory_space<vmem>>, vector<1x1x1x32x16xbf16>
    %67 = vector.shape_cast %66 : vector<1x1x1x32x16xbf16> to vector<32x16xbf16>
    %cst_51 = arith.constant dense<0.000000e+00> : vector<48x16xf32>
    %68 = tpu.matmul %59, %67, %cst_51 {dimension_numbers = #tpu.dot_dimension_numbers<[1], [0], [0], [1], [0, 0, 1, 1], [], []>} : vector<48x32xbf16>, vector<32x16xbf16>, vector<48x16xf32> -> vector<48x16xf32>
    %69 = vector.extract_strided_slice %24 {offsets = [0, 0], sizes = [1, 16], strides = [1, 1]} : vector<1x32xf32> to vector<1x16xf32>
    %70 = vector.broadcast %69 : vector<1x16xf32> to vector<48x16xf32>
    %71 = arith.addf %68, %70 : vector<48x16xf32>
    %c0_52 = arith.constant 0 : index
    %c2_53 = arith.constant 2 : index
    %c0_54 = arith.constant 0 : index
    %c0_55 = arith.constant 0 : index
    %c0_56 = arith.constant 0 : index
    %72 = vector.load %arg5[%c0_52, %c2_53, %c0_54, %c0_55, %c0_56] : memref<2x3x2x32x16xbf16, #tpu.memory_space<vmem>>, vector<1x1x1x32x16xbf16>
    %73 = vector.shape_cast %72 : vector<1x1x1x32x16xbf16> to vector<32x16xbf16>
    %cst_57 = arith.constant dense<0.000000e+00> : vector<48x16xf32>
    %74 = tpu.matmul %59, %73, %cst_57 {dimension_numbers = #tpu.dot_dimension_numbers<[1], [0], [0], [1], [0, 0, 1, 1], [], []>} : vector<48x32xbf16>, vector<32x16xbf16>, vector<48x16xf32> -> vector<48x16xf32>
    %75 = vector.extract_strided_slice %26 {offsets = [0, 0], sizes = [1, 16], strides = [1, 1]} : vector<1x32xf32> to vector<1x16xf32>
    %76 = vector.broadcast %75 : vector<1x16xf32> to vector<48x16xf32>
    %77 = arith.addf %74, %76 : vector<48x16xf32>
    %c0_58 = arith.constant 0 : index
    %c0_59 = arith.constant 0 : index
    %c0_60 = arith.constant 0 : index
    %c0_61 = arith.constant 0 : index
    %78 = vector.load %arg6[%c0_58, %c0_59, %c0_60, %c0_61] : memref<2x2x16x32xbf16, #tpu.memory_space<vmem>>, vector<1x1x16x32xbf16>
    %79 = vector.shape_cast %78 : vector<1x1x16x32xbf16> to vector<16x32xbf16>
    %80 = vector.extract_strided_slice %65 {offsets = [0, 0], sizes = [24, 16], strides = [1, 1]} : vector<48x16xf32> to vector<24x16xf32>
    %81 = arith.truncf %80 : vector<24x16xf32> to vector<24x16xbf16>
    %82 = vector.extract_strided_slice %71 {offsets = [0, 0], sizes = [17, 16], strides = [1, 1]} : vector<48x16xf32> to vector<17x16xf32>
    %83 = arith.truncf %82 : vector<17x16xf32> to vector<17x16xbf16>
    %84 = vector.extract_strided_slice %77 {offsets = [0, 0], sizes = [17, 16], strides = [1, 1]} : vector<48x16xf32> to vector<17x16xf32>
    %85 = arith.truncf %84 : vector<17x16xf32> to vector<17x16xbf16>
    %cst_62 = arith.constant dense<0.000000e+00> : vector<24x17xf32>
    %86 = tpu.matmul %81, %83, %cst_62 {dimension_numbers = #tpu.dot_dimension_numbers<[1], [1], [0], [0], [0, 0, 1, 0], [], []>} : vector<24x16xbf16>, vector<17x16xbf16>, vector<24x17xf32> -> vector<24x17xf32>
    %cst_63 = arith.constant dense<0xFF800000> : vector<24xf32>
    %87 = vector.multi_reduction <maximumf>, %86, %cst_63 [1] : vector<24x17xf32> to vector<24xf32>
    %88 = vector.shape_cast %87 : vector<24xf32> to vector<24x1xf32>
    %89 = vector.broadcast %88 : vector<24x1xf32> to vector<24x17xf32>
    %90 = arith.subf %86, %89 : vector<24x17xf32>
    %91 = math.exp %90 : vector<24x17xf32>
    %cst_64 = arith.constant dense<0.000000e+00> : vector<24xf32>
    %92 = vector.multi_reduction <add>, %91, %cst_64 [1] : vector<24x17xf32> to vector<24xf32>
    %93 = vector.shape_cast %92 : vector<24xf32> to vector<24x1xf32>
    %94 = tpu.reciprocal %93 {approx = true} : vector<24x1xf32> -> vector<24x1xf32>
    %95 = vector.broadcast %94 : vector<24x1xf32> to vector<24x17xf32>
    %96 = arith.mulf %91, %95 : vector<24x17xf32>
    %97 = arith.truncf %96 : vector<24x17xf32> to vector<24x17xbf16>
    %cst_65 = arith.constant dense<0.000000e+00> : vector<24x16xf32>
    %98 = tpu.matmul %97, %85, %cst_65 {dimension_numbers = #tpu.dot_dimension_numbers<[1], [0], [0], [1], [0, 0, 1, 1], [], []>} : vector<24x17xbf16>, vector<17x16xbf16>, vector<24x16xf32> -> vector<24x16xf32>
    %99 = arith.truncf %98 : vector<24x16xf32> to vector<24x16xbf16>
    %cst_66 = arith.constant dense<0.000000e+00> : vector<24x32xf32>
    %100 = tpu.matmul %99, %79, %cst_66 {dimension_numbers = #tpu.dot_dimension_numbers<[1], [0], [0], [1], [0, 0, 1, 1], [], []>} : vector<24x16xbf16>, vector<16x32xbf16>, vector<24x32xf32> -> vector<24x32xf32>
    %101 = vector.extract_strided_slice %65 {offsets = [24, 0], sizes = [24, 16], strides = [1, 1]} : vector<48x16xf32> to vector<24x16xf32>
    %102 = arith.truncf %101 : vector<24x16xf32> to vector<24x16xbf16>
    %103 = vector.extract_strided_slice %71 {offsets = [24, 0], sizes = [17, 16], strides = [1, 1]} : vector<48x16xf32> to vector<17x16xf32>
    %104 = arith.truncf %103 : vector<17x16xf32> to vector<17x16xbf16>
    %105 = vector.extract_strided_slice %77 {offsets = [24, 0], sizes = [17, 16], strides = [1, 1]} : vector<48x16xf32> to vector<17x16xf32>
    %106 = arith.truncf %105 : vector<17x16xf32> to vector<17x16xbf16>
    %cst_67 = arith.constant dense<0.000000e+00> : vector<24x17xf32>
    %107 = tpu.matmul %102, %104, %cst_67 {dimension_numbers = #tpu.dot_dimension_numbers<[1], [1], [0], [0], [0, 0, 1, 0], [], []>} : vector<24x16xbf16>, vector<17x16xbf16>, vector<24x17xf32> -> vector<24x17xf32>
    %cst_68 = arith.constant dense<0xFF800000> : vector<24xf32>
    %108 = vector.multi_reduction <maximumf>, %107, %cst_68 [1] : vector<24x17xf32> to vector<24xf32>
    %109 = vector.shape_cast %108 : vector<24xf32> to vector<24x1xf32>
    %110 = vector.broadcast %109 : vector<24x1xf32> to vector<24x17xf32>
    %111 = arith.subf %107, %110 : vector<24x17xf32>
    %112 = math.exp %111 : vector<24x17xf32>
    %cst_69 = arith.constant dense<0.000000e+00> : vector<24xf32>
    %113 = vector.multi_reduction <add>, %112, %cst_69 [1] : vector<24x17xf32> to vector<24xf32>
    %114 = vector.shape_cast %113 : vector<24xf32> to vector<24x1xf32>
    %115 = tpu.reciprocal %114 {approx = true} : vector<24x1xf32> -> vector<24x1xf32>
    %116 = vector.broadcast %115 : vector<24x1xf32> to vector<24x17xf32>
    %117 = arith.mulf %112, %116 : vector<24x17xf32>
    %118 = arith.truncf %117 : vector<24x17xf32> to vector<24x17xbf16>
    %cst_70 = arith.constant dense<0.000000e+00> : vector<24x16xf32>
    %119 = tpu.matmul %118, %106, %cst_70 {dimension_numbers = #tpu.dot_dimension_numbers<[1], [0], [0], [1], [0, 0, 1, 1], [], []>} : vector<24x17xbf16>, vector<17x16xbf16>, vector<24x16xf32> -> vector<24x16xf32>
    %120 = arith.truncf %119 : vector<24x16xf32> to vector<24x16xbf16>
    %cst_71 = arith.constant dense<0.000000e+00> : vector<24x32xf32>
    %121 = tpu.matmul %120, %79, %cst_71 {dimension_numbers = #tpu.dot_dimension_numbers<[1], [0], [0], [1], [0, 0, 1, 1], [], []>} : vector<24x16xbf16>, vector<16x32xbf16>, vector<24x32xf32> -> vector<24x32xf32>
    %c0_72 = arith.constant 0 : index
    %c0_73 = arith.constant 0 : index
    %c1_74 = arith.constant 1 : index
    %c0_75 = arith.constant 0 : index
    %c0_76 = arith.constant 0 : index
    %122 = vector.load %arg5[%c0_72, %c0_73, %c1_74, %c0_75, %c0_76] : memref<2x3x2x32x16xbf16, #tpu.memory_space<vmem>>, vector<1x1x1x32x16xbf16>
    %123 = vector.shape_cast %122 : vector<1x1x1x32x16xbf16> to vector<32x16xbf16>
    %cst_77 = arith.constant dense<0.000000e+00> : vector<48x16xf32>
    %124 = tpu.matmul %59, %123, %cst_77 {dimension_numbers = #tpu.dot_dimension_numbers<[1], [0], [0], [1], [0, 0, 1, 1], [], []>} : vector<48x32xbf16>, vector<32x16xbf16>, vector<48x16xf32> -> vector<48x16xf32>
    %125 = vector.extract_strided_slice %22 {offsets = [0, 16], sizes = [1, 16], strides = [1, 1]} : vector<1x32xf32> to vector<1x16xf32>
    %126 = vector.broadcast %125 : vector<1x16xf32> to vector<48x16xf32>
    %127 = arith.addf %124, %126 : vector<48x16xf32>
    %c0_78 = arith.constant 0 : index
    %c1_79 = arith.constant 1 : index
    %c1_80 = arith.constant 1 : index
    %c0_81 = arith.constant 0 : index
    %c0_82 = arith.constant 0 : index
    %128 = vector.load %arg5[%c0_78, %c1_79, %c1_80, %c0_81, %c0_82] : memref<2x3x2x32x16xbf16, #tpu.memory_space<vmem>>, vector<1x1x1x32x16xbf16>
    %129 = vector.shape_cast %128 : vector<1x1x1x32x16xbf16> to vector<32x16xbf16>
    %cst_83 = arith.constant dense<0.000000e+00> : vector<48x16xf32>
    %130 = tpu.matmul %59, %129, %cst_83 {dimension_numbers = #tpu.dot_dimension_numbers<[1], [0], [0], [1], [0, 0, 1, 1], [], []>} : vector<48x32xbf16>, vector<32x16xbf16>, vector<48x16xf32> -> vector<48x16xf32>
    %131 = vector.extract_strided_slice %24 {offsets = [0, 16], sizes = [1, 16], strides = [1, 1]} : vector<1x32xf32> to vector<1x16xf32>
    %132 = vector.broadcast %131 : vector<1x16xf32> to vector<48x16xf32>
    %133 = arith.addf %130, %132 : vector<48x16xf32>
    %c0_84 = arith.constant 0 : index
    %c2_85 = arith.constant 2 : index
    %c1_86 = arith.constant 1 : index
    %c0_87 = arith.constant 0 : index
    %c0_88 = arith.constant 0 : index
    %134 = vector.load %arg5[%c0_84, %c2_85, %c1_86, %c0_87, %c0_88] : memref<2x3x2x32x16xbf16, #tpu.memory_space<vmem>>, vector<1x1x1x32x16xbf16>
    %135 = vector.shape_cast %134 : vector<1x1x1x32x16xbf16> to vector<32x16xbf16>
    %cst_89 = arith.constant dense<0.000000e+00> : vector<48x16xf32>
    %136 = tpu.matmul %59, %135, %cst_89 {dimension_numbers = #tpu.dot_dimension_numbers<[1], [0], [0], [1], [0, 0, 1, 1], [], []>} : vector<48x32xbf16>, vector<32x16xbf16>, vector<48x16xf32> -> vector<48x16xf32>
    %137 = vector.extract_strided_slice %26 {offsets = [0, 16], sizes = [1, 16], strides = [1, 1]} : vector<1x32xf32> to vector<1x16xf32>
    %138 = vector.broadcast %137 : vector<1x16xf32> to vector<48x16xf32>
    %139 = arith.addf %136, %138 : vector<48x16xf32>
    %c0_90 = arith.constant 0 : index
    %c1_91 = arith.constant 1 : index
    %c0_92 = arith.constant 0 : index
    %c0_93 = arith.constant 0 : index
    %140 = vector.load %arg6[%c0_90, %c1_91, %c0_92, %c0_93] : memref<2x2x16x32xbf16, #tpu.memory_space<vmem>>, vector<1x1x16x32xbf16>
    %141 = vector.shape_cast %140 : vector<1x1x16x32xbf16> to vector<16x32xbf16>
    %142 = vector.extract_strided_slice %127 {offsets = [0, 0], sizes = [24, 16], strides = [1, 1]} : vector<48x16xf32> to vector<24x16xf32>
    %143 = arith.truncf %142 : vector<24x16xf32> to vector<24x16xbf16>
    %144 = vector.extract_strided_slice %133 {offsets = [0, 0], sizes = [17, 16], strides = [1, 1]} : vector<48x16xf32> to vector<17x16xf32>
    %145 = arith.truncf %144 : vector<17x16xf32> to vector<17x16xbf16>
    %146 = vector.extract_strided_slice %139 {offsets = [0, 0], sizes = [17, 16], strides = [1, 1]} : vector<48x16xf32> to vector<17x16xf32>
    %147 = arith.truncf %146 : vector<17x16xf32> to vector<17x16xbf16>
    %cst_94 = arith.constant dense<0.000000e+00> : vector<24x17xf32>
    %148 = tpu.matmul %143, %145, %cst_94 {dimension_numbers = #tpu.dot_dimension_numbers<[1], [1], [0], [0], [0, 0, 1, 0], [], []>} : vector<24x16xbf16>, vector<17x16xbf16>, vector<24x17xf32> -> vector<24x17xf32>
    %cst_95 = arith.constant dense<0xFF800000> : vector<24xf32>
    %149 = vector.multi_reduction <maximumf>, %148, %cst_95 [1] : vector<24x17xf32> to vector<24xf32>
    %150 = vector.shape_cast %149 : vector<24xf32> to vector<24x1xf32>
    %151 = vector.broadcast %150 : vector<24x1xf32> to vector<24x17xf32>
    %152 = arith.subf %148, %151 : vector<24x17xf32>
    %153 = math.exp %152 : vector<24x17xf32>
    %cst_96 = arith.constant dense<0.000000e+00> : vector<24xf32>
    %154 = vector.multi_reduction <add>, %153, %cst_96 [1] : vector<24x17xf32> to vector<24xf32>
    %155 = vector.shape_cast %154 : vector<24xf32> to vector<24x1xf32>
    %156 = tpu.reciprocal %155 {approx = true} : vector<24x1xf32> -> vector<24x1xf32>
    %157 = vector.broadcast %156 : vector<24x1xf32> to vector<24x17xf32>
    %158 = arith.mulf %153, %157 : vector<24x17xf32>
    %159 = arith.truncf %158 : vector<24x17xf32> to vector<24x17xbf16>
    %cst_97 = arith.constant dense<0.000000e+00> : vector<24x16xf32>
    %160 = tpu.matmul %159, %147, %cst_97 {dimension_numbers = #tpu.dot_dimension_numbers<[1], [0], [0], [1], [0, 0, 1, 1], [], []>} : vector<24x17xbf16>, vector<17x16xbf16>, vector<24x16xf32> -> vector<24x16xf32>
    %161 = arith.truncf %160 : vector<24x16xf32> to vector<24x16xbf16>
    %cst_98 = arith.constant dense<0.000000e+00> : vector<24x32xf32>
    %162 = tpu.matmul %161, %141, %cst_98 {dimension_numbers = #tpu.dot_dimension_numbers<[1], [0], [0], [1], [0, 0, 1, 1], [], []>} : vector<24x16xbf16>, vector<16x32xbf16>, vector<24x32xf32> -> vector<24x32xf32>
    %163 = arith.addf %100, %162 : vector<24x32xf32>
    %164 = vector.extract_strided_slice %127 {offsets = [24, 0], sizes = [24, 16], strides = [1, 1]} : vector<48x16xf32> to vector<24x16xf32>
    %165 = arith.truncf %164 : vector<24x16xf32> to vector<24x16xbf16>
    %166 = vector.extract_strided_slice %133 {offsets = [24, 0], sizes = [17, 16], strides = [1, 1]} : vector<48x16xf32> to vector<17x16xf32>
    %167 = arith.truncf %166 : vector<17x16xf32> to vector<17x16xbf16>
    %168 = vector.extract_strided_slice %139 {offsets = [24, 0], sizes = [17, 16], strides = [1, 1]} : vector<48x16xf32> to vector<17x16xf32>
    %169 = arith.truncf %168 : vector<17x16xf32> to vector<17x16xbf16>
    %cst_99 = arith.constant dense<0.000000e+00> : vector<24x17xf32>
    %170 = tpu.matmul %165, %167, %cst_99 {dimension_numbers = #tpu.dot_dimension_numbers<[1], [1], [0], [0], [0, 0, 1, 0], [], []>} : vector<24x16xbf16>, vector<17x16xbf16>, vector<24x17xf32> -> vector<24x17xf32>
    %cst_100 = arith.constant dense<0xFF800000> : vector<24xf32>
    %171 = vector.multi_reduction <maximumf>, %170, %cst_100 [1] : vector<24x17xf32> to vector<24xf32>
    %172 = vector.shape_cast %171 : vector<24xf32> to vector<24x1xf32>
    %173 = vector.broadcast %172 : vector<24x1xf32> to vector<24x17xf32>
    %174 = arith.subf %170, %173 : vector<24x17xf32>
    %175 = math.exp %174 : vector<24x17xf32>
    %cst_101 = arith.constant dense<0.000000e+00> : vector<24xf32>
    %176 = vector.multi_reduction <add>, %175, %cst_101 [1] : vector<24x17xf32> to vector<24xf32>
    %177 = vector.shape_cast %176 : vector<24xf32> to vector<24x1xf32>
    %178 = tpu.reciprocal %177 {approx = true} : vector<24x1xf32> -> vector<24x1xf32>
    %179 = vector.broadcast %178 : vector<24x1xf32> to vector<24x17xf32>
    %180 = arith.mulf %175, %179 : vector<24x17xf32>
    %181 = arith.truncf %180 : vector<24x17xf32> to vector<24x17xbf16>
    %cst_102 = arith.constant dense<0.000000e+00> : vector<24x16xf32>
    %182 = tpu.matmul %181, %169, %cst_102 {dimension_numbers = #tpu.dot_dimension_numbers<[1], [0], [0], [1], [0, 0, 1, 1], [], []>} : vector<24x17xbf16>, vector<17x16xbf16>, vector<24x16xf32> -> vector<24x16xf32>
    %183 = arith.truncf %182 : vector<24x16xf32> to vector<24x16xbf16>
    %cst_103 = arith.constant dense<0.000000e+00> : vector<24x32xf32>
    %184 = tpu.matmul %183, %141, %cst_103 {dimension_numbers = #tpu.dot_dimension_numbers<[1], [0], [0], [1], [0, 0, 1, 1], [], []>} : vector<24x16xbf16>, vector<16x32xbf16>, vector<24x32xf32> -> vector<24x32xf32>
    %185 = arith.addf %121, %184 : vector<24x32xf32>
    %186 = vector.broadcast %28 : vector<1x32xf32> to vector<24x32xf32>
    %187 = arith.addf %163, %186 : vector<24x32xf32>
    %188 = vector.broadcast %28 : vector<1x32xf32> to vector<24x32xf32>
    %189 = arith.addf %185, %188 : vector<24x32xf32>
    %190 = tpu.concatenate %187, %189 in 0 : vector<24x32xf32>, vector<24x32xf32> -> vector<48x32xf32>
    %191 = arith.addf %16, %190 : vector<48x32xf32>
    %cst_104 = arith.constant dense<0.000000e+00> : vector<48xf32>
    %192 = vector.multi_reduction <add>, %191, %cst_104 [1] : vector<48x32xf32> to vector<48xf32>
    %193 = vector.shape_cast %192 : vector<48xf32> to vector<48x1xf32>
    %cst_105 = arith.constant 3.200000e+01 : f32
    %194 = vector.broadcast %cst_105 : f32 to vector<48x1xf32>
    %195 = arith.divf %193, %194 : vector<48x1xf32>
    %196 = vector.broadcast %195 : vector<48x1xf32> to vector<48x32xf32>
    %197 = arith.subf %191, %196 : vector<48x32xf32>
    %198 = arith.mulf %197, %197 : vector<48x32xf32>
    %cst_106 = arith.constant dense<0.000000e+00> : vector<48xf32>
    %199 = vector.multi_reduction <add>, %198, %cst_106 [1] : vector<48x32xf32> to vector<48xf32>
    %200 = vector.shape_cast %199 : vector<48xf32> to vector<48x1xf32>
    %cst_107 = arith.constant 3.200000e+01 : f32
    %201 = vector.broadcast %cst_107 : f32 to vector<48x1xf32>
    %202 = arith.divf %200, %201 : vector<48x1xf32>
    %203 = vector.broadcast %195 : vector<48x1xf32> to vector<48x32xf32>
    %204 = arith.subf %191, %203 : vector<48x32xf32>
    %cst_108 = arith.constant 9.99999997E-7 : f32
    %205 = vector.broadcast %cst_108 : f32 to vector<48x1xf32>
    %206 = arith.addf %202, %205 : vector<48x1xf32>
    %207 = math.rsqrt %206 : vector<48x1xf32>
    %208 = vector.broadcast %207 : vector<48x1xf32> to vector<48x32xf32>
    %209 = arith.mulf %204, %208 : vector<48x32xf32>
    %210 = vector.broadcast %30 : vector<1x32xf32> to vector<48x32xf32>
    %211 = arith.mulf %209, %210 : vector<48x32xf32>
    %212 = vector.broadcast %32 : vector<1x32xf32> to vector<48x32xf32>
    %213 = arith.addf %211, %212 : vector<48x32xf32>
    %214 = arith.truncf %213 : vector<48x32xf32> to vector<48x32xbf16>
    %c0_109 = arith.constant 0 : index
    %c0_110 = arith.constant 0 : index
    %c0_111 = arith.constant 0 : index
    %215 = vector.load %arg7[%c0_109, %c0_110, %c0_111] : memref<2x32x64xbf16, #tpu.memory_space<vmem>>, vector<1x32x64xbf16>
    %216 = vector.shape_cast %215 : vector<1x32x64xbf16> to vector<32x64xbf16>
    %cst_112 = arith.constant dense<0.000000e+00> : vector<48x64xf32>
    %217 = tpu.matmul %214, %216, %cst_112 {dimension_numbers = #tpu.dot_dimension_numbers<[1], [0], [0], [1], [0, 0, 1, 1], [], []>} : vector<48x32xbf16>, vector<32x64xbf16>, vector<48x64xf32> -> vector<48x64xf32>
    %218 = vector.broadcast %36 : vector<1x64xf32> to vector<48x64xf32>
    %219 = arith.addf %217, %218 : vector<48x64xf32>
    %220 = arith.mulf %219, %219 : vector<48x64xf32>
    %221 = arith.mulf %219, %220 : vector<48x64xf32>
    %cst_113 = arith.constant 4.471500e-02 : f32
    %222 = vector.broadcast %cst_113 : f32 to vector<48x64xf32>
    %223 = arith.mulf %222, %221 : vector<48x64xf32>
    %224 = arith.addf %219, %223 : vector<48x64xf32>
    %cst_114 = arith.constant 0.797884583 : f32
    %225 = vector.broadcast %cst_114 : f32 to vector<48x64xf32>
    %226 = arith.mulf %225, %224 : vector<48x64xf32>
    %227 = math.tanh %226 : vector<48x64xf32>
    %cst_115 = arith.constant 1.000000e+00 : f32
    %228 = vector.broadcast %cst_115 : f32 to vector<48x64xf32>
    %229 = arith.addf %228, %227 : vector<48x64xf32>
    %cst_116 = arith.constant 5.000000e-01 : f32
    %230 = vector.broadcast %cst_116 : f32 to vector<48x64xf32>
    %231 = arith.mulf %230, %229 : vector<48x64xf32>
    %232 = arith.mulf %219, %231 : vector<48x64xf32>
    %233 = arith.truncf %232 : vector<48x64xf32> to vector<48x64xbf16>
    %c0_117 = arith.constant 0 : index
    %c0_118 = arith.constant 0 : index
    %c0_119 = arith.constant 0 : index
    %234 = vector.load %arg8[%c0_117, %c0_118, %c0_119] : memref<2x64x32xbf16, #tpu.memory_space<vmem>>, vector<1x64x32xbf16>
    %235 = vector.shape_cast %234 : vector<1x64x32xbf16> to vector<64x32xbf16>
    %cst_120 = arith.constant dense<0.000000e+00> : vector<48x32xf32>
    %236 = tpu.matmul %233, %235, %cst_120 {dimension_numbers = #tpu.dot_dimension_numbers<[1], [0], [0], [1], [0, 0, 1, 1], [], []>} : vector<48x64xbf16>, vector<64x32xbf16>, vector<48x32xf32> -> vector<48x32xf32>
    %237 = vector.broadcast %34 : vector<1x32xf32> to vector<48x32xf32>
    %238 = arith.addf %236, %237 : vector<48x32xf32>
    %239 = arith.addf %191, %238 : vector<48x32xf32>
    %c1_121 = arith.constant 1 : index
    %c0_122 = arith.constant 0 : index
    %c0_123 = arith.constant 0 : index
    %240 = vector.load %arg9[%c1_121, %c0_122, %c0_123] : memref<2x10x64xf32, #tpu.memory_space<vmem>>, vector<1x1x32xf32>
    %241 = vector.shape_cast %240 : vector<1x1x32xf32> to vector<1x32xf32>
    %c1_124 = arith.constant 1 : index
    %c1_125 = arith.constant 1 : index
    %c0_126 = arith.constant 0 : index
    %242 = vector.load %arg9[%c1_124, %c1_125, %c0_126] : memref<2x10x64xf32, #tpu.memory_space<vmem>>, vector<1x1x32xf32>
    %243 = vector.shape_cast %242 : vector<1x1x32xf32> to vector<1x32xf32>
    %c1_127 = arith.constant 1 : index
    %c2_128 = arith.constant 2 : index
    %c0_129 = arith.constant 0 : index
    %244 = vector.load %arg9[%c1_127, %c2_128, %c0_129] : memref<2x10x64xf32, #tpu.memory_space<vmem>>, vector<1x1x32xf32>
    %245 = vector.shape_cast %244 : vector<1x1x32xf32> to vector<1x32xf32>
    %c1_130 = arith.constant 1 : index
    %c3_131 = arith.constant 3 : index
    %c0_132 = arith.constant 0 : index
    %246 = vector.load %arg9[%c1_130, %c3_131, %c0_132] : memref<2x10x64xf32, #tpu.memory_space<vmem>>, vector<1x1x32xf32>
    %247 = vector.shape_cast %246 : vector<1x1x32xf32> to vector<1x32xf32>
    %c1_133 = arith.constant 1 : index
    %c4_134 = arith.constant 4 : index
    %c0_135 = arith.constant 0 : index
    %248 = vector.load %arg9[%c1_133, %c4_134, %c0_135] : memref<2x10x64xf32, #tpu.memory_space<vmem>>, vector<1x1x32xf32>
    %249 = vector.shape_cast %248 : vector<1x1x32xf32> to vector<1x32xf32>
    %c1_136 = arith.constant 1 : index
    %c5_137 = arith.constant 5 : index
    %c0_138 = arith.constant 0 : index
    %250 = vector.load %arg9[%c1_136, %c5_137, %c0_138] : memref<2x10x64xf32, #tpu.memory_space<vmem>>, vector<1x1x32xf32>
    %251 = vector.shape_cast %250 : vector<1x1x32xf32> to vector<1x32xf32>
    %c1_139 = arith.constant 1 : index
    %c6_140 = arith.constant 6 : index
    %c0_141 = arith.constant 0 : index
    %252 = vector.load %arg9[%c1_139, %c6_140, %c0_141] : memref<2x10x64xf32, #tpu.memory_space<vmem>>, vector<1x1x32xf32>
    %253 = vector.shape_cast %252 : vector<1x1x32xf32> to vector<1x32xf32>
    %c1_142 = arith.constant 1 : index
    %c7_143 = arith.constant 7 : index
    %c0_144 = arith.constant 0 : index
    %254 = vector.load %arg9[%c1_142, %c7_143, %c0_144] : memref<2x10x64xf32, #tpu.memory_space<vmem>>, vector<1x1x32xf32>
    %255 = vector.shape_cast %254 : vector<1x1x32xf32> to vector<1x32xf32>
    %c1_145 = arith.constant 1 : index
    %c8_146 = arith.constant 8 : index
    %c0_147 = arith.constant 0 : index
    %256 = vector.load %arg9[%c1_145, %c8_146, %c0_147] : memref<2x10x64xf32, #tpu.memory_space<vmem>>, vector<1x1x32xf32>
    %257 = vector.shape_cast %256 : vector<1x1x32xf32> to vector<1x32xf32>
    %c1_148 = arith.constant 1 : index
    %c9_149 = arith.constant 9 : index
    %c0_150 = arith.constant 0 : index
    %258 = vector.load %arg9[%c1_148, %c9_149, %c0_150] : memref<2x10x64xf32, #tpu.memory_space<vmem>>, vector<1x1x64xf32>
    %259 = vector.shape_cast %258 : vector<1x1x64xf32> to vector<1x64xf32>
    %cst_151 = arith.constant dense<0.000000e+00> : vector<48xf32>
    %260 = vector.multi_reduction <add>, %239, %cst_151 [1] : vector<48x32xf32> to vector<48xf32>
    %261 = vector.shape_cast %260 : vector<48xf32> to vector<48x1xf32>
    %cst_152 = arith.constant 3.200000e+01 : f32
    %262 = vector.broadcast %cst_152 : f32 to vector<48x1xf32>
    %263 = arith.divf %261, %262 : vector<48x1xf32>
    %264 = vector.broadcast %263 : vector<48x1xf32> to vector<48x32xf32>
    %265 = arith.subf %239, %264 : vector<48x32xf32>
    %266 = arith.mulf %265, %265 : vector<48x32xf32>
    %cst_153 = arith.constant dense<0.000000e+00> : vector<48xf32>
    %267 = vector.multi_reduction <add>, %266, %cst_153 [1] : vector<48x32xf32> to vector<48xf32>
    %268 = vector.shape_cast %267 : vector<48xf32> to vector<48x1xf32>
    %cst_154 = arith.constant 3.200000e+01 : f32
    %269 = vector.broadcast %cst_154 : f32 to vector<48x1xf32>
    %270 = arith.divf %268, %269 : vector<48x1xf32>
    %271 = vector.broadcast %263 : vector<48x1xf32> to vector<48x32xf32>
    %272 = arith.subf %239, %271 : vector<48x32xf32>
    %cst_155 = arith.constant 9.99999997E-7 : f32
    %273 = vector.broadcast %cst_155 : f32 to vector<48x1xf32>
    %274 = arith.addf %270, %273 : vector<48x1xf32>
    %275 = math.rsqrt %274 : vector<48x1xf32>
    %276 = vector.broadcast %275 : vector<48x1xf32> to vector<48x32xf32>
    %277 = arith.mulf %272, %276 : vector<48x32xf32>
    %278 = vector.broadcast %241 : vector<1x32xf32> to vector<48x32xf32>
    %279 = arith.mulf %277, %278 : vector<48x32xf32>
    %280 = vector.broadcast %243 : vector<1x32xf32> to vector<48x32xf32>
    %281 = arith.addf %279, %280 : vector<48x32xf32>
    %282 = arith.truncf %281 : vector<48x32xf32> to vector<48x32xbf16>
    %c1_156 = arith.constant 1 : index
    %c0_157 = arith.constant 0 : index
    %c0_158 = arith.constant 0 : index
    %c0_159 = arith.constant 0 : index
    %c0_160 = arith.constant 0 : index
    %283 = vector.load %arg5[%c1_156, %c0_157, %c0_158, %c0_159, %c0_160] : memref<2x3x2x32x16xbf16, #tpu.memory_space<vmem>>, vector<1x1x1x32x16xbf16>
    %284 = vector.shape_cast %283 : vector<1x1x1x32x16xbf16> to vector<32x16xbf16>
    %cst_161 = arith.constant dense<0.000000e+00> : vector<48x16xf32>
    %285 = tpu.matmul %282, %284, %cst_161 {dimension_numbers = #tpu.dot_dimension_numbers<[1], [0], [0], [1], [0, 0, 1, 1], [], []>} : vector<48x32xbf16>, vector<32x16xbf16>, vector<48x16xf32> -> vector<48x16xf32>
    %286 = vector.extract_strided_slice %245 {offsets = [0, 0], sizes = [1, 16], strides = [1, 1]} : vector<1x32xf32> to vector<1x16xf32>
    %287 = vector.broadcast %286 : vector<1x16xf32> to vector<48x16xf32>
    %288 = arith.addf %285, %287 : vector<48x16xf32>
    %c1_162 = arith.constant 1 : index
    %c1_163 = arith.constant 1 : index
    %c0_164 = arith.constant 0 : index
    %c0_165 = arith.constant 0 : index
    %c0_166 = arith.constant 0 : index
    %289 = vector.load %arg5[%c1_162, %c1_163, %c0_164, %c0_165, %c0_166] : memref<2x3x2x32x16xbf16, #tpu.memory_space<vmem>>, vector<1x1x1x32x16xbf16>
    %290 = vector.shape_cast %289 : vector<1x1x1x32x16xbf16> to vector<32x16xbf16>
    %cst_167 = arith.constant dense<0.000000e+00> : vector<48x16xf32>
    %291 = tpu.matmul %282, %290, %cst_167 {dimension_numbers = #tpu.dot_dimension_numbers<[1], [0], [0], [1], [0, 0, 1, 1], [], []>} : vector<48x32xbf16>, vector<32x16xbf16>, vector<48x16xf32> -> vector<48x16xf32>
    %292 = vector.extract_strided_slice %247 {offsets = [0, 0], sizes = [1, 16], strides = [1, 1]} : vector<1x32xf32> to vector<1x16xf32>
    %293 = vector.broadcast %292 : vector<1x16xf32> to vector<48x16xf32>
    %294 = arith.addf %291, %293 : vector<48x16xf32>
    %c1_168 = arith.constant 1 : index
    %c2_169 = arith.constant 2 : index
    %c0_170 = arith.constant 0 : index
    %c0_171 = arith.constant 0 : index
    %c0_172 = arith.constant 0 : index
    %295 = vector.load %arg5[%c1_168, %c2_169, %c0_170, %c0_171, %c0_172] : memref<2x3x2x32x16xbf16, #tpu.memory_space<vmem>>, vector<1x1x1x32x16xbf16>
    %296 = vector.shape_cast %295 : vector<1x1x1x32x16xbf16> to vector<32x16xbf16>
    %cst_173 = arith.constant dense<0.000000e+00> : vector<48x16xf32>
    %297 = tpu.matmul %282, %296, %cst_173 {dimension_numbers = #tpu.dot_dimension_numbers<[1], [0], [0], [1], [0, 0, 1, 1], [], []>} : vector<48x32xbf16>, vector<32x16xbf16>, vector<48x16xf32> -> vector<48x16xf32>
    %298 = vector.extract_strided_slice %249 {offsets = [0, 0], sizes = [1, 16], strides = [1, 1]} : vector<1x32xf32> to vector<1x16xf32>
    %299 = vector.broadcast %298 : vector<1x16xf32> to vector<48x16xf32>
    %300 = arith.addf %297, %299 : vector<48x16xf32>
    %c1_174 = arith.constant 1 : index
    %c0_175 = arith.constant 0 : index
    %c0_176 = arith.constant 0 : index
    %c0_177 = arith.constant 0 : index
    %301 = vector.load %arg6[%c1_174, %c0_175, %c0_176, %c0_177] : memref<2x2x16x32xbf16, #tpu.memory_space<vmem>>, vector<1x1x16x32xbf16>
    %302 = vector.shape_cast %301 : vector<1x1x16x32xbf16> to vector<16x32xbf16>
    %303 = vector.extract_strided_slice %288 {offsets = [0, 0], sizes = [24, 16], strides = [1, 1]} : vector<48x16xf32> to vector<24x16xf32>
    %304 = arith.truncf %303 : vector<24x16xf32> to vector<24x16xbf16>
    %305 = vector.extract_strided_slice %294 {offsets = [0, 0], sizes = [17, 16], strides = [1, 1]} : vector<48x16xf32> to vector<17x16xf32>
    %306 = arith.truncf %305 : vector<17x16xf32> to vector<17x16xbf16>
    %307 = vector.extract_strided_slice %300 {offsets = [0, 0], sizes = [17, 16], strides = [1, 1]} : vector<48x16xf32> to vector<17x16xf32>
    %308 = arith.truncf %307 : vector<17x16xf32> to vector<17x16xbf16>
    %cst_178 = arith.constant dense<0.000000e+00> : vector<24x17xf32>
    %309 = tpu.matmul %304, %306, %cst_178 {dimension_numbers = #tpu.dot_dimension_numbers<[1], [1], [0], [0], [0, 0, 1, 0], [], []>} : vector<24x16xbf16>, vector<17x16xbf16>, vector<24x17xf32> -> vector<24x17xf32>
    %cst_179 = arith.constant dense<0xFF800000> : vector<24xf32>
    %310 = vector.multi_reduction <maximumf>, %309, %cst_179 [1] : vector<24x17xf32> to vector<24xf32>
    %311 = vector.shape_cast %310 : vector<24xf32> to vector<24x1xf32>
    %312 = vector.broadcast %311 : vector<24x1xf32> to vector<24x17xf32>
    %313 = arith.subf %309, %312 : vector<24x17xf32>
    %314 = math.exp %313 : vector<24x17xf32>
    %cst_180 = arith.constant dense<0.000000e+00> : vector<24xf32>
    %315 = vector.multi_reduction <add>, %314, %cst_180 [1] : vector<24x17xf32> to vector<24xf32>
    %316 = vector.shape_cast %315 : vector<24xf32> to vector<24x1xf32>
    %317 = tpu.reciprocal %316 {approx = true} : vector<24x1xf32> -> vector<24x1xf32>
    %318 = vector.broadcast %317 : vector<24x1xf32> to vector<24x17xf32>
    %319 = arith.mulf %314, %318 : vector<24x17xf32>
    %320 = arith.truncf %319 : vector<24x17xf32> to vector<24x17xbf16>
    %cst_181 = arith.constant dense<0.000000e+00> : vector<24x16xf32>
    %321 = tpu.matmul %320, %308, %cst_181 {dimension_numbers = #tpu.dot_dimension_numbers<[1], [0], [0], [1], [0, 0, 1, 1], [], []>} : vector<24x17xbf16>, vector<17x16xbf16>, vector<24x16xf32> -> vector<24x16xf32>
    %322 = arith.truncf %321 : vector<24x16xf32> to vector<24x16xbf16>
    %cst_182 = arith.constant dense<0.000000e+00> : vector<24x32xf32>
    %323 = tpu.matmul %322, %302, %cst_182 {dimension_numbers = #tpu.dot_dimension_numbers<[1], [0], [0], [1], [0, 0, 1, 1], [], []>} : vector<24x16xbf16>, vector<16x32xbf16>, vector<24x32xf32> -> vector<24x32xf32>
    %324 = vector.extract_strided_slice %288 {offsets = [24, 0], sizes = [24, 16], strides = [1, 1]} : vector<48x16xf32> to vector<24x16xf32>
    %325 = arith.truncf %324 : vector<24x16xf32> to vector<24x16xbf16>
    %326 = vector.extract_strided_slice %294 {offsets = [24, 0], sizes = [17, 16], strides = [1, 1]} : vector<48x16xf32> to vector<17x16xf32>
    %327 = arith.truncf %326 : vector<17x16xf32> to vector<17x16xbf16>
    %328 = vector.extract_strided_slice %300 {offsets = [24, 0], sizes = [17, 16], strides = [1, 1]} : vector<48x16xf32> to vector<17x16xf32>
    %329 = arith.truncf %328 : vector<17x16xf32> to vector<17x16xbf16>
    %cst_183 = arith.constant dense<0.000000e+00> : vector<24x17xf32>
    %330 = tpu.matmul %325, %327, %cst_183 {dimension_numbers = #tpu.dot_dimension_numbers<[1], [1], [0], [0], [0, 0, 1, 0], [], []>} : vector<24x16xbf16>, vector<17x16xbf16>, vector<24x17xf32> -> vector<24x17xf32>
    %cst_184 = arith.constant dense<0xFF800000> : vector<24xf32>
    %331 = vector.multi_reduction <maximumf>, %330, %cst_184 [1] : vector<24x17xf32> to vector<24xf32>
    %332 = vector.shape_cast %331 : vector<24xf32> to vector<24x1xf32>
    %333 = vector.broadcast %332 : vector<24x1xf32> to vector<24x17xf32>
    %334 = arith.subf %330, %333 : vector<24x17xf32>
    %335 = math.exp %334 : vector<24x17xf32>
    %cst_185 = arith.constant dense<0.000000e+00> : vector<24xf32>
    %336 = vector.multi_reduction <add>, %335, %cst_185 [1] : vector<24x17xf32> to vector<24xf32>
    %337 = vector.shape_cast %336 : vector<24xf32> to vector<24x1xf32>
    %338 = tpu.reciprocal %337 {approx = true} : vector<24x1xf32> -> vector<24x1xf32>
    %339 = vector.broadcast %338 : vector<24x1xf32> to vector<24x17xf32>
    %340 = arith.mulf %335, %339 : vector<24x17xf32>
    %341 = arith.truncf %340 : vector<24x17xf32> to vector<24x17xbf16>
    %cst_186 = arith.constant dense<0.000000e+00> : vector<24x16xf32>
    %342 = tpu.matmul %341, %329, %cst_186 {dimension_numbers = #tpu.dot_dimension_numbers<[1], [0], [0], [1], [0, 0, 1, 1], [], []>} : vector<24x17xbf16>, vector<17x16xbf16>, vector<24x16xf32> -> vector<24x16xf32>
    %343 = arith.truncf %342 : vector<24x16xf32> to vector<24x16xbf16>
    %cst_187 = arith.constant dense<0.000000e+00> : vector<24x32xf32>
    %344 = tpu.matmul %343, %302, %cst_187 {dimension_numbers = #tpu.dot_dimension_numbers<[1], [0], [0], [1], [0, 0, 1, 1], [], []>} : vector<24x16xbf16>, vector<16x32xbf16>, vector<24x32xf32> -> vector<24x32xf32>
    %c1_188 = arith.constant 1 : index
    %c0_189 = arith.constant 0 : index
    %c1_190 = arith.constant 1 : index
    %c0_191 = arith.constant 0 : index
    %c0_192 = arith.constant 0 : index
    %345 = vector.load %arg5[%c1_188, %c0_189, %c1_190, %c0_191, %c0_192] : memref<2x3x2x32x16xbf16, #tpu.memory_space<vmem>>, vector<1x1x1x32x16xbf16>
    %346 = vector.shape_cast %345 : vector<1x1x1x32x16xbf16> to vector<32x16xbf16>
    %cst_193 = arith.constant dense<0.000000e+00> : vector<48x16xf32>
    %347 = tpu.matmul %282, %346, %cst_193 {dimension_numbers = #tpu.dot_dimension_numbers<[1], [0], [0], [1], [0, 0, 1, 1], [], []>} : vector<48x32xbf16>, vector<32x16xbf16>, vector<48x16xf32> -> vector<48x16xf32>
    %348 = vector.extract_strided_slice %245 {offsets = [0, 16], sizes = [1, 16], strides = [1, 1]} : vector<1x32xf32> to vector<1x16xf32>
    %349 = vector.broadcast %348 : vector<1x16xf32> to vector<48x16xf32>
    %350 = arith.addf %347, %349 : vector<48x16xf32>
    %c1_194 = arith.constant 1 : index
    %c1_195 = arith.constant 1 : index
    %c1_196 = arith.constant 1 : index
    %c0_197 = arith.constant 0 : index
    %c0_198 = arith.constant 0 : index
    %351 = vector.load %arg5[%c1_194, %c1_195, %c1_196, %c0_197, %c0_198] : memref<2x3x2x32x16xbf16, #tpu.memory_space<vmem>>, vector<1x1x1x32x16xbf16>
    %352 = vector.shape_cast %351 : vector<1x1x1x32x16xbf16> to vector<32x16xbf16>
    %cst_199 = arith.constant dense<0.000000e+00> : vector<48x16xf32>
    %353 = tpu.matmul %282, %352, %cst_199 {dimension_numbers = #tpu.dot_dimension_numbers<[1], [0], [0], [1], [0, 0, 1, 1], [], []>} : vector<48x32xbf16>, vector<32x16xbf16>, vector<48x16xf32> -> vector<48x16xf32>
    %354 = vector.extract_strided_slice %247 {offsets = [0, 16], sizes = [1, 16], strides = [1, 1]} : vector<1x32xf32> to vector<1x16xf32>
    %355 = vector.broadcast %354 : vector<1x16xf32> to vector<48x16xf32>
    %356 = arith.addf %353, %355 : vector<48x16xf32>
    %c1_200 = arith.constant 1 : index
    %c2_201 = arith.constant 2 : index
    %c1_202 = arith.constant 1 : index
    %c0_203 = arith.constant 0 : index
    %c0_204 = arith.constant 0 : index
    %357 = vector.load %arg5[%c1_200, %c2_201, %c1_202, %c0_203, %c0_204] : memref<2x3x2x32x16xbf16, #tpu.memory_space<vmem>>, vector<1x1x1x32x16xbf16>
    %358 = vector.shape_cast %357 : vector<1x1x1x32x16xbf16> to vector<32x16xbf16>
    %cst_205 = arith.constant dense<0.000000e+00> : vector<48x16xf32>
    %359 = tpu.matmul %282, %358, %cst_205 {dimension_numbers = #tpu.dot_dimension_numbers<[1], [0], [0], [1], [0, 0, 1, 1], [], []>} : vector<48x32xbf16>, vector<32x16xbf16>, vector<48x16xf32> -> vector<48x16xf32>
    %360 = vector.extract_strided_slice %249 {offsets = [0, 16], sizes = [1, 16], strides = [1, 1]} : vector<1x32xf32> to vector<1x16xf32>
    %361 = vector.broadcast %360 : vector<1x16xf32> to vector<48x16xf32>
    %362 = arith.addf %359, %361 : vector<48x16xf32>
    %c1_206 = arith.constant 1 : index
    %c1_207 = arith.constant 1 : index
    %c0_208 = arith.constant 0 : index
    %c0_209 = arith.constant 0 : index
    %363 = vector.load %arg6[%c1_206, %c1_207, %c0_208, %c0_209] : memref<2x2x16x32xbf16, #tpu.memory_space<vmem>>, vector<1x1x16x32xbf16>
    %364 = vector.shape_cast %363 : vector<1x1x16x32xbf16> to vector<16x32xbf16>
    %365 = vector.extract_strided_slice %350 {offsets = [0, 0], sizes = [24, 16], strides = [1, 1]} : vector<48x16xf32> to vector<24x16xf32>
    %366 = arith.truncf %365 : vector<24x16xf32> to vector<24x16xbf16>
    %367 = vector.extract_strided_slice %356 {offsets = [0, 0], sizes = [17, 16], strides = [1, 1]} : vector<48x16xf32> to vector<17x16xf32>
    %368 = arith.truncf %367 : vector<17x16xf32> to vector<17x16xbf16>
    %369 = vector.extract_strided_slice %362 {offsets = [0, 0], sizes = [17, 16], strides = [1, 1]} : vector<48x16xf32> to vector<17x16xf32>
    %370 = arith.truncf %369 : vector<17x16xf32> to vector<17x16xbf16>
    %cst_210 = arith.constant dense<0.000000e+00> : vector<24x17xf32>
    %371 = tpu.matmul %366, %368, %cst_210 {dimension_numbers = #tpu.dot_dimension_numbers<[1], [1], [0], [0], [0, 0, 1, 0], [], []>} : vector<24x16xbf16>, vector<17x16xbf16>, vector<24x17xf32> -> vector<24x17xf32>
    %cst_211 = arith.constant dense<0xFF800000> : vector<24xf32>
    %372 = vector.multi_reduction <maximumf>, %371, %cst_211 [1] : vector<24x17xf32> to vector<24xf32>
    %373 = vector.shape_cast %372 : vector<24xf32> to vector<24x1xf32>
    %374 = vector.broadcast %373 : vector<24x1xf32> to vector<24x17xf32>
    %375 = arith.subf %371, %374 : vector<24x17xf32>
    %376 = math.exp %375 : vector<24x17xf32>
    %cst_212 = arith.constant dense<0.000000e+00> : vector<24xf32>
    %377 = vector.multi_reduction <add>, %376, %cst_212 [1] : vector<24x17xf32> to vector<24xf32>
    %378 = vector.shape_cast %377 : vector<24xf32> to vector<24x1xf32>
    %379 = tpu.reciprocal %378 {approx = true} : vector<24x1xf32> -> vector<24x1xf32>
    %380 = vector.broadcast %379 : vector<24x1xf32> to vector<24x17xf32>
    %381 = arith.mulf %376, %380 : vector<24x17xf32>
    %382 = arith.truncf %381 : vector<24x17xf32> to vector<24x17xbf16>
    %cst_213 = arith.constant dense<0.000000e+00> : vector<24x16xf32>
    %383 = tpu.matmul %382, %370, %cst_213 {dimension_numbers = #tpu.dot_dimension_numbers<[1], [0], [0], [1], [0, 0, 1, 1], [], []>} : vector<24x17xbf16>, vector<17x16xbf16>, vector<24x16xf32> -> vector<24x16xf32>
    %384 = arith.truncf %383 : vector<24x16xf32> to vector<24x16xbf16>
    %cst_214 = arith.constant dense<0.000000e+00> : vector<24x32xf32>
    %385 = tpu.matmul %384, %364, %cst_214 {dimension_numbers = #tpu.dot_dimension_numbers<[1], [0], [0], [1], [0, 0, 1, 1], [], []>} : vector<24x16xbf16>, vector<16x32xbf16>, vector<24x32xf32> -> vector<24x32xf32>
    %386 = arith.addf %323, %385 : vector<24x32xf32>
    %387 = vector.extract_strided_slice %350 {offsets = [24, 0], sizes = [24, 16], strides = [1, 1]} : vector<48x16xf32> to vector<24x16xf32>
    %388 = arith.truncf %387 : vector<24x16xf32> to vector<24x16xbf16>
    %389 = vector.extract_strided_slice %356 {offsets = [24, 0], sizes = [17, 16], strides = [1, 1]} : vector<48x16xf32> to vector<17x16xf32>
    %390 = arith.truncf %389 : vector<17x16xf32> to vector<17x16xbf16>
    %391 = vector.extract_strided_slice %362 {offsets = [24, 0], sizes = [17, 16], strides = [1, 1]} : vector<48x16xf32> to vector<17x16xf32>
    %392 = arith.truncf %391 : vector<17x16xf32> to vector<17x16xbf16>
    %cst_215 = arith.constant dense<0.000000e+00> : vector<24x17xf32>
    %393 = tpu.matmul %388, %390, %cst_215 {dimension_numbers = #tpu.dot_dimension_numbers<[1], [1], [0], [0], [0, 0, 1, 0], [], []>} : vector<24x16xbf16>, vector<17x16xbf16>, vector<24x17xf32> -> vector<24x17xf32>
    %cst_216 = arith.constant dense<0xFF800000> : vector<24xf32>
    %394 = vector.multi_reduction <maximumf>, %393, %cst_216 [1] : vector<24x17xf32> to vector<24xf32>
    %395 = vector.shape_cast %394 : vector<24xf32> to vector<24x1xf32>
    %396 = vector.broadcast %395 : vector<24x1xf32> to vector<24x17xf32>
    %397 = arith.subf %393, %396 : vector<24x17xf32>
    %398 = math.exp %397 : vector<24x17xf32>
    %cst_217 = arith.constant dense<0.000000e+00> : vector<24xf32>
    %399 = vector.multi_reduction <add>, %398, %cst_217 [1] : vector<24x17xf32> to vector<24xf32>
    %400 = vector.shape_cast %399 : vector<24xf32> to vector<24x1xf32>
    %401 = tpu.reciprocal %400 {approx = true} : vector<24x1xf32> -> vector<24x1xf32>
    %402 = vector.broadcast %401 : vector<24x1xf32> to vector<24x17xf32>
    %403 = arith.mulf %398, %402 : vector<24x17xf32>
    %404 = arith.truncf %403 : vector<24x17xf32> to vector<24x17xbf16>
    %cst_218 = arith.constant dense<0.000000e+00> : vector<24x16xf32>
    %405 = tpu.matmul %404, %392, %cst_218 {dimension_numbers = #tpu.dot_dimension_numbers<[1], [0], [0], [1], [0, 0, 1, 1], [], []>} : vector<24x17xbf16>, vector<17x16xbf16>, vector<24x16xf32> -> vector<24x16xf32>
    %406 = arith.truncf %405 : vector<24x16xf32> to vector<24x16xbf16>
    %cst_219 = arith.constant dense<0.000000e+00> : vector<24x32xf32>
    %407 = tpu.matmul %406, %364, %cst_219 {dimension_numbers = #tpu.dot_dimension_numbers<[1], [0], [0], [1], [0, 0, 1, 1], [], []>} : vector<24x16xbf16>, vector<16x32xbf16>, vector<24x32xf32> -> vector<24x32xf32>
    %408 = arith.addf %344, %407 : vector<24x32xf32>
    %409 = vector.broadcast %251 : vector<1x32xf32> to vector<24x32xf32>
    %410 = arith.addf %386, %409 : vector<24x32xf32>
    %411 = vector.broadcast %251 : vector<1x32xf32> to vector<24x32xf32>
    %412 = arith.addf %408, %411 : vector<24x32xf32>
    %413 = tpu.concatenate %410, %412 in 0 : vector<24x32xf32>, vector<24x32xf32> -> vector<48x32xf32>
    %414 = arith.addf %239, %413 : vector<48x32xf32>
    %cst_220 = arith.constant dense<0.000000e+00> : vector<48xf32>
    %415 = vector.multi_reduction <add>, %414, %cst_220 [1] : vector<48x32xf32> to vector<48xf32>
    %416 = vector.shape_cast %415 : vector<48xf32> to vector<48x1xf32>
    %cst_221 = arith.constant 3.200000e+01 : f32
    %417 = vector.broadcast %cst_221 : f32 to vector<48x1xf32>
    %418 = arith.divf %416, %417 : vector<48x1xf32>
    %419 = vector.broadcast %418 : vector<48x1xf32> to vector<48x32xf32>
    %420 = arith.subf %414, %419 : vector<48x32xf32>
    %421 = arith.mulf %420, %420 : vector<48x32xf32>
    %cst_222 = arith.constant dense<0.000000e+00> : vector<48xf32>
    %422 = vector.multi_reduction <add>, %421, %cst_222 [1] : vector<48x32xf32> to vector<48xf32>
    %423 = vector.shape_cast %422 : vector<48xf32> to vector<48x1xf32>
    %cst_223 = arith.constant 3.200000e+01 : f32
    %424 = vector.broadcast %cst_223 : f32 to vector<48x1xf32>
    %425 = arith.divf %423, %424 : vector<48x1xf32>
    %426 = vector.broadcast %418 : vector<48x1xf32> to vector<48x32xf32>
    %427 = arith.subf %414, %426 : vector<48x32xf32>
    %cst_224 = arith.constant 9.99999997E-7 : f32
    %428 = vector.broadcast %cst_224 : f32 to vector<48x1xf32>
    %429 = arith.addf %425, %428 : vector<48x1xf32>
    %430 = math.rsqrt %429 : vector<48x1xf32>
    %431 = vector.broadcast %430 : vector<48x1xf32> to vector<48x32xf32>
    %432 = arith.mulf %427, %431 : vector<48x32xf32>
    %433 = vector.broadcast %253 : vector<1x32xf32> to vector<48x32xf32>
    %434 = arith.mulf %432, %433 : vector<48x32xf32>
    %435 = vector.broadcast %255 : vector<1x32xf32> to vector<48x32xf32>
    %436 = arith.addf %434, %435 : vector<48x32xf32>
    %437 = arith.truncf %436 : vector<48x32xf32> to vector<48x32xbf16>
    %c1_225 = arith.constant 1 : index
    %c0_226 = arith.constant 0 : index
    %c0_227 = arith.constant 0 : index
    %438 = vector.load %arg7[%c1_225, %c0_226, %c0_227] : memref<2x32x64xbf16, #tpu.memory_space<vmem>>, vector<1x32x64xbf16>
    %439 = vector.shape_cast %438 : vector<1x32x64xbf16> to vector<32x64xbf16>
    %cst_228 = arith.constant dense<0.000000e+00> : vector<48x64xf32>
    %440 = tpu.matmul %437, %439, %cst_228 {dimension_numbers = #tpu.dot_dimension_numbers<[1], [0], [0], [1], [0, 0, 1, 1], [], []>} : vector<48x32xbf16>, vector<32x64xbf16>, vector<48x64xf32> -> vector<48x64xf32>
    %441 = vector.broadcast %259 : vector<1x64xf32> to vector<48x64xf32>
    %442 = arith.addf %440, %441 : vector<48x64xf32>
    %443 = arith.mulf %442, %442 : vector<48x64xf32>
    %444 = arith.mulf %442, %443 : vector<48x64xf32>
    %cst_229 = arith.constant 4.471500e-02 : f32
    %445 = vector.broadcast %cst_229 : f32 to vector<48x64xf32>
    %446 = arith.mulf %445, %444 : vector<48x64xf32>
    %447 = arith.addf %442, %446 : vector<48x64xf32>
    %cst_230 = arith.constant 0.797884583 : f32
    %448 = vector.broadcast %cst_230 : f32 to vector<48x64xf32>
    %449 = arith.mulf %448, %447 : vector<48x64xf32>
    %450 = math.tanh %449 : vector<48x64xf32>
    %cst_231 = arith.constant 1.000000e+00 : f32
    %451 = vector.broadcast %cst_231 : f32 to vector<48x64xf32>
    %452 = arith.addf %451, %450 : vector<48x64xf32>
    %cst_232 = arith.constant 5.000000e-01 : f32
    %453 = vector.broadcast %cst_232 : f32 to vector<48x64xf32>
    %454 = arith.mulf %453, %452 : vector<48x64xf32>
    %455 = arith.mulf %442, %454 : vector<48x64xf32>
    %456 = arith.truncf %455 : vector<48x64xf32> to vector<48x64xbf16>
    %c1_233 = arith.constant 1 : index
    %c0_234 = arith.constant 0 : index
    %c0_235 = arith.constant 0 : index
    %457 = vector.load %arg8[%c1_233, %c0_234, %c0_235] : memref<2x64x32xbf16, #tpu.memory_space<vmem>>, vector<1x64x32xbf16>
    %458 = vector.shape_cast %457 : vector<1x64x32xbf16> to vector<64x32xbf16>
    %cst_236 = arith.constant dense<0.000000e+00> : vector<48x32xf32>
    %459 = tpu.matmul %456, %458, %cst_236 {dimension_numbers = #tpu.dot_dimension_numbers<[1], [0], [0], [1], [0, 0, 1, 1], [], []>} : vector<48x64xbf16>, vector<64x32xbf16>, vector<48x32xf32> -> vector<48x32xf32>
    %460 = vector.broadcast %257 : vector<1x32xf32> to vector<48x32xf32>
    %461 = arith.addf %459, %460 : vector<48x32xf32>
    %462 = arith.addf %414, %461 : vector<48x32xf32>
    %c0_237 = arith.constant 0 : index
    %c0_238 = arith.constant 0 : index
    %463 = vector.load %arg10[%c0_237, %c0_238] : memref<8x64xf32, #tpu.memory_space<vmem>>, vector<1x32xf32>
    %c1_239 = arith.constant 1 : index
    %c0_240 = arith.constant 0 : index
    %464 = vector.load %arg10[%c1_239, %c0_240] : memref<8x64xf32, #tpu.memory_space<vmem>>, vector<1x32xf32>
    %cst_241 = arith.constant dense<0.000000e+00> : vector<48xf32>
    %465 = vector.multi_reduction <add>, %462, %cst_241 [1] : vector<48x32xf32> to vector<48xf32>
    %466 = vector.shape_cast %465 : vector<48xf32> to vector<48x1xf32>
    %cst_242 = arith.constant 3.200000e+01 : f32
    %467 = vector.broadcast %cst_242 : f32 to vector<48x1xf32>
    %468 = arith.divf %466, %467 : vector<48x1xf32>
    %469 = vector.broadcast %468 : vector<48x1xf32> to vector<48x32xf32>
    %470 = arith.subf %462, %469 : vector<48x32xf32>
    %471 = arith.mulf %470, %470 : vector<48x32xf32>
    %cst_243 = arith.constant dense<0.000000e+00> : vector<48xf32>
    %472 = vector.multi_reduction <add>, %471, %cst_243 [1] : vector<48x32xf32> to vector<48xf32>
    %473 = vector.shape_cast %472 : vector<48xf32> to vector<48x1xf32>
    %cst_244 = arith.constant 3.200000e+01 : f32
    %474 = vector.broadcast %cst_244 : f32 to vector<48x1xf32>
    %475 = arith.divf %473, %474 : vector<48x1xf32>
    %476 = vector.broadcast %468 : vector<48x1xf32> to vector<48x32xf32>
    %477 = arith.subf %462, %476 : vector<48x32xf32>
    %cst_245 = arith.constant 9.99999997E-7 : f32
    %478 = vector.broadcast %cst_245 : f32 to vector<48x1xf32>
    %479 = arith.addf %475, %478 : vector<48x1xf32>
    %480 = math.rsqrt %479 : vector<48x1xf32>
    %481 = vector.broadcast %480 : vector<48x1xf32> to vector<48x32xf32>
    %482 = arith.mulf %477, %481 : vector<48x32xf32>
    %483 = vector.broadcast %463 : vector<1x32xf32> to vector<48x32xf32>
    %484 = arith.mulf %482, %483 : vector<48x32xf32>
    %485 = vector.broadcast %464 : vector<1x32xf32> to vector<48x32xf32>
    %486 = arith.addf %484, %485 : vector<48x32xf32>
    %c2_246 = arith.constant 2 : index
    %c0_247 = arith.constant 0 : index
    %487 = vector.load %arg10[%c2_246, %c0_247] : memref<8x64xf32, #tpu.memory_space<vmem>>, vector<1x32xf32>
    %488 = arith.truncf %487 : vector<1x32xf32> to vector<1x32xbf16>
    %c3_248 = arith.constant 3 : index
    %c0_249 = arith.constant 0 : index
    %489 = vector.load %arg10[%c3_248, %c0_249] : memref<8x64xf32, #tpu.memory_space<vmem>>, vector<1x1xf32>
    %c4_250 = arith.constant 4 : index
    %c0_251 = arith.constant 0 : index
    %490 = vector.load %arg10[%c4_250, %c0_251] : memref<8x64xf32, #tpu.memory_space<vmem>>, vector<1x32xf32>
    %c4_252 = arith.constant 4 : index
    %c32 = arith.constant 32 : index
    %491 = vector.load %arg10[%c4_252, %c32] : memref<8x64xf32, #tpu.memory_space<vmem>>, vector<1x32xf32>
    %c5_253 = arith.constant 5 : index
    %c0_254 = arith.constant 0 : index
    %492 = vector.load %arg10[%c5_253, %c0_254] : memref<8x64xf32, #tpu.memory_space<vmem>>, vector<1x32xf32>
    %c5_255 = arith.constant 5 : index
    %c32_256 = arith.constant 32 : index
    %493 = vector.load %arg10[%c5_255, %c32_256] : memref<8x64xf32, #tpu.memory_space<vmem>>, vector<1x32xf32>
    %c6_257 = arith.constant 6 : index
    %c0_258 = arith.constant 0 : index
    %494 = vector.load %arg10[%c6_257, %c0_258] : memref<8x64xf32, #tpu.memory_space<vmem>>, vector<1x64xf32>
    %c7_259 = arith.constant 7 : index
    %c0_260 = arith.constant 0 : index
    %495 = vector.load %arg10[%c7_259, %c0_260] : memref<8x64xf32, #tpu.memory_space<vmem>>, vector<1x2xf32>
    %c0_261 = arith.constant 0 : index
    %c0_262 = arith.constant 0 : index
    %496 = vector.load %arg11[%c0_261, %c0_262] : memref<64x64xbf16, #tpu.memory_space<vmem>>, vector<32x64xbf16>
    %c32_263 = arith.constant 32 : index
    %c0_264 = arith.constant 0 : index
    %497 = vector.load %arg11[%c32_263, %c0_264] : memref<64x64xbf16, #tpu.memory_space<vmem>>, vector<32x64xbf16>
    %498 = vector.extract_strided_slice %486 {offsets = [0, 0], sizes = [16, 32], strides = [1, 1]} : vector<48x32xf32> to vector<16x32xf32>
    %499 = vector.extract_strided_slice %486 {offsets = [16, 0], sizes = [1, 32], strides = [1, 1]} : vector<48x32xf32> to vector<1x32xf32>
    %500 = arith.truncf %498 : vector<16x32xf32> to vector<16x32xbf16>
    %cst_265 = arith.constant dense<0.000000e+00> : vector<1x16xf32>
    %501 = tpu.matmul %488, %500, %cst_265 {dimension_numbers = #tpu.dot_dimension_numbers<[1], [1], [0], [0], [0, 0, 1, 0], [], []>} : vector<1x32xbf16>, vector<16x32xbf16>, vector<1x16xf32> -> vector<1x16xf32>
    %502 = vector.broadcast %489 : vector<1x1xf32> to vector<1x16xf32>
    %503 = arith.addf %501, %502 : vector<1x16xf32>
    %cst_266 = arith.constant dense<0xFF800000> : vector<1xf32>
    %504 = vector.multi_reduction <maximumf>, %503, %cst_266 [1] : vector<1x16xf32> to vector<1xf32>
    %505 = vector.shape_cast %504 : vector<1xf32> to vector<1x1xf32>
    %506 = vector.broadcast %505 : vector<1x1xf32> to vector<1x16xf32>
    %507 = arith.subf %503, %506 : vector<1x16xf32>
    %508 = math.exp %507 : vector<1x16xf32>
    %cst_267 = arith.constant dense<0.000000e+00> : vector<1xf32>
    %509 = vector.multi_reduction <add>, %508, %cst_267 [1] : vector<1x16xf32> to vector<1xf32>
    %510 = vector.shape_cast %509 : vector<1xf32> to vector<1x1xf32>
    %511 = vector.broadcast %510 : vector<1x1xf32> to vector<1x16xf32>
    %512 = arith.divf %508, %511 : vector<1x16xf32>
    %513 = arith.truncf %512 : vector<1x16xf32> to vector<1x16xbf16>
    %cst_268 = arith.constant dense<0.000000e+00> : vector<1x32xf32>
    %514 = tpu.matmul %513, %500, %cst_268 {dimension_numbers = #tpu.dot_dimension_numbers<[1], [0], [0], [1], [0, 0, 1, 1], [], []>} : vector<1x16xbf16>, vector<16x32xbf16>, vector<1x32xf32> -> vector<1x32xf32>
    %cst_269 = arith.constant dense<0.000000e+00> : vector<1xf32>
    %515 = vector.multi_reduction <add>, %499, %cst_269 [1] : vector<1x32xf32> to vector<1xf32>
    %516 = vector.shape_cast %515 : vector<1xf32> to vector<1x1xf32>
    %cst_270 = arith.constant dense<0.000000e+00> : vector<1xf32>
    %517 = vector.multi_reduction <add>, %514, %cst_270 [1] : vector<1x32xf32> to vector<1xf32>
    %518 = vector.shape_cast %517 : vector<1xf32> to vector<1x1xf32>
    %519 = arith.addf %516, %518 : vector<1x1xf32>
    %520 = arith.mulf %499, %499 : vector<1x32xf32>
    %cst_271 = arith.constant dense<0.000000e+00> : vector<1xf32>
    %521 = vector.multi_reduction <add>, %520, %cst_271 [1] : vector<1x32xf32> to vector<1xf32>
    %522 = vector.shape_cast %521 : vector<1xf32> to vector<1x1xf32>
    %523 = arith.mulf %514, %514 : vector<1x32xf32>
    %cst_272 = arith.constant dense<0.000000e+00> : vector<1xf32>
    %524 = vector.multi_reduction <add>, %523, %cst_272 [1] : vector<1x32xf32> to vector<1xf32>
    %525 = vector.shape_cast %524 : vector<1xf32> to vector<1x1xf32>
    %526 = arith.addf %522, %525 : vector<1x1xf32>
    %cst_273 = arith.constant 6.400000e+01 : f32
    %527 = vector.broadcast %cst_273 : f32 to vector<1x1xf32>
    %528 = arith.divf %519, %527 : vector<1x1xf32>
    %cst_274 = arith.constant 6.400000e+01 : f32
    %529 = vector.broadcast %cst_274 : f32 to vector<1x1xf32>
    %530 = arith.divf %526, %529 : vector<1x1xf32>
    %531 = arith.mulf %528, %528 : vector<1x1xf32>
    %532 = arith.subf %530, %531 : vector<1x1xf32>
    %cst_275 = arith.constant 9.99999974E-6 : f32
    %533 = vector.broadcast %cst_275 : f32 to vector<1x1xf32>
    %534 = arith.addf %532, %533 : vector<1x1xf32>
    %535 = math.rsqrt %534 : vector<1x1xf32>
    %536 = vector.broadcast %528 : vector<1x1xf32> to vector<1x32xf32>
    %537 = arith.subf %499, %536 : vector<1x32xf32>
    %538 = vector.broadcast %535 : vector<1x1xf32> to vector<1x32xf32>
    %539 = arith.mulf %537, %538 : vector<1x32xf32>
    %540 = arith.mulf %539, %490 : vector<1x32xf32>
    %541 = arith.addf %540, %492 : vector<1x32xf32>
    %542 = vector.broadcast %528 : vector<1x1xf32> to vector<1x32xf32>
    %543 = arith.subf %514, %542 : vector<1x32xf32>
    %544 = vector.broadcast %535 : vector<1x1xf32> to vector<1x32xf32>
    %545 = arith.mulf %543, %544 : vector<1x32xf32>
    %546 = arith.mulf %545, %491 : vector<1x32xf32>
    %547 = arith.addf %546, %493 : vector<1x32xf32>
    %548 = arith.truncf %541 : vector<1x32xf32> to vector<1x32xbf16>
    %cst_276 = arith.constant dense<0.000000e+00> : vector<1x64xf32>
    %549 = tpu.matmul %548, %496, %cst_276 {dimension_numbers = #tpu.dot_dimension_numbers<[1], [0], [0], [1], [0, 0, 1, 1], [], []>} : vector<1x32xbf16>, vector<32x64xbf16>, vector<1x64xf32> -> vector<1x64xf32>
    %550 = arith.truncf %547 : vector<1x32xf32> to vector<1x32xbf16>
    %cst_277 = arith.constant dense<0.000000e+00> : vector<1x64xf32>
    %551 = tpu.matmul %550, %497, %cst_277 {dimension_numbers = #tpu.dot_dimension_numbers<[1], [0], [0], [1], [0, 0, 1, 1], [], []>} : vector<1x32xbf16>, vector<32x64xbf16>, vector<1x64xf32> -> vector<1x64xf32>
    %552 = arith.addf %549, %551 : vector<1x64xf32>
    %553 = arith.addf %552, %494 : vector<1x64xf32>
    %cst_278 = arith.constant 0.000000e+00 : f32
    %554 = vector.broadcast %cst_278 : f32 to vector<1x64xf32>
    %555 = arith.maximumf %553, %554 : vector<1x64xf32>
    %556 = arith.truncf %555 : vector<1x64xf32> to vector<1x64xbf16>
    %c0_279 = arith.constant 0 : index
    %c0_280 = arith.constant 0 : index
    %557 = vector.load %arg12[%c0_279, %c0_280] : memref<64x2xbf16, #tpu.memory_space<vmem>>, vector<64x2xbf16>
    %cst_281 = arith.constant dense<0.000000e+00> : vector<1x2xf32>
    %558 = tpu.matmul %556, %557, %cst_281 {dimension_numbers = #tpu.dot_dimension_numbers<[1], [0], [0], [1], [0, 0, 1, 1], [], []>} : vector<1x64xbf16>, vector<64x2xbf16>, vector<1x2xf32> -> vector<1x2xf32>
    %559 = arith.addf %558, %495 : vector<1x2xf32>
    %560 = vector.extract_strided_slice %486 {offsets = [24, 0], sizes = [16, 32], strides = [1, 1]} : vector<48x32xf32> to vector<16x32xf32>
    %561 = vector.extract_strided_slice %486 {offsets = [40, 0], sizes = [1, 32], strides = [1, 1]} : vector<48x32xf32> to vector<1x32xf32>
    %562 = arith.truncf %560 : vector<16x32xf32> to vector<16x32xbf16>
    %cst_282 = arith.constant dense<0.000000e+00> : vector<1x16xf32>
    %563 = tpu.matmul %488, %562, %cst_282 {dimension_numbers = #tpu.dot_dimension_numbers<[1], [1], [0], [0], [0, 0, 1, 0], [], []>} : vector<1x32xbf16>, vector<16x32xbf16>, vector<1x16xf32> -> vector<1x16xf32>
    %564 = vector.broadcast %489 : vector<1x1xf32> to vector<1x16xf32>
    %565 = arith.addf %563, %564 : vector<1x16xf32>
    %cst_283 = arith.constant dense<0xFF800000> : vector<1xf32>
    %566 = vector.multi_reduction <maximumf>, %565, %cst_283 [1] : vector<1x16xf32> to vector<1xf32>
    %567 = vector.shape_cast %566 : vector<1xf32> to vector<1x1xf32>
    %568 = vector.broadcast %567 : vector<1x1xf32> to vector<1x16xf32>
    %569 = arith.subf %565, %568 : vector<1x16xf32>
    %570 = math.exp %569 : vector<1x16xf32>
    %cst_284 = arith.constant dense<0.000000e+00> : vector<1xf32>
    %571 = vector.multi_reduction <add>, %570, %cst_284 [1] : vector<1x16xf32> to vector<1xf32>
    %572 = vector.shape_cast %571 : vector<1xf32> to vector<1x1xf32>
    %573 = vector.broadcast %572 : vector<1x1xf32> to vector<1x16xf32>
    %574 = arith.divf %570, %573 : vector<1x16xf32>
    %575 = arith.truncf %574 : vector<1x16xf32> to vector<1x16xbf16>
    %cst_285 = arith.constant dense<0.000000e+00> : vector<1x32xf32>
    %576 = tpu.matmul %575, %562, %cst_285 {dimension_numbers = #tpu.dot_dimension_numbers<[1], [0], [0], [1], [0, 0, 1, 1], [], []>} : vector<1x16xbf16>, vector<16x32xbf16>, vector<1x32xf32> -> vector<1x32xf32>
    %cst_286 = arith.constant dense<0.000000e+00> : vector<1xf32>
    %577 = vector.multi_reduction <add>, %561, %cst_286 [1] : vector<1x32xf32> to vector<1xf32>
    %578 = vector.shape_cast %577 : vector<1xf32> to vector<1x1xf32>
    %cst_287 = arith.constant dense<0.000000e+00> : vector<1xf32>
    %579 = vector.multi_reduction <add>, %576, %cst_287 [1] : vector<1x32xf32> to vector<1xf32>
    %580 = vector.shape_cast %579 : vector<1xf32> to vector<1x1xf32>
    %581 = arith.addf %578, %580 : vector<1x1xf32>
    %582 = arith.mulf %561, %561 : vector<1x32xf32>
    %cst_288 = arith.constant dense<0.000000e+00> : vector<1xf32>
    %583 = vector.multi_reduction <add>, %582, %cst_288 [1] : vector<1x32xf32> to vector<1xf32>
    %584 = vector.shape_cast %583 : vector<1xf32> to vector<1x1xf32>
    %585 = arith.mulf %576, %576 : vector<1x32xf32>
    %cst_289 = arith.constant dense<0.000000e+00> : vector<1xf32>
    %586 = vector.multi_reduction <add>, %585, %cst_289 [1] : vector<1x32xf32> to vector<1xf32>
    %587 = vector.shape_cast %586 : vector<1xf32> to vector<1x1xf32>
    %588 = arith.addf %584, %587 : vector<1x1xf32>
    %cst_290 = arith.constant 6.400000e+01 : f32
    %589 = vector.broadcast %cst_290 : f32 to vector<1x1xf32>
    %590 = arith.divf %581, %589 : vector<1x1xf32>
    %cst_291 = arith.constant 6.400000e+01 : f32
    %591 = vector.broadcast %cst_291 : f32 to vector<1x1xf32>
    %592 = arith.divf %588, %591 : vector<1x1xf32>
    %593 = arith.mulf %590, %590 : vector<1x1xf32>
    %594 = arith.subf %592, %593 : vector<1x1xf32>
    %cst_292 = arith.constant 9.99999974E-6 : f32
    %595 = vector.broadcast %cst_292 : f32 to vector<1x1xf32>
    %596 = arith.addf %594, %595 : vector<1x1xf32>
    %597 = math.rsqrt %596 : vector<1x1xf32>
    %598 = vector.broadcast %590 : vector<1x1xf32> to vector<1x32xf32>
    %599 = arith.subf %561, %598 : vector<1x32xf32>
    %600 = vector.broadcast %597 : vector<1x1xf32> to vector<1x32xf32>
    %601 = arith.mulf %599, %600 : vector<1x32xf32>
    %602 = arith.mulf %601, %490 : vector<1x32xf32>
    %603 = arith.addf %602, %492 : vector<1x32xf32>
    %604 = vector.broadcast %590 : vector<1x1xf32> to vector<1x32xf32>
    %605 = arith.subf %576, %604 : vector<1x32xf32>
    %606 = vector.broadcast %597 : vector<1x1xf32> to vector<1x32xf32>
    %607 = arith.mulf %605, %606 : vector<1x32xf32>
    %608 = arith.mulf %607, %491 : vector<1x32xf32>
    %609 = arith.addf %608, %493 : vector<1x32xf32>
    %610 = arith.truncf %603 : vector<1x32xf32> to vector<1x32xbf16>
    %cst_293 = arith.constant dense<0.000000e+00> : vector<1x64xf32>
    %611 = tpu.matmul %610, %496, %cst_293 {dimension_numbers = #tpu.dot_dimension_numbers<[1], [0], [0], [1], [0, 0, 1, 1], [], []>} : vector<1x32xbf16>, vector<32x64xbf16>, vector<1x64xf32> -> vector<1x64xf32>
    %612 = arith.truncf %609 : vector<1x32xf32> to vector<1x32xbf16>
    %cst_294 = arith.constant dense<0.000000e+00> : vector<1x64xf32>
    %613 = tpu.matmul %612, %497, %cst_294 {dimension_numbers = #tpu.dot_dimension_numbers<[1], [0], [0], [1], [0, 0, 1, 1], [], []>} : vector<1x32xbf16>, vector<32x64xbf16>, vector<1x64xf32> -> vector<1x64xf32>
    %614 = arith.addf %611, %613 : vector<1x64xf32>
    %615 = arith.addf %614, %494 : vector<1x64xf32>
    %cst_295 = arith.constant 0.000000e+00 : f32
    %616 = vector.broadcast %cst_295 : f32 to vector<1x64xf32>
    %617 = arith.maximumf %615, %616 : vector<1x64xf32>
    %618 = arith.truncf %617 : vector<1x64xf32> to vector<1x64xbf16>
    %c0_296 = arith.constant 0 : index
    %c0_297 = arith.constant 0 : index
    %619 = vector.load %arg12[%c0_296, %c0_297] : memref<64x2xbf16, #tpu.memory_space<vmem>>, vector<64x2xbf16>
    %cst_298 = arith.constant dense<0.000000e+00> : vector<1x2xf32>
    %620 = tpu.matmul %618, %619, %cst_298 {dimension_numbers = #tpu.dot_dimension_numbers<[1], [0], [0], [1], [0, 0, 1, 1], [], []>} : vector<1x64xbf16>, vector<64x2xbf16>, vector<1x2xf32> -> vector<1x2xf32>
    %621 = arith.addf %620, %495 : vector<1x2xf32>
    %622 = tpu.concatenate %559, %621 in 0 : vector<1x2xf32>, vector<1x2xf32> -> vector<2x2xf32>
    %c0_299 = arith.constant 0 : index
    %c0_300 = arith.constant 0 : index
    %623 = vector.load %arg13[%c0_299, %c0_300] : memref<2x2xf32, #tpu.memory_space<vmem>>, vector<2x2xf32>
    tpu.vector_store %arg13[%c0_299, %c0_300], %622 {strides = array<i32>} : memref<2x2xf32, #tpu.memory_space<vmem>>, vector<2x2xf32>,
    %624 = tpu.concatenate %512, %574 in 0 : vector<1x16xf32>, vector<1x16xf32> -> vector<2x16xf32>
    %c0_301 = arith.constant 0 : index
    %c0_302 = arith.constant 0 : index
    %625 = vector.load %arg14[%c0_301, %c0_302] : memref<2x16xf32, #tpu.memory_space<vmem>>, vector<2x16xf32>
    tpu.vector_store %arg14[%c0_301, %c0_302], %624 {strides = array<i32>} : memref<2x16xf32, #tpu.memory_space<vmem>>, vector<2x16xf32>,
    return
  }
}

</mosaic_0001>

<llo_original>
// kernel: vit_gradcam_forward.1
$region0: #{vit_gradcam_forward.1}
  #allocation0 [shape = 'u32[]', space=smem, size = 0x4, offset = 0x4, fixed_abs, tag = 'smem constant byte address 0x4 - core index']
  #allocation1 [shape = 'u32[144,128]{1,0:T(1,128)}', space=vmem, size = 0x12000, scoped, tag = 'internal scratch']
  %s0 = inlined_call_operand.vmem [shape: f32[32,64], index: 0, kind: input, shape index: {}]
  %s1 = inlined_call_operand.vmem [shape: bf16[64,32], index: 1, kind: input, shape index: {}]
  %s2 = inlined_call_operand.vmem [shape: f32[1,32], index: 2, kind: input, shape index: {}]
  %s3 = inlined_call_operand.vmem [shape: f32[1,32], index: 3, kind: input, shape index: {}]
  %s4 = inlined_call_operand.vmem [shape: f32[16,32], index: 4, kind: input, shape index: {}]
  %s5 = inlined_call_operand.vmem [shape: bf16[2,3,2,32,16], index: 5, kind: input, shape index: {}]
  %s6 = inlined_call_operand.vmem [shape: bf16[2,2,16,32], index: 6, kind: input, shape index: {}]
  %s7 = inlined_call_operand.vmem [shape: bf16[2,32,64], index: 7, kind: input, shape index: {}]
  %s8 = inlined_call_operand.vmem [shape: bf16[2,64,32], index: 8, kind: input, shape index: {}]
  %s9 = inlined_call_operand.vmem [shape: f32[2,10,64], index: 9, kind: input, shape index: {}]
  %s10 = inlined_call_operand.vmem [shape: f32[8,64], index: 10, kind: input, shape index: {}]
  %s11 = inlined_call_operand.vmem [shape: bf16[64,64], index: 11, kind: input, shape index: {}]
  %s12 = inlined_call_operand.vmem [shape: bf16[64,2], index: 12, kind: input, shape index: {}]
  %s13 = inlined_call_operand.hbm [shape: f32[2,2], index: 13, kind: output, shape index: {0}]
  %s14 = inlined_call_operand.hbm [shape: f32[2,16], index: 14, kind: output, shape index: {1}]
  %15 = xla_tuple %s13, %s14
  %s16 = sld [smem:[#allocation0]]
  $region70: #{vit_gradcam_forward.1} parent=0
    _
  %s18 = ssub.s32 1, %s16
  %s19 = scalar_select 0, %s18, %s16
  $region1: #{vit_gradcam_forward.1} parent=0
    #allocation2 [shape = 'u8[1024]{0}', space=vmem, size = 0x400, scoped, tag = 'output window, operand 0, single buffered']
    #allocation3 [shape = 's32[1]{0}', space=sflag, size = 0x4, scoped, tag = 'scoped memory for vit_gradcam_forward.1']
    #allocation4 [shape = 'u8[1024]{0}', space=vmem, size = 0x400, scoped, tag = 'output window, operand 1, single buffered']
    #allocation5 [shape = 's32[1]{0}', space=sflag, size = 0x4, scoped, tag = 'scoped memory for vit_gradcam_forward.1']
    %20 = vsyncpa [#allocation3], 0
    %21 = vsyncpa [#allocation5], 0
    // Predicated region
    $region2: #{vit_gradcam_forward.1} parent=1 // pred_check
      _
    $region3: #{vit_gradcam_forward.1} parent=1 // pred_check_branch
      %23 = sbr.rel (0) target = $region5
    $region4: #{vit_gradcam_forward.1} parent=1 // pred_region
      _
    $region5: #{vit_gradcam_forward.1} parent=1 // pred_fallthru
      _
    // Predicated region
    $region6: #{vit_gradcam_forward.1} parent=1 // pred_check
      _
    $region7: #{vit_gradcam_forward.1} parent=1 // pred_check_branch
      %25 = sbr.rel (0) target = $region9
    $region8: #{vit_gradcam_forward.1} parent=1 // pred_region
      _
    $region9: #{vit_gradcam_forward.1} parent=1 // pred_fallthru
      _
    // Predicated region
    $region10: #{vit_gradcam_forward.1} parent=1 // pred_check
      _
    $region11: #{vit_gradcam_forward.1} parent=1 // pred_check_branch
      %27 = sbr.rel (0) target = $region13
    $region12: #{vit_gradcam_forward.1} parent=1 // pred_region
      _
    $region13: #{vit_gradcam_forward.1} parent=1 // pred_fallthru
      _
    // Predicated region
    $region14: #{vit_gradcam_forward.1} parent=1 // pred_check
      _
    $region15: #{vit_gradcam_forward.1} parent=1 // pred_check_branch
      %29 = sbr.rel (0) target = $region17
    $region16: #{vit_gradcam_forward.1} parent=1 // pred_region
      _
    $region17: #{vit_gradcam_forward.1} parent=1 // pred_fallthru
      _
    // Predicated region
    $region18: #{vit_gradcam_forward.1} parent=1 // pred_check
      _
    $region19: #{vit_gradcam_forward.1} parent=1 // pred_check_branch
      %31 = sbr.rel (0) target = $region21
    $region20: #{vit_gradcam_forward.1} parent=1 // pred_region
      _
    $region21: #{vit_gradcam_forward.1} parent=1 // pred_fallthru
      _
    // Predicated region
    $region22: #{vit_gradcam_forward.1} parent=1 // pred_check
      _
    $region23: #{vit_gradcam_forward.1} parent=1 // pred_check_branch
      %33 = sbr.rel (0) target = $region25
    $region24: #{vit_gradcam_forward.1} parent=1 // pred_region
      _
    $region25: #{vit_gradcam_forward.1} parent=1 // pred_fallthru
      _
    // Predicated region
    $region26: #{vit_gradcam_forward.1} parent=1 // pred_check
      _
    $region27: #{vit_gradcam_forward.1} parent=1 // pred_check_branch
      %35 = sbr.rel (0) target = $region29
    $region28: #{vit_gradcam_forward.1} parent=1 // pred_region
      _
    $region29: #{vit_gradcam_forward.1} parent=1 // pred_fallthru
      _
    // Predicated region
    $region30: #{vit_gradcam_forward.1} parent=1 // pred_check
      _
    $region31: #{vit_gradcam_forward.1} parent=1 // pred_check_branch
      %37 = sbr.rel (0) target = $region33
    $region32: #{vit_gradcam_forward.1} parent=1 // pred_region
      _
    $region33: #{vit_gradcam_forward.1} parent=1 // pred_fallthru
      _
    // Predicated region
    $region34: #{vit_gradcam_forward.1} parent=1 // pred_check
      _
    $region35: #{vit_gradcam_forward.1} parent=1 // pred_check_branch
      %39 = sbr.rel (0) target = $region37
    $region36: #{vit_gradcam_forward.1} parent=1 // pred_region
      _
    $region37: #{vit_gradcam_forward.1} parent=1 // pred_fallthru
      _
    // Predicated region
    $region38: #{vit_gradcam_forward.1} parent=1 // pred_check
      _
    $region39: #{vit_gradcam_forward.1} parent=1 // pred_check_branch
      %41 = sbr.rel (0) target = $region41
    $region40: #{vit_gradcam_forward.1} parent=1 // pred_region
      _
    $region41: #{vit_gradcam_forward.1} parent=1 // pred_fallthru
      _
    // Predicated region
    $region42: #{vit_gradcam_forward.1} parent=1 // pred_check
      _
    $region43: #{vit_gradcam_forward.1} parent=1 // pred_check_branch
      %43 = sbr.rel (0) target = $region45
    $region44: #{vit_gradcam_forward.1} parent=1 // pred_region
      _
    $region45: #{vit_gradcam_forward.1} parent=1 // pred_fallthru
      _
    // Predicated region
    $region46: #{vit_gradcam_forward.1} parent=1 // pred_check
      _
    $region47: #{vit_gradcam_forward.1} parent=1 // pred_check_branch
      %45 = sbr.rel (0) target = $region49
    $region48: #{vit_gradcam_forward.1} parent=1 // pred_region
      _
    $region49: #{vit_gradcam_forward.1} parent=1 // pred_fallthru
      _
    // Predicated region
    $region50: #{vit_gradcam_forward.1} parent=1 // pred_check
      _
    $region51: #{vit_gradcam_forward.1} parent=1 // pred_check_branch
      %47 = sbr.rel (0) target = $region53
    $region52: #{vit_gradcam_forward.1} parent=1 // pred_region
      _
    $region53: #{vit_gradcam_forward.1} parent=1 // pred_fallthru
      _
    %v49 = vld [vmem:[%s0] sm:$0xff]
    %v50 = vld [vmem:[%s0 + $0x8] sm:$0xff]
    %v51 = vld [vmem:[%s0 + $0x10] sm:$0xff]
    %v52 = vld [vmem:[%s0 + $0x18] sm:$0xff]
    %v53 = vpack.c.bf16 %v50, %v49
    %v54 = vpack.c.bf16 %v52, %v51
    %v55 = vld [vmem:[%s1] sm:$0xf]
    %v56 = vld [vmem:[%s1 + $0x4] sm:$0xf]
    %v57 = vld [vmem:[%s1 + $0x8] sm:$0xf]
    %v58 = vld [vmem:[%s1 + $0xc] sm:$0xf]
    %v59 = vld [vmem:[%s1 + $0x10] sm:$0xf]
    %v60 = vld [vmem:[%s1 + $0x14] sm:$0xf]
    %v61 = vld [vmem:[%s1 + $0x18] sm:$0xf]
    %v62 = vld [vmem:[%s1 + $0x1c] sm:$0xf]
    %v63 = vld [vmem:[%s2] sm:$0x1]
    %v65 = vlaneseq
    %v66 = vshrl.u32 %v65, 7
    %v67 = vsub.s32 0, %v66
    %v68 = vrot.slane %v63, %v67
    %v78 = vunpack.c.l.b16 %v55
    %v79 = vunpack.c.l.b16 %v56
    %v80 = vunpack.c.l.b16 %v57
    %v81 = vunpack.c.l.b16 %v58
    %v82 = vunpack.c.l.b16 %v59
    %v83 = vunpack.c.l.b16 %v60
    %v84 = vunpack.c.l.b16 %v61
    %v85 = vunpack.c.l.b16 %v62
    %v86 = vpack.c.b16 %v79, %v78
    %v87 = vpack.c.b16 %v81, %v80
    %v88 = vpack.c.b16 %v83, %v82
    %v89 = vpack.c.b16 %v85, %v84
    %vm94 = vcmask 523264
    %v96 = vsel %vm94, %v53, 0
    %v99 = vsel %vm94, %v54, 0
    %101 = vmatprep.subr.bf16.mxu0 0
    %102 = vmatpush1.bf16.msra.mxu0 0
    %103 = vmatprep.subr.bf16.mxu0 0
    %104 = vmatpush1.bf16.msra.mxu0 0
    %105 = vmatprep.subr.bf16.mxu0 0
    %106 = vmatpush1.bf16.msra.mxu0 0
    %107 = vmatprep.subr.bf16.mxu0 0
    %108 = vmatpush1.bf16.msra.mxu0 0
    %109 = vmatprep.subr.bf16.mxu0 0
    %110 = vmatpush1.bf16.msra.mxu0 %v89
    %111 = vmatprep.subr.bf16.mxu0 0
    %112 = vmatpush1.bf16.msra.mxu0 %v88
    %113 = vmatprep.subr.bf16.mxu0 0
    %114 = vmatpush1.bf16.msra.mxu0 %v87
    %115 = vmatprep.subr.bf16.mxu0 0
    %116 = vmatpush1.bf16.msra.mxu0 %v86
    %117 = vmatprep.subr.bf16.mxu0 0
    %118 = vmatpush2.bf16.msra.mxu0 0
    %119 = vmatprep.subr.bf16.mxu0 0
    %120 = vmatpush2.bf16.msra.mxu0 0
    %121 = vmatprep.subr.bf16.mxu0 0
    %122 = vmatpush2.bf16.msra.mxu0 0
    %123 = vmatprep.subr.bf16.mxu0 0
    %124 = vmatpush2.bf16.msra.mxu0 0
    %125 = vmatprep.subr.bf16.mxu0 0
    %126 = vmatpush2.bf16.msra.mxu0 0
    %127 = vmatprep.subr.bf16.mxu0 0
    %128 = vmatpush2.bf16.msra.mxu0 0
    %129 = vmatprep.subr.bf16.mxu0 0
    %130 = vmatpush2.bf16.msra.mxu0 0
    %131 = vmatprep.subr.bf16.mxu0 0
    %132 = vmatpush2.bf16.msra.mxu0 0
    %133 = vmatprep.mubr.bf16.mxu0 0
    %134 = vmatmul.mubr.bf16.gmra.mxu0 %v96
    %v135 = vpop.f32.mrf.mxu0
    %v136 = vadd.f32 %v68, %v135
    %v137 = vpop.f32.mrf.mxu0
    %v138 = vpop.f32.mrf.mxu0
    %v139 = vadd.f32 %v68, %v138
    %v140 = vpop.f32.mrf.mxu0
    %141 = vmatprep.mubr.bf16.mxu0 0
    %142 = vmatmul.mubr.bf16.gmra.mxu0 %v99
    %v143 = vpop.f32.mrf.mxu0
    %v144 = vadd.f32 %v68, %v143
    %v145 = vpop.f32.mrf.mxu0
    %v146 = vpop.f32.mrf.mxu0
    %v147 = vadd.f32 %v68, %v146
    %v148 = vpop.f32.mrf.mxu0
    %149 = vdwg.mxu0
    %v150 = vld [vmem:[%s4] sm:$0xff]
    %v151 = vld [vmem:[%s4 + $0x8] sm:$0xff]
    %v152 = vadd.f32 %v136, %v150
    %v153 = vadd.f32 %v139, %v151
    %v154 = vld [vmem:[%s3] sm:$0x1]
    %v155 = vadd.f32 %v144, %v150
    %v156 = vadd.f32 %v147, %v151
    %vm157 = vcmask 1040384
    %v158 = vsel %vm157, %v154, 0.0
    %v159 = vld [vmem:[%s9] sm:$0x1]
    %v160 = vld [vmem:[%s9 + $0x1] sm:$0x1]
    %v161 = vld [vmem:[%s9 + $0x2] sm:$0x1]
    %v162 = vld [vmem:[%s9 + $0x3] sm:$0x1]
    %v163 = vld [vmem:[%s9 + $0x4] sm:$0x1]
    %v164 = vld [vmem:[%s9 + $0x5] sm:$0x1]
    %v165 = vld [vmem:[%s9 + $0x6] sm:$0x1]
    %v166 = vld [vmem:[%s9 + $0x7] sm:$0x1]
    %v167 = vld [vmem:[%s9 + $0x8] sm:$0x1]
    %v168 = vld [vmem:[%s9 + $0x9] sm:$0x1]
    %vm169 = vcmask 261120
    %v170 = vsel %vm169, %v152, 0.0
    %171 = vadd.xlane.f32.xlu0 %v170
    %v172 = vpop.xlane.xlu0 %171
    %v173 = vsel %vm169, %v153, 0.0
    %174 = vadd.xlane.f32.xlu0 %v173
    %v175 = vpop.xlane.xlu0 %174
    %v176 = vsel %vm169, %v158, 0.0
    %177 = vadd.xlane.f32.xlu0 %v176
    %v178 = vpop.xlane.xlu0 %177
    %v179 = vsel %vm169, %v155, 0.0
    %180 = vadd.xlane.f32.xlu0 %v179
    %v181 = vpop.xlane.xlu0 %180
    %v182 = vsel %vm169, %v156, 0.0
    %183 = vadd.xlane.f32.xlu0 %v182
    %v184 = vpop.xlane.xlu0 %183
    %v185 = vrcp.pop 32.0
    %v186 = vmul.f32 %v172, %v185
    %v187 = vmul.f32 %v175, %v185
    %v188 = vmul.f32 %v178, %v185
    %v189 = vmul.f32 %v181, %v185
    %v190 = vmul.f32 %v184, %v185
    %v191 = vsub.f32 %v152, %v186
    %v192 = vsub.f32 %v153, %v187
    %v193 = vsub.f32 %v158, %v188
    %v194 = vsub.f32 %v155, %v189
    %v195 = vsub.f32 %v156, %v190
    %v196 = vmul.f32 %v191, %v191
    %v197 = vmul.f32 %v192, %v192
    %v198 = vmul.f32 %v193, %v193
    %v199 = vmul.f32 %v194, %v194
    %v200 = vmul.f32 %v195, %v195
    %v201 = vsel %vm169, %v196, 0.0
    %202 = vadd.xlane.f32.xlu0 %v201
    %v203 = vpop.xlane.xlu0 %202
    %v204 = vsel %vm169, %v197, 0.0
    %205 = vadd.xlane.f32.xlu0 %v204
    %v206 = vpop.xlane.xlu0 %205
    %v207 = vsel %vm169, %v198, 0.0
    %208 = vadd.xlane.f32.xlu0 %v207
    %v209 = vpop.xlane.xlu0 %208
    %v210 = vsel %vm169, %v199, 0.0
    %211 = vadd.xlane.f32.xlu0 %v210
    %v212 = vpop.xlane.xlu0 %211
    %v213 = vsel %vm169, %v200, 0.0
    %214 = vadd.xlane.f32.xlu0 %v213
    %v215 = vpop.xlane.xlu0 %214
    %v216 = vmul.f32 %v203, %v185
    %v217 = vmul.f32 %v206, %v185
    %v218 = vmul.f32 %v209, %v185
    %v219 = vmul.f32 %v212, %v185
    %v220 = vmul.f32 %v215, %v185
    %v221 = vadd.f32 %v216, 1e-06
    %v222 = vadd.f32 %v217, 1e-06
    %v223 = vadd.f32 %v218, 1e-06
    %v224 = vadd.f32 %v219, 1e-06
    %v225 = vadd.f32 %v220, 1e-06
    %v226 = vrsqrt.pop %v221
    %v227 = vrsqrt.pop %v222
    %v228 = vrsqrt.pop %v223
    %v229 = vrsqrt.pop %v224
    %v230 = vrsqrt.pop %v225
    %v231 = vmul.f32 %v191, %v226
    %v232 = vmul.f32 %v192, %v227
    %v233 = vmul.f32 %v193, %v228
    %v234 = vmul.f32 %v194, %v229
    %v235 = vmul.f32 %v195, %v230
    %v236 = vlaneseq
    %v237 = vshrl.u32 %v236, 7
    %v238 = vsub.s32 0, %v237
    %v239 = vrot.slane %v159, %v238
    %v240 = vmul.f32 %v231, %v239
    %v241 = vmul.f32 %v232, %v239
    %v242 = vmul.f32 %v233, %v239
    %v243 = vmul.f32 %v234, %v239
    %v244 = vmul.f32 %v235, %v239
    %v245 = vlaneseq
    %v246 = vshrl.u32 %v245, 7
    %v247 = vsub.s32 0, %v246
    %v248 = vrot.slane %v160, %v247
    %v249 = vadd.f32 %v240, %v248
    %v250 = vadd.f32 %v241, %v248
    %v251 = vadd.f32 %v242, %v248
    %v252 = vadd.f32 %v243, %v248
    %v253 = vadd.f32 %v244, %v248
    %v254 = vpack.c.bf16 %v250, %v249
    %v255 = vpack.c.bf16 %v252, %v251
    %v256 = vpack.c.bf16 %v251, %v253
    %v257 = vld [vmem:[%s5] sm:$0xf]
    %v258 = vld [vmem:[%s5 + $0x4] sm:$0xf]
    %v259 = vld [vmem:[%s5 + $0x8] sm:$0xf]
    %v260 = vld [vmem:[%s5 + $0xc] sm:$0xf]
    %v261 = vlaneseq
    %v262 = vshrl.u32 %v261, 7
    %v263 = vsub.s32 0, %v262
    %v264 = vrot.slane %v161, %v263
    %v269 = vunpack.c.l.b16 %v257
    %v270 = vunpack.c.l.b16 %v258
    %v271 = vunpack.c.l.b16 %v259
    %v272 = vunpack.c.l.b16 %v260
    %v273 = vpack.c.b16 %v270, %v269
    %v274 = vpack.c.b16 %v272, %v271
    %v278 = vsel %vm169, %v254, 0
    %v281 = vsel %vm169, %v255, 0
    %v284 = vsel %vm169, %v256, 0
    %286 = vmatprep.subr.bf16.mxu0 0
    %287 = vmatpush1.bf16.msra.mxu0 0
    %288 = vmatprep.subr.bf16.mxu0 0
    %289 = vmatpush1.bf16.msra.mxu0 0
    %290 = vmatprep.subr.bf16.mxu0 0
    %291 = vmatpush1.bf16.msra.mxu0 0
    %292 = vmatprep.subr.bf16.mxu0 0
    %293 = vmatpush1.bf16.msra.mxu0 0
    %294 = vmatprep.subr.bf16.mxu0 0
    %295 = vmatpush1.bf16.msra.mxu0 0
    %296 = vmatprep.subr.bf16.mxu0 0
    %297 = vmatpush1.bf16.msra.mxu0 0
    %298 = vmatprep.subr.bf16.mxu0 0
    %299 = vmatpush1.bf16.msra.mxu0 %v274
    %300 = vmatprep.subr.bf16.mxu0 0
    %301 = vmatpush1.bf16.msra.mxu0 %v273
    %302 = vmatprep.subr.bf16.mxu0 0
    %303 = vmatpush2.bf16.msra.mxu0 0
    %304 = vmatprep.subr.bf16.mxu0 0
    %305 = vmatpush2.bf16.msra.mxu0 0
    %306 = vmatprep.subr.bf16.mxu0 0
    %307 = vmatpush2.bf16.msra.mxu0 0
    %308 = vmatprep.subr.bf16.mxu0 0
    %309 = vmatpush2.bf16.msra.mxu0 0
    %310 = vmatprep.subr.bf16.mxu0 0
    %311 = vmatpush2.bf16.msra.mxu0 0
    %312 = vmatprep.subr.bf16.mxu0 0
    %313 = vmatpush2.bf16.msra.mxu0 0
    %314 = vmatprep.subr.bf16.mxu0 0
    %315 = vmatpush2.bf16.msra.mxu0 0
    %316 = vmatprep.subr.bf16.mxu0 0
    %317 = vmatpush2.bf16.msra.mxu0 0
    %318 = vmatprep.mubr.bf16.mxu0 0
    %319 = vmatmul.mubr.bf16.gmra.mxu0 %v278
    %v320 = vpop.f32.mrf.mxu0
    %v321 = vadd.f32 %v264, %v320
    %v322 = vpop.f32.mrf.mxu0
    %v323 = vpop.f32.mrf.mxu0
    %v324 = vadd.f32 %v264, %v323
    %v325 = vpop.f32.mrf.mxu0
    %326 = vmatprep.mubr.bf16.mxu0 0
    %327 = vmatmul.mubr.bf16.gmra.mxu0 %v281
    %v328 = vpop.f32.mrf.mxu0
    %v329 = vadd.f32 %v264, %v328
    %v330 = vpop.f32.mrf.mxu0
    %v331 = vpop.f32.mrf.mxu0
    %v332 = vadd.f32 %v264, %v331
    %v333 = vpop.f32.mrf.mxu0
    %334 = vmatprep.mubr.bf16.mxu0 0
    %335 = vmatmul.mubr.bf16.gmra.mxu0 %v284
    %v336 = vpop.f32.mrf.mxu0
    %v337 = vadd.f32 %v264, %v336
    %v338 = vpop.f32.mrf.mxu0
    %v339 = vpop.f32.mrf.mxu0
    %v340 = vadd.f32 %v264, %v339
    %v341 = vpop.f32.mrf.mxu0
    %342 = vdwg.mxu0
    %s343 = scalar_lea.vmem %s5, 32
    %v344 = vld [vmem:[%s343] sm:$0xf]
    %v345 = vld [vmem:[%s343 + $0x4] sm:$0xf]
    %v346 = vld [vmem:[%s343 + $0x8] sm:$0xf]
    %v347 = vld [vmem:[%s343 + $0xc] sm:$0xf]
    %v348 = vlaneseq
    %v349 = vshrl.u32 %v348, 7
    %v350 = vsub.s32 0, %v349
    %v351 = vrot.slane %v162, %v350
    %v356 = vunpack.c.l.b16 %v344
    %v357 = vunpack.c.l.b16 %v345
    %v358 = vunpack.c.l.b16 %v346
    %v359 = vunpack.c.l.b16 %v347
    %v360 = vpack.c.b16 %v357, %v356
    %v361 = vpack.c.b16 %v359, %v358
    %364 = vmatprep.subr.bf16.mxu0 0
    %365 = vmatpush1.bf16.msra.mxu0 0
    %366 = vmatprep.subr.bf16.mxu0 0
    %367 = vmatpush1.bf16.msra.mxu0 0
    %368 = vmatprep.subr.bf16.mxu0 0
    %369 = vmatpush1.bf16.msra.mxu0 0
    %370 = vmatprep.subr.bf16.mxu0 0
    %371 = vmatpush1.bf16.msra.mxu0 0
    %372 = vmatprep.subr.bf16.mxu0 0
    %373 = vmatpush1.bf16.msra.mxu0 0
    %374 = vmatprep.subr.bf16.mxu0 0
    %375 = vmatpush1.bf16.msra.mxu0 0
    %376 = vmatprep.subr.bf16.mxu0 0
    %377 = vmatpush1.bf16.msra.mxu0 %v361
    %378 = vmatprep.subr.bf16.mxu0 0
    %379 = vmatpush1.bf16.msra.mxu0 %v360
    %380 = vmatprep.subr.bf16.mxu0 0
    %381 = vmatpush2.bf16.msra.mxu0 0
    %382 = vmatprep.subr.bf16.mxu0 0
    %383 = vmatpush2.bf16.msra.mxu0 0
    %384 = vmatprep.subr.bf16.mxu0 0
    %385 = vmatpush2.bf16.msra.mxu0 0
    %386 = vmatprep.subr.bf16.mxu0 0
    %387 = vmatpush2.bf16.msra.mxu0 0
    %388 = vmatprep.subr.bf16.mxu0 0
    %389 = vmatpush2.bf16.msra.mxu0 0
    %390 = vmatprep.subr.bf16.mxu0 0
    %391 = vmatpush2.bf16.msra.mxu0 0
    %392 = vmatprep.subr.bf16.mxu0 0
    %393 = vmatpush2.bf16.msra.mxu0 0
    %394 = vmatprep.subr.bf16.mxu0 0
    %395 = vmatpush2.bf16.msra.mxu0 0
    %396 = vmatprep.mubr.bf16.mxu0 0
    %397 = vmatmul.mubr.bf16.gmra.mxu0 %v278
    %v398 = vpop.f32.mrf.mxu0
    %v399 = vadd.f32 %v351, %v398
    %v400 = vpop.f32.mrf.mxu0
    %v401 = vpop.f32.mrf.mxu0
    %v402 = vadd.f32 %v351, %v401
    %v403 = vpop.f32.mrf.mxu0
    %404 = vmatprep.mubr.bf16.mxu0 0
    %405 = vmatmul.mubr.bf16.gmra.mxu0 %v281
    %v406 = vpop.f32.mrf.mxu0
    %v407 = vadd.f32 %v351, %v406
    %v408 = vpop.f32.mrf.mxu0
    %v409 = vpop.f32.mrf.mxu0
    %v410 = vadd.f32 %v351, %v409
    %v411 = vpop.f32.mrf.mxu0
    %412 = vmatprep.mubr.bf16.mxu0 0
    %413 = vmatmul.mubr.bf16.gmra.mxu0 %v284
    %v414 = vpop.f32.mrf.mxu0
    %v415 = vadd.f32 %v351, %v414
    %v416 = vpop.f32.mrf.mxu0
    %v417 = vpop.f32.mrf.mxu0
    %v418 = vadd.f32 %v351, %v417
    %v419 = vpop.f32.mrf.mxu0
    %420 = vdwg.mxu0
    %s421 = scalar_lea.vmem %s5, 64
    %v422 = vld [vmem:[%s421] sm:$0xf]
    %v423 = vld [vmem:[%s421 + $0x4] sm:$0xf]
    %v424 = vld [vmem:[%s421 + $0x8] sm:$0xf]
    %v425 = vld [vmem:[%s421 + $0xc] sm:$0xf]
    %v426 = vlaneseq
    %v427 = vshrl.u32 %v426, 7
    %v428 = vsub.s32 0, %v427
    %v429 = vrot.slane %v163, %v428
    %v434 = vunpack.c.l.b16 %v422
    %v435 = vunpack.c.l.b16 %v423
    %v436 = vunpack.c.l.b16 %v424
    %v437 = vunpack.c.l.b16 %v425
    %v438 = vpack.c.b16 %v435, %v434
    %v439 = vpack.c.b16 %v437, %v436
    %442 = vmatprep.subr.bf16.mxu0 0
    %443 = vmatpush1.bf16.msra.mxu0 0
    %444 = vmatprep.subr.bf16.mxu0 0
    %445 = vmatpush1.bf16.msra.mxu0 0
    %446 = vmatprep.subr.bf16.mxu0 0
    %447 = vmatpush1.bf16.msra.mxu0 0
    %448 = vmatprep.subr.bf16.mxu0 0
    %449 = vmatpush1.bf16.msra.mxu0 0
    %450 = vmatprep.subr.bf16.mxu0 0
    %451 = vmatpush1.bf16.msra.mxu0 0
    %452 = vmatprep.subr.bf16.mxu0 0
    %453 = vmatpush1.bf16.msra.mxu0 0
    %454 = vmatprep.subr.bf16.mxu0 0
    %455 = vmatpush1.bf16.msra.mxu0 %v439
    %456 = vmatprep.subr.bf16.mxu0 0
    %457 = vmatpush1.bf16.msra.mxu0 %v438
    %458 = vmatprep.subr.bf16.mxu0 0
    %459 = vmatpush2.bf16.msra.mxu0 0
    %460 = vmatprep.subr.bf16.mxu0 0
    %461 = vmatpush2.bf16.msra.mxu0 0
    %462 = vmatprep.subr.bf16.mxu0 0
    %463 = vmatpush2.bf16.msra.mxu0 0
    %464 = vmatprep.subr.bf16.mxu0 0
    %465 = vmatpush2.bf16.msra.mxu0 0
    %466 = vmatprep.subr.bf16.mxu0 0
    %467 = vmatpush2.bf16.msra.mxu0 0
    %468 = vmatprep.subr.bf16.mxu0 0
    %469 = vmatpush2.bf16.msra.mxu0 0
    %470 = vmatprep.subr.bf16.mxu0 0
    %471 = vmatpush2.bf16.msra.mxu0 0
    %472 = vmatprep.subr.bf16.mxu0 0
    %473 = vmatpush2.bf16.msra.mxu0 0
    %474 = vmatprep.mubr.bf16.mxu0 0
    %475 = vmatmul.mubr.bf16.gmra.mxu0 %v278
    %v476 = vpop.f32.mrf.mxu0
    %v477 = vadd.f32 %v429, %v476
    %v478 = vpop.f32.mrf.mxu0
    %v479 = vpop.f32.mrf.mxu0
    %v480 = vadd.f32 %v429, %v479
    %v481 = vpop.f32.mrf.mxu0
    %482 = vmatprep.mubr.bf16.mxu0 0
    %483 = vmatmul.mubr.bf16.gmra.mxu0 %v281
    %v484 = vpop.f32.mrf.mxu0
    %v485 = vadd.f32 %v429, %v484
    %v486 = vpop.f32.mrf.mxu0
    %v487 = vpop.f32.mrf.mxu0
    %v488 = vadd.f32 %v429, %v487
    %v489 = vpop.f32.mrf.mxu0
    %490 = vmatprep.mubr.bf16.mxu0 0
    %491 = vmatmul.mubr.bf16.gmra.mxu0 %v284
    %v492 = vpop.f32.mrf.mxu0
    %v493 = vadd.f32 %v429, %v492
    %v494 = vpop.f32.mrf.mxu0
    %v495 = vpop.f32.mrf.mxu0
    %v496 = vadd.f32 %v429, %v495
    %v497 = vpop.f32.mrf.mxu0
    %498 = vdwg.mxu0
    %v499 = vld [vmem:[%s6] sm:$0xf]
    %v500 = vld [vmem:[%s6 + $0x4] sm:$0xf]
    %v501 = vpack.c.bf16 %v324, %v321
    %v502 = vpack.c.bf16 %v329, %v329
    %v503 = vpack.c.bf16 %v402, %v399
    %v504 = vpack.c.bf16 %v407, %v407
    %v505 = vpack.c.bf16 %v480, %v477
    %v506 = vpack.c.bf16 %v485, %v485
    %vm507 = vcmask 130048
    %v509 = vsel %vm507, %v501, 0
    %v512 = vsel %vm507, %v502, 0
    %v515 = vsel %vm507, %v503, 0
    %v518 = vsel %vm507, %v504, 0
    %520 = vmatprep.subr.bf16.mxu0 0
    %521 = vmatpush1.bf16.xpose.msra.mxu0 0
    %522 = vmatprep.subr.bf16.mxu0 0
    %523 = vmatpush1.bf16.xpose.msra.mxu0 0
    %524 = vmatprep.subr.bf16.mxu0 0
    %525 = vmatpush1.bf16.xpose.msra.mxu0 0
    %526 = vmatprep.subr.bf16.mxu0 0
    %527 = vmatpush1.bf16.xpose.msra.mxu0 0
    %528 = vmatprep.subr.bf16.mxu0 0
    %529 = vmatpush1.bf16.xpose.msra.mxu0 0
    %530 = vmatprep.subr.bf16.mxu0 0
    %531 = vmatpush1.bf16.xpose.msra.mxu0 0
    %532 = vmatprep.subr.bf16.mxu0 0
    %533 = vmatpush1.bf16.xpose.msra.mxu0 %v518
    %534 = vmatprep.subr.bf16.mxu0 0
    %535 = vmatpush1.bf16.xpose.msra.mxu0 %v515
    %536 = vmatprep.subr.bf16.mxu0 0
    %537 = vmatpush2.bf16.xpose.msra.mxu0 0
    %538 = vmatprep.subr.bf16.mxu0 0
    %539 = vmatpush2.bf16.xpose.msra.mxu0 0
    %540 = vmatprep.subr.bf16.mxu0 0
    %541 = vmatpush2.bf16.xpose.msra.mxu0 0
    %542 = vmatprep.subr.bf16.mxu0 0
    %543 = vmatpush2.bf16.xpose.msra.mxu0 0
    %544 = vmatprep.subr.bf16.mxu0 0
    %545 = vmatpush2.bf16.xpose.msra.mxu0 0
    %546 = vmatprep.subr.bf16.mxu0 0
    %547 = vmatpush2.bf16.xpose.msra.mxu0 0
    %548 = vmatprep.subr.bf16.mxu0 0
    %549 = vmatpush2.bf16.xpose.msra.mxu0 0
    %550 = vmatprep.subr.bf16.mxu0 0
    %551 = vmatpush2.bf16.xpose.msra.mxu0 0
    %552 = vmatprep.mubr.bf16.mxu0 0
    %553 = vmatmul.mubr.bf16.gmra.mxu0 %v509
    %v554 = vpop.f32.mrf.mxu0
    %v555 = vadd.f32 0.0, %v554
    %v556 = vpop.f32.mrf.mxu0
    %v557 = vpop.f32.mrf.mxu0
    %v558 = vadd.f32 0.0, %v557
    %v559 = vpop.f32.mrf.mxu0
    %560 = vmatprep.mubr.bf16.mxu0 0
    %561 = vmatmul.mubr.bf16.gmra.mxu0 %v512
    %v562 = vpop.f32.mrf.mxu0
    %v563 = vadd.f32 0.0, %v562
    %v564 = vpop.f32.mrf.mxu0
    %v565 = vpop.f32.mrf.mxu0
    %v566 = vpop.f32.mrf.mxu0
    %567 = vdwg.mxu0
    %vm568 = vcmask 138240
    %v569 = vsel %vm568, %v555, -inf
    %570 = vmax.xlane.f32.xlu0 %v569
    %v571 = vpop.xlane.xlu0 %570
    %v572 = vsel %vm568, %v558, -inf
    %573 = vmax.xlane.f32.xlu0 %v572
    %v574 = vpop.xlane.xlu0 %573
    %v575 = vsel %vm568, %v563, -inf
    %576 = vmax.xlane.f32.xlu0 %v575
    %v577 = vpop.xlane.xlu0 %576
    %v578 = vsub.f32 %v555, %v571
    %v579 = vsub.f32 %v558, %v574
    %v580 = vsub.f32 %v563, %v577
    %v581 = vmul.f32 %v578, 1.442695
    %v582 = vpow.pop %v581
    %v583 = vmul.f32 %v579, 1.442695
    %v584 = vpow.pop %v583
    %v585 = vmul.f32 %v580, 1.442695
    %v586 = vpow.pop %v585
    %v587 = vsel %vm568, %v582, 0.0
    %588 = vadd.xlane.f32.xlu0 %v587
    %v589 = vpop.xlane.xlu0 %588
    %v590 = vsel %vm568, %v584, 0.0
    %591 = vadd.xlane.f32.xlu0 %v590
    %v592 = vpop.xlane.xlu0 %591
    %v593 = vsel %vm568, %v586, 0.0
    %594 = vadd.xlane.f32.xlu0 %v593
    %v595 = vpop.xlane.xlu0 %594
    %v596 = vrcp.pop %v589
    %v597 = vrcp.pop %v592
    %v598 = vrcp.pop %v595
    %v599 = vmul.f32 %v582, %v596
    %v600 = vmul.f32 %v584, %v597
    %v601 = vmul.f32 %v586, %v598
    %v602 = vpack.c.bf16 %v600, %v599
    %v603 = vpack.c.bf16 %v601, %v601
    %v605 = vsel %vm568, %v602, 0
    %v608 = vsel %vm568, %v603, 0
    %v610 = vsel 0, 4294967295, 65535
    %v611 = vsel %vm157, %v610, 0
    %v613 = vand.u32 %v506, %v611
    %615 = vmatprep.subr.bf16.mxu0 0
    %616 = vmatpush1.bf16.msra.mxu0 0
    %617 = vmatprep.subr.bf16.mxu0 0
    %618 = vmatpush1.bf16.msra.mxu0 0
    %619 = vmatprep.subr.bf16.mxu0 0
    %620 = vmatpush1.bf16.msra.mxu0 0
    %621 = vmatprep.subr.bf16.mxu0 0
    %622 = vmatpush1.bf16.msra.mxu0 0
    %623 = vmatprep.subr.bf16.mxu0 0
    %624 = vmatpush1.bf16.msra.mxu0 0
    %625 = vmatprep.subr.bf16.mxu0 0
    %626 = vmatpush1.bf16.msra.mxu0 0
    %627 = vmatprep.subr.bf16.mxu0 0
    %628 = vmatpush1.bf16.msra.mxu0 %v613
    %629 = vmatprep.subr.bf16.mxu0 0
    %630 = vmatpush1.bf16.msra.mxu0 %v505
    %631 = vmatprep.subr.bf16.mxu0 0
    %632 = vmatpush2.bf16.msra.mxu0 0
    %633 = vmatprep.subr.bf16.mxu0 0
    %634 = vmatpush2.bf16.msra.mxu0 0
    %635 = vmatprep.subr.bf16.mxu0 0
    %636 = vmatpush2.bf16.msra.mxu0 0
    %637 = vmatprep.subr.bf16.mxu0 0
    %638 = vmatpush2.bf16.msra.mxu0 0
    %639 = vmatprep.subr.bf16.mxu0 0
    %640 = vmatpush2.bf16.msra.mxu0 0
    %641 = vmatprep.subr.bf16.mxu0 0
    %642 = vmatpush2.bf16.msra.mxu0 0
    %643 = vmatprep.subr.bf16.mxu0 0
    %644 = vmatpush2.bf16.msra.mxu0 0
    %645 = vmatprep.subr.bf16.mxu0 0
    %646 = vmatpush2.bf16.msra.mxu0 0
    %647 = vmatprep.mubr.bf16.mxu0 0
    %648 = vmatmul.mubr.bf16.gmra.mxu0 %v605
    %v649 = vpop.f32.mrf.mxu0
    %v650 = vadd.f32 0.0, %v649
    %v651 = vpop.f32.mrf.mxu0
    %v652 = vpop.f32.mrf.mxu0
    %v653 = vadd.f32 0.0, %v652
    %v654 = vpop.f32.mrf.mxu0
    %655 = vmatprep.mubr.bf16.mxu0 0
    %656 = vmatmul.mubr.bf16.gmra.mxu0 %v608
    %v657 = vpop.f32.mrf.mxu0
    %v658 = vadd.f32 0.0, %v657
    %v659 = vpop.f32.mrf.mxu0
    %v660 = vpop.f32.mrf.mxu0
    %v661 = vpop.f32.mrf.mxu0
    %662 = vdwg.mxu0
    %v663 = vpack.c.bf16 %v653, %v650
    %v664 = vpack.c.bf16 %v658, %v658
    %v665 = vpack.c.bf16 %v337, %v332
    %v666 = vpack.c.bf16 %v340, %v340
    %v667 = vpack.c.bf16 %v415, %v410
    %v668 = vpack.c.bf16 %v418, %v418
    %v669 = vpack.c.bf16 %v493, %v488
    %v670 = vpack.c.bf16 %v496, %v496
    %v672 = vsel %vm507, %v665, 0
    %v675 = vsel %vm507, %v666, 0
    %v678 = vsel %vm507, %v667, 0
    %v681 = vsel %vm507, %v668, 0
    %683 = vmatprep.subr.bf16.mxu0 0
    %684 = vmatpush1.bf16.xpose.msra.mxu0 0
    %685 = vmatprep.subr.bf16.mxu0 0
    %686 = vmatpush1.bf16.xpose.msra.mxu0 0
    %687 = vmatprep.subr.bf16.mxu0 0
    %688 = vmatpush1.bf16.xpose.msra.mxu0 0
    %689 = vmatprep.subr.bf16.mxu0 0
    %690 = vmatpush1.bf16.xpose.msra.mxu0 0
    %691 = vmatprep.subr.bf16.mxu0 0
    %692 = vmatpush1.bf16.xpose.msra.mxu0 0
    %693 = vmatprep.subr.bf16.mxu0 0
    %694 = vmatpush1.bf16.xpose.msra.mxu0 0
    %695 = vmatprep.subr.bf16.mxu0 0
    %696 = vmatpush1.bf16.xpose.msra.mxu0 %v681
    %697 = vmatprep.subr.bf16.mxu0 0
    %698 = vmatpush1.bf16.xpose.msra.mxu0 %v678
    %699 = vmatprep.subr.bf16.mxu0 0
    %700 = vmatpush2.bf16.xpose.msra.mxu0 0
    %701 = vmatprep.subr.bf16.mxu0 0
    %702 = vmatpush2.bf16.xpose.msra.mxu0 0
    %703 = vmatprep.subr.bf16.mxu0 0
    %704 = vmatpush2.bf16.xpose.msra.mxu0 0
    %705 = vmatprep.subr.bf16.mxu0 0
    %706 = vmatpush2.bf16.xpose.msra.mxu0 0
    %707 = vmatprep.subr.bf16.mxu0 0
    %708 = vmatpush2.bf16.xpose.msra.mxu0 0
    %709 = vmatprep.subr.bf16.mxu0 0
    %710 = vmatpush2.bf16.xpose.msra.mxu0 0
    %711 = vmatprep.subr.bf16.mxu0 0
    %712 = vmatpush2.bf16.xpose.msra.mxu0 0
    %713 = vmatprep.subr.bf16.mxu0 0
    %714 = vmatpush2.bf16.xpose.msra.mxu0 0
    %715 = vmatprep.mubr.bf16.mxu0 0
    %716 = vmatmul.mubr.bf16.gmra.mxu0 %v672
    %v717 = vpop.f32.mrf.mxu0
    %v718 = vadd.f32 0.0, %v717
    %v719 = vpop.f32.mrf.mxu0
    %v720 = vpop.f32.mrf.mxu0
    %v721 = vadd.f32 0.0, %v720
    %v722 = vpop.f32.mrf.mxu0
    %723 = vmatprep.mubr.bf16.mxu0 0
    %724 = vmatmul.mubr.bf16.gmra.mxu0 %v675
    %v725 = vpop.f32.mrf.mxu0
    %v726 = vadd.f32 0.0, %v725
    %v727 = vpop.f32.mrf.mxu0
    %v728 = vpop.f32.mrf.mxu0
    %v729 = vpop.f32.mrf.mxu0
    %730 = vdwg.mxu0
    %v731 = vsel %vm568, %v718, -inf
    %732 = vmax.xlane.f32.xlu0 %v731
    %v733 = vpop.xlane.xlu0 %732
    %v734 = vsel %vm568, %v721, -inf
    %735 = vmax.xlane.f32.xlu0 %v734
    %v736 = vpop.xlane.xlu0 %735
    %v737 = vsel %vm568, %v726, -inf
    %738 = vmax.xlane.f32.xlu0 %v737
    %v739 = vpop.xlane.xlu0 %738
    %v740 = vsub.f32 %v718, %v733
    %v741 = vsub.f32 %v721, %v736
    %v742 = vsub.f32 %v726, %v739
    %v743 = vmul.f32 %v740, 1.442695
    %v744 = vpow.pop %v743
    %v745 = vmul.f32 %v741, 1.442695
    %v746 = vpow.pop %v745
    %v747 = vmul.f32 %v742, 1.442695
    %v748 = vpow.pop %v747
    %v749 = vsel %vm568, %v744, 0.0
    %750 = vadd.xlane.f32.xlu0 %v749
    %v751 = vpop.xlane.xlu0 %750
    %v752 = vsel %vm568, %v746, 0.0
    %753 = vadd.xlane.f32.xlu0 %v752
    %v754 = vpop.xlane.xlu0 %753
    %v755 = vsel %vm568, %v748, 0.0
    %756 = vadd.xlane.f32.xlu0 %v755
    %v757 = vpop.xlane.xlu0 %756
    %v758 = vrcp.pop %v751
    %v759 = vrcp.pop %v754
    %v760 = vrcp.pop %v757
    %v761 = vmul.f32 %v744, %v758
    %v762 = vmul.f32 %v746, %v759
    %v763 = vmul.f32 %v748, %v760
    %v764 = vpack.c.bf16 %v762, %v761
    %v765 = vpack.c.bf16 %v763, %v763
    %v767 = vsel %vm568, %v764, 0
    %v770 = vsel %vm568, %v765, 0
    %v773 = vand.u32 %v670, %v611
    %775 = vmatprep.subr.bf16.mxu0 0
    %776 = vmatpush1.bf16.msra.mxu0 0
    %777 = vmatprep.subr.bf16.mxu0 0
    %778 = vmatpush1.bf16.msra.mxu0 0
    %779 = vmatprep.subr.bf16.mxu0 0
    %780 = vmatpush1.bf16.msra.mxu0 0
    %781 = vmatprep.subr.bf16.mxu0 0
    %782 = vmatpush1.bf16.msra.mxu0 0
    %783 = vmatprep.subr.bf16.mxu0 0
    %784 = vmatpush1.bf16.msra.mxu0 0
    %785 = vmatprep.subr.bf16.mxu0 0
    %786 = vmatpush1.bf16.msra.mxu0 0
    %787 = vmatprep.subr.bf16.mxu0 0
    %788 = vmatpush1.bf16.msra.mxu0 %v773
    %789 = vmatprep.subr.bf16.mxu0 0
    %790 = vmatpush1.bf16.msra.mxu0 %v669
    %791 = vmatprep.subr.bf16.mxu0 0
    %792 = vmatpush2.bf16.msra.mxu0 0
    %793 = vmatprep.subr.bf16.mxu0 0
    %794 = vmatpush2.bf16.msra.mxu0 0
    %795 = vmatprep.subr.bf16.mxu0 0
    %796 = vmatpush2.bf16.msra.mxu0 0
    %797 = vmatprep.subr.bf16.mxu0 0
    %798 = vmatpush2.bf16.msra.mxu0 0
    %799 = vmatprep.subr.bf16.mxu0 0
    %800 = vmatpush2.bf16.msra.mxu0 0
    %801 = vmatprep.subr.bf16.mxu0 0
    %802 = vmatpush2.bf16.msra.mxu0 0
    %803 = vmatprep.subr.bf16.mxu0 0
    %804 = vmatpush2.bf16.msra.mxu0 0
    %805 = vmatprep.subr.bf16.mxu0 0
    %806 = vmatpush2.bf16.msra.mxu0 0
    %807 = vmatprep.mubr.bf16.mxu0 0
    %808 = vmatmul.mubr.bf16.gmra.mxu0 %v767
    %v809 = vpop.f32.mrf.mxu0
    %v810 = vadd.f32 0.0, %v809
    %v811 = vpop.f32.mrf.mxu0
    %v812 = vpop.f32.mrf.mxu0
    %v813 = vadd.f32 0.0, %v812
    %v814 = vpop.f32.mrf.mxu0
    %815 = vmatprep.mubr.bf16.mxu0 0
    %816 = vmatmul.mubr.bf16.gmra.mxu0 %v770
    %v817 = vpop.f32.mrf.mxu0
    %v818 = vadd.f32 0.0, %v817
    %v819 = vpop.f32.mrf.mxu0
    %v820 = vpop.f32.mrf.mxu0
    %v821 = vpop.f32.mrf.mxu0
    %822 = vdwg.mxu0
    %v823 = vpack.c.bf16 %v813, %v810
    %v824 = vpack.c.bf16 %v818, %v818
    %s825 = scalar_lea.vmem %s5, 16
    %v826 = vld [vmem:[%s825] sm:$0xf]
    %v827 = vld [vmem:[%s825 + $0x4] sm:$0xf]
    %v828 = vld [vmem:[%s825 + $0x8] sm:$0xf]
    %v829 = vld [vmem:[%s825 + $0xc] sm:$0xf]
    %v834 = vunpack.c.l.b16 %v826
    %v835 = vunpack.c.l.b16 %v827
    %v836 = vunpack.c.l.b16 %v828
    %v837 = vunpack.c.l.b16 %v829
    %v838 = vpack.c.b16 %v835, %v834
    %v839 = vpack.c.b16 %v837, %v836
    %843 = vrot.lane.b32.xlu0 %v264, 112
    %v844 = vpop.permute.xlu0 %843
    %846 = vmatprep.subr.bf16.mxu0 0
    %847 = vmatpush1.bf16.msra.mxu0 0
    %848 = vmatprep.subr.bf16.mxu0 0
    %849 = vmatpush1.bf16.msra.mxu0 0
    %850 = vmatprep.subr.bf16.mxu0 0
    %851 = vmatpush1.bf16.msra.mxu0 0
    %852 = vmatprep.subr.bf16.mxu0 0
    %853 = vmatpush1.bf16.msra.mxu0 0
    %854 = vmatprep.subr.bf16.mxu0 0
    %855 = vmatpush1.bf16.msra.mxu0 0
    %856 = vmatprep.subr.bf16.mxu0 0
    %857 = vmatpush1.bf16.msra.mxu0 0
    %858 = vmatprep.subr.bf16.mxu0 0
    %859 = vmatpush1.bf16.msra.mxu0 %v839
    %860 = vmatprep.subr.bf16.mxu0 0
    %861 = vmatpush1.bf16.msra.mxu0 %v838
    %862 = vmatprep.subr.bf16.mxu0 0
    %863 = vmatpush2.bf16.msra.mxu0 0
    %864 = vmatprep.subr.bf16.mxu0 0
    %865 = vmatpush2.bf16.msra.mxu0 0
    %866 = vmatprep.subr.bf16.mxu0 0
    %867 = vmatpush2.bf16.msra.mxu0 0
    %868 = vmatprep.subr.bf16.mxu0 0
    %869 = vmatpush2.bf16.msra.mxu0 0
    %870 = vmatprep.subr.bf16.mxu0 0
    %871 = vmatpush2.bf16.msra.mxu0 0
    %872 = vmatprep.subr.bf16.mxu0 0
    %873 = vmatpush2.bf16.msra.mxu0 0
    %874 = vmatprep.subr.bf16.mxu0 0
    %875 = vmatpush2.bf16.msra.mxu0 0
    %876 = vmatprep.subr.bf16.mxu0 0
    %877 = vmatpush2.bf16.msra.mxu0 0
    %878 = vmatprep.mubr.bf16.mxu0 0
    %879 = vmatmul.mubr.bf16.gmra.mxu0 %v278
    %v880 = vpop.f32.mrf.mxu0
    %v881 = vadd.f32 %v844, %v880
    %v882 = vpop.f32.mrf.mxu0
    %v883 = vpop.f32.mrf.mxu0
    %v884 = vadd.f32 %v844, %v883
    %v885 = vpop.f32.mrf.mxu0
    %886 = vmatprep.mubr.bf16.mxu0 0
    %887 = vmatmul.mubr.bf16.gmra.mxu0 %v281
    %v888 = vpop.f32.mrf.mxu0
    %v889 = vadd.f32 %v844, %v888
    %v890 = vpop.f32.mrf.mxu0
    %v891 = vpop.f32.mrf.mxu0
    %v892 = vadd.f32 %v844, %v891
    %v893 = vpop.f32.mrf.mxu0
    %894 = vmatprep.mubr.bf16.mxu0 0
    %895 = vmatmul.mubr.bf16.gmra.mxu0 %v284
    %v896 = vpop.f32.mrf.mxu0
    %v897 = vadd.f32 %v844, %v896
    %v898 = vpop.f32.mrf.mxu0
    %v899 = vpop.f32.mrf.mxu0
    %v900 = vadd.f32 %v844, %v899
    %v901 = vpop.f32.mrf.mxu0
    %902 = vdwg.mxu0
    %s903 = scalar_lea.vmem %s5, 48
    %v904 = vld [vmem:[%s903] sm:$0xf]
    %v905 = vld [vmem:[%s903 + $0x4] sm:$0xf]
    %v906 = vld [vmem:[%s903 + $0x8] sm:$0xf]
    %v907 = vld [vmem:[%s903 + $0xc] sm:$0xf]
    %v912 = vunpack.c.l.b16 %v904
    %v913 = vunpack.c.l.b16 %v905
    %v914 = vunpack.c.l.b16 %v906
    %v915 = vunpack.c.l.b16 %v907
    %v916 = vpack.c.b16 %v913, %v912
    %v917 = vpack.c.b16 %v915, %v914
    %921 = vrot.lane.b32.xlu0 %v351, 112
    %v922 = vpop.permute.xlu0 %921
    %924 = vmatprep.subr.bf16.mxu0 0
    %925 = vmatpush1.bf16.msra.mxu0 0
    %926 = vmatprep.subr.bf16.mxu0 0
    %927 = vmatpush1.bf16.msra.mxu0 0
    %928 = vmatprep.subr.bf16.mxu0 0
    %929 = vmatpush1.bf16.msra.mxu0 0
    %930 = vmatprep.subr.bf16.mxu0 0
    %931 = vmatpush1.bf16.msra.mxu0 0
    %932 = vmatprep.subr.bf16.mxu0 0
    %933 = vmatpush1.bf16.msra.mxu0 0
    %934 = vmatprep.subr.bf16.mxu0 0
    %935 = vmatpush1.bf16.msra.mxu0 0
    %936 = vmatprep.subr.bf16.mxu0 0
    %937 = vmatpush1.bf16.msra.mxu0 %v917
    %938 = vmatprep.subr.bf16.mxu0 0
    %939 = vmatpush1.bf16.msra.mxu0 %v916
    %940 = vmatprep.subr.bf16.mxu0 0
    %941 = vmatpush2.bf16.msra.mxu0 0
    %942 = vmatprep.subr.bf16.mxu0 0
    %943 = vmatpush2.bf16.msra.mxu0 0
    %944 = vmatprep.subr.bf16.mxu0 0
    %945 = vmatpush2.bf16.msra.mxu0 0
    %946 = vmatprep.subr.bf16.mxu0 0
    %947 = vmatpush2.bf16.msra.mxu0 0
    %948 = vmatprep.subr.bf16.mxu0 0
    %949 = vmatpush2.bf16.msra.mxu0 0
    %950 = vmatprep.subr.bf16.mxu0 0
    %951 = vmatpush2.bf16.msra.mxu0 0
    %952 = vmatprep.subr.bf16.mxu0 0
    %953 = vmatpush2.bf16.msra.mxu0 0
    %954 = vmatprep.subr.bf16.mxu0 0
    %955 = vmatpush2.bf16.msra.mxu0 0
    %956 = vmatprep.mubr.bf16.mxu0 0
    %957 = vmatmul.mubr.bf16.gmra.mxu0 %v278
    %v958 = vpop.f32.mrf.mxu0
    %v959 = vadd.f32 %v922, %v958
    %v960 = vpop.f32.mrf.mxu0
    %v961 = vpop.f32.mrf.mxu0
    %v962 = vadd.f32 %v922, %v961
    %v963 = vpop.f32.mrf.mxu0
    %964 = vmatprep.mubr.bf16.mxu0 0
    %965 = vmatmul.mubr.bf16.gmra.mxu0 %v281
    %v966 = vpop.f32.mrf.mxu0
    %v967 = vadd.f32 %v922, %v966
    %v968 = vpop.f32.mrf.mxu0
    %v969 = vpop.f32.mrf.mxu0
    %v970 = vadd.f32 %v922, %v969
    %v971 = vpop.f32.mrf.mxu0
    %972 = vmatprep.mubr.bf16.mxu0 0
    %973 = vmatmul.mubr.bf16.gmra.mxu0 %v284
    %v974 = vpop.f32.mrf.mxu0
    %v975 = vadd.f32 %v922, %v974
    %v976 = vpop.f32.mrf.mxu0
    %v977 = vpop.f32.mrf.mxu0
    %v978 = vadd.f32 %v922, %v977
    %v979 = vpop.f32.mrf.mxu0
    %980 = vdwg.mxu0
    %s981 = scalar_lea.vmem %s5, 80
    %v982 = vld [vmem:[%s981] sm:$0xf]
    %v983 = vld [vmem:[%s981 + $0x4] sm:$0xf]
    %v984 = vld [vmem:[%s981 + $0x8] sm:$0xf]
    %v985 = vld [vmem:[%s981 + $0xc] sm:$0xf]
    %v990 = vunpack.c.l.b16 %v982
    %v991 = vunpack.c.l.b16 %v983
    %v992 = vunpack.c.l.b16 %v984
    %v993 = vunpack.c.l.b16 %v985
    %v994 = vpack.c.b16 %v991, %v990
    %v995 = vpack.c.b16 %v993, %v992
    %999 = vrot.lane.b32.xlu0 %v429, 112
    %v1000 = vpop.permute.xlu0 %999
    %1002 = vmatprep.subr.bf16.mxu0 0
    %1003 = vmatpush1.bf16.msra.mxu0 0
    %1004 = vmatprep.subr.bf16.mxu0 0
    %1005 = vmatpush1.bf16.msra.mxu0 0
    %1006 = vmatprep.subr.bf16.mxu0 0
    %1007 = vmatpush1.bf16.msra.mxu0 0
    %1008 = vmatprep.subr.bf16.mxu0 0
    %1009 = vmatpush1.bf16.msra.mxu0 0
    %1010 = vmatprep.subr.bf16.mxu0 0
    %1011 = vmatpush1.bf16.msra.mxu0 0
    %1012 = vmatprep.subr.bf16.mxu0 0
    %1013 = vmatpush1.bf16.msra.mxu0 0
    %1014 = vmatprep.subr.bf16.mxu0 0
    %1015 = vmatpush1.bf16.msra.mxu0 %v995
    %1016 = vmatprep.subr.bf16.mxu0 0
    %1017 = vmatpush1.bf16.msra.mxu0 %v994
    %1018 = vmatprep.subr.bf16.mxu0 0
    %1019 = vmatpush2.bf16.msra.mxu0 0
    %1020 = vmatprep.subr.bf16.mxu0 0
    %1021 = vmatpush2.bf16.msra.mxu0 0
    %1022 = vmatprep.subr.bf16.mxu0 0
    %1023 = vmatpush2.bf16.msra.mxu0 0
    %1024 = vmatprep.subr.bf16.mxu0 0
    %1025 = vmatpush2.bf16.msra.mxu0 0
    %1026 = vmatprep.subr.bf16.mxu0 0
    %1027 = vmatpush2.bf16.msra.mxu0 0
    %1028 = vmatprep.subr.bf16.mxu0 0
    %1029 = vmatpush2.bf16.msra.mxu0 0
    %1030 = vmatprep.subr.bf16.mxu0 0
    %1031 = vmatpush2.bf16.msra.mxu0 0
    %1032 = vmatprep.subr.bf16.mxu0 0
    %1033 = vmatpush2.bf16.msra.mxu0 0
    %1034 = vmatprep.mubr.bf16.mxu0 0
    %1035 = vmatmul.mubr.bf16.gmra.mxu0 %v278
    %v1036 = vpop.f32.mrf.mxu0
    %v1037 = vadd.f32 %v1000, %v1036
    %v1038 = vpop.f32.mrf.mxu0
    %v1039 = vpop.f32.mrf.mxu0
    %v1040 = vadd.f32 %v1000, %v1039
    %v1041 = vpop.f32.mrf.mxu0
    %1042 = vmatprep.mubr.bf16.mxu0 0
    %1043 = vmatmul.mubr.bf16.gmra.mxu0 %v281
    %v1044 = vpop.f32.mrf.mxu0
    %v1045 = vadd.f32 %v1000, %v1044
    %v1046 = vpop.f32.mrf.mxu0
    %v1047 = vpop.f32.mrf.mxu0
    %v1048 = vadd.f32 %v1000, %v1047
    %v1049 = vpop.f32.mrf.mxu0
    %1050 = vmatprep.mubr.bf16.mxu0 0
    %1051 = vmatmul.mubr.bf16.gmra.mxu0 %v284
    %v1052 = vpop.f32.mrf.mxu0
    %v1053 = vadd.f32 %v1000, %v1052
    %v1054 = vpop.f32.mrf.mxu0
    %v1055 = vpop.f32.mrf.mxu0
    %v1056 = vadd.f32 %v1000, %v1055
    %v1057 = vpop.f32.mrf.mxu0
    %1058 = vdwg.mxu0
    %s1059 = scalar_lea.vmem %s6, 8
    %v1060 = vld [vmem:[%s1059] sm:$0xf]
    %v1061 = vld [vmem:[%s1059 + $0x4] sm:$0xf]
    %v1062 = vpack.c.bf16 %v884, %v881
    %v1063 = vpack.c.bf16 %v889, %v889
    %v1064 = vpack.c.bf16 %v962, %v959
    %v1065 = vpack.c.bf16 %v967, %v967
    %v1066 = vpack.c.bf16 %v1040, %v1037
    %v1067 = vpack.c.bf16 %v1045, %v1045
    %v1069 = vsel %vm507, %v1062, 0
    %v1072 = vsel %vm507, %v1063, 0
    %v1075 = vsel %vm507, %v1064, 0
    %v1078 = vsel %vm507, %v1065, 0
    %1080 = vmatprep.subr.bf16.mxu0 0
    %1081 = vmatpush1.bf16.xpose.msra.mxu0 0
    %1082 = vmatprep.subr.bf16.mxu0 0
    %1083 = vmatpush1.bf16.xpose.msra.mxu0 0
    %1084 = vmatprep.subr.bf16.mxu0 0
    %1085 = vmatpush1.bf16.xpose.msra.mxu0 0
    %1086 = vmatprep.subr.bf16.mxu0 0
    %1087 = vmatpush1.bf16.xpose.msra.mxu0 0
    %1088 = vmatprep.subr.bf16.mxu0 0
    %1089 = vmatpush1.bf16.xpose.msra.mxu0 0
    %1090 = vmatprep.subr.bf16.mxu0 0
    %1091 = vmatpush1.bf16.xpose.msra.mxu0 0
    %1092 = vmatprep.subr.bf16.mxu0 0
    %1093 = vmatpush1.bf16.xpose.msra.mxu0 %v1078
    %1094 = vmatprep.subr.bf16.mxu0 0
    %1095 = vmatpush1.bf16.xpose.msra.mxu0 %v1075
    %1096 = vmatprep.subr.bf16.mxu0 0
    %1097 = vmatpush2.bf16.xpose.msra.mxu0 0
    %1098 = vmatprep.subr.bf16.mxu0 0
    %1099 = vmatpush2.bf16.xpose.msra.mxu0 0
    %1100 = vmatprep.subr.bf16.mxu0 0
    %1101 = vmatpush2.bf16.xpose.msra.mxu0 0
    %1102 = vmatprep.subr.bf16.mxu0 0
    %1103 = vmatpush2.bf16.xpose.msra.mxu0 0
    %1104 = vmatprep.subr.bf16.mxu0 0
    %1105 = vmatpush2.bf16.xpose.msra.mxu0 0
    %1106 = vmatprep.subr.bf16.mxu0 0
    %1107 = vmatpush2.bf16.xpose.msra.mxu0 0
    %1108 = vmatprep.subr.bf16.mxu0 0
    %1109 = vmatpush2.bf16.xpose.msra.mxu0 0
    %1110 = vmatprep.subr.bf16.mxu0 0
    %1111 = vmatpush2.bf16.xpose.msra.mxu0 0
    %1112 = vmatprep.mubr.bf16.mxu0 0
    %1113 = vmatmul.mubr.bf16.gmra.mxu0 %v1069
    %v1114 = vpop.f32.mrf.mxu0
    %v1115 = vadd.f32 0.0, %v1114
    %v1116 = vpop.f32.mrf.mxu0
    %v1117 = vpop.f32.mrf.mxu0
    %v1118 = vadd.f32 0.0, %v1117
    %v1119 = vpop.f32.mrf.mxu0
    %1120 = vmatprep.mubr.bf16.mxu0 0
    %1121 = vmatmul.mubr.bf16.gmra.mxu0 %v1072
    %v1122 = vpop.f32.mrf.mxu0
    %v1123 = vadd.f32 0.0, %v1122
    %v1124 = vpop.f32.mrf.mxu0
    %v1125 = vpop.f32.mrf.mxu0
    %v1126 = vpop.f32.mrf.mxu0
    %1127 = vdwg.mxu0
    %v1128 = vsel %vm568, %v1115, -inf
    %1129 = vmax.xlane.f32.xlu0 %v1128
    %v1130 = vpop.xlane.xlu0 %1129
    %v1131 = vsel %vm568, %v1118, -inf
    %1132 = vmax.xlane.f32.xlu0 %v1131
    %v1133 = vpop.xlane.xlu0 %1132
    %v1134 = vsel %vm568, %v1123, -inf
    %1135 = vmax.xlane.f32.xlu0 %v1134
    %v1136 = vpop.xlane.xlu0 %1135
    %v1137 = vsub.f32 %v1115, %v1130
    %v1138 = vsub.f32 %v1118, %v1133
    %v1139 = vsub.f32 %v1123, %v1136
    %v1140 = vmul.f32 %v1137, 1.442695
    %v1141 = vpow.pop %v1140
    %v1142 = vmul.f32 %v1138, 1.442695
    %v1143 = vpow.pop %v1142
    %v1144 = vmul.f32 %v1139, 1.442695
    %v1145 = vpow.pop %v1144
    %v1146 = vsel %vm568, %v1141, 0.0
    %1147 = vadd.xlane.f32.xlu0 %v1146
    %v1148 = vpop.xlane.xlu0 %1147
    %v1149 = vsel %vm568, %v1143, 0.0
    %1150 = vadd.xlane.f32.xlu0 %v1149
    %v1151 = vpop.xlane.xlu0 %1150
    %v1152 = vsel %vm568, %v1145, 0.0
    %1153 = vadd.xlane.f32.xlu0 %v1152
    %v1154 = vpop.xlane.xlu0 %1153
    %v1155 = vrcp.pop %v1148
    %v1156 = vrcp.pop %v1151
    %v1157 = vrcp.pop %v1154
    %v1158 = vmul.f32 %v1141, %v1155
    %v1159 = vmul.f32 %v1143, %v1156
    %v1160 = vmul.f32 %v1145, %v1157
    %v1161 = vpack.c.bf16 %v1159, %v1158
    %v1162 = vpack.c.bf16 %v1160, %v1160
    %v1164 = vsel %vm568, %v1161, 0
    %v1167 = vsel %vm568, %v1162, 0
    %v1170 = vand.u32 %v1067, %v611
    %1172 = vmatprep.subr.bf16.mxu0 0
    %1173 = vmatpush1.bf16.msra.mxu0 0
    %1174 = vmatprep.subr.bf16.mxu0 0
    %1175 = vmatpush1.bf16.msra.mxu0 0
    %1176 = vmatprep.subr.bf16.mxu0 0
    %1177 = vmatpush1.bf16.msra.mxu0 0
    %1178 = vmatprep.subr.bf16.mxu0 0
    %1179 = vmatpush1.bf16.msra.mxu0 0
    %1180 = vmatprep.subr.bf16.mxu0 0
    %1181 = vmatpush1.bf16.msra.mxu0 0
    %1182 = vmatprep.subr.bf16.mxu0 0
    %1183 = vmatpush1.bf16.msra.mxu0 0
    %1184 = vmatprep.subr.bf16.mxu0 0
    %1185 = vmatpush1.bf16.msra.mxu0 %v1170
    %1186 = vmatprep.subr.bf16.mxu0 0
    %1187 = vmatpush1.bf16.msra.mxu0 %v1066
    %1188 = vmatprep.subr.bf16.mxu0 0
    %1189 = vmatpush2.bf16.msra.mxu0 0
    %1190 = vmatprep.subr.bf16.mxu0 0
    %1191 = vmatpush2.bf16.msra.mxu0 0
    %1192 = vmatprep.subr.bf16.mxu0 0
    %1193 = vmatpush2.bf16.msra.mxu0 0
    %1194 = vmatprep.subr.bf16.mxu0 0
    %1195 = vmatpush2.bf16.msra.mxu0 0
    %1196 = vmatprep.subr.bf16.mxu0 0
    %1197 = vmatpush2.bf16.msra.mxu0 0
    %1198 = vmatprep.subr.bf16.mxu0 0
    %1199 = vmatpush2.bf16.msra.mxu0 0
    %1200 = vmatprep.subr.bf16.mxu0 0
    %1201 = vmatpush2.bf16.msra.mxu0 0
    %1202 = vmatprep.subr.bf16.mxu0 0
    %1203 = vmatpush2.bf16.msra.mxu0 0
    %1204 = vmatprep.mubr.bf16.mxu0 0
    %1205 = vmatmul.mubr.bf16.gmra.mxu0 %v1164
    %v1206 = vpop.f32.mrf.mxu0
    %v1207 = vadd.f32 0.0, %v1206
    %v1208 = vpop.f32.mrf.mxu0
    %v1209 = vpop.f32.mrf.mxu0
    %v1210 = vadd.f32 0.0, %v1209
    %v1211 = vpop.f32.mrf.mxu0
    %1212 = vmatprep.mubr.bf16.mxu0 0
    %1213 = vmatmul.mubr.bf16.gmra.mxu0 %v1167
    %v1214 = vpop.f32.mrf.mxu0
    %v1215 = vadd.f32 0.0, %v1214
    %v1216 = vpop.f32.mrf.mxu0
    %v1217 = vpop.f32.mrf.mxu0
    %v1218 = vpop.f32.mrf.mxu0
    %1219 = vdwg.mxu0
    %v1220 = vpack.c.bf16 %v1210, %v1207
    %v1221 = vpack.c.bf16 %v1215, %v1215
    %v1224 = vunpack.c.l.b16 %v1060
    %v1225 = vunpack.c.l.b16 %v1061
    %v1226 = vpack.c.b16 %v1225, %v1224
    %v1229 = vsel %vm507, %v1220, 0
    %v1232 = vsel %vm507, %v1221, 0
    %1234 = vmatprep.subr.bf16.mxu0 0
    %1235 = vmatpush1.bf16.msra.mxu0 0
    %1236 = vmatprep.subr.bf16.mxu0 0
    %1237 = vmatpush1.bf16.msra.mxu0 0
    %1238 = vmatprep.subr.bf16.mxu0 0
    %1239 = vmatpush1.bf16.msra.mxu0 0
    %1240 = vmatprep.subr.bf16.mxu0 0
    %1241 = vmatpush1.bf16.msra.mxu0 0
    %1242 = vmatprep.subr.bf16.mxu0 0
    %1243 = vmatpush1.bf16.msra.mxu0 0
    %1244 = vmatprep.subr.bf16.mxu0 0
    %1245 = vmatpush1.bf16.msra.mxu0 0
    %1246 = vmatprep.subr.bf16.mxu0 0
    %1247 = vmatpush1.bf16.msra.mxu0 0
    %1248 = vmatprep.subr.bf16.mxu0 0
    %1249 = vmatpush1.bf16.msra.mxu0 %v1226
    %1250 = vmatprep.subr.bf16.mxu0 0
    %1251 = vmatpush2.bf16.msra.mxu0 0
    %1252 = vmatprep.subr.bf16.mxu0 0
    %1253 = vmatpush2.bf16.msra.mxu0 0
    %1254 = vmatprep.subr.bf16.mxu0 0
    %1255 = vmatpush2.bf16.msra.mxu0 0
    %1256 = vmatprep.subr.bf16.mxu0 0
    %1257 = vmatpush2.bf16.msra.mxu0 0
    %1258 = vmatprep.subr.bf16.mxu0 0
    %1259 = vmatpush2.bf16.msra.mxu0 0
    %1260 = vmatprep.subr.bf16.mxu0 0
    %1261 = vmatpush2.bf16.msra.mxu0 0
    %1262 = vmatprep.subr.bf16.mxu0 0
    %1263 = vmatpush2.bf16.msra.mxu0 0
    %1264 = vmatprep.subr.bf16.mxu0 0
    %1265 = vmatpush2.bf16.msra.mxu0 0
    %1266 = vmatprep.mubr.bf16.mxu0 0
    %1267 = vmatmul.mubr.bf16.gmra.mxu0 %v1229
    %v1268 = vpop.f32.mrf.mxu0
    %v1269 = vadd.f32 0.0, %v1268
    %v1270 = vpop.f32.mrf.mxu0
    %v1271 = vpop.f32.mrf.mxu0
    %v1272 = vadd.f32 0.0, %v1271
    %v1273 = vpop.f32.mrf.mxu0
    %1274 = vmatprep.mubr.bf16.mxu0 0
    %1275 = vmatmul.mubr.bf16.gmra.mxu0 %v1232
    %v1276 = vpop.f32.mrf.mxu0
    %v1277 = vadd.f32 0.0, %v1276
    %v1278 = vpop.f32.mrf.mxu0
    %v1279 = vpop.f32.mrf.mxu0
    %v1280 = vpop.f32.mrf.mxu0
    %1281 = vdwg.mxu0
    %v1284 = vunpack.c.l.b16 %v499
    %v1285 = vunpack.c.l.b16 %v500
    %v1286 = vpack.c.b16 %v1285, %v1284
    %v1289 = vsel %vm507, %v663, 0
    %v1292 = vsel %vm507, %v664, 0
    %1294 = vmatprep.subr.bf16.mxu0 0
    %1295 = vmatpush1.bf16.msra.mxu0 0
    %1296 = vmatprep.subr.bf16.mxu0 0
    %1297 = vmatpush1.bf16.msra.mxu0 0
    %1298 = vmatprep.subr.bf16.mxu0 0
    %1299 = vmatpush1.bf16.msra.mxu0 0
    %1300 = vmatprep.subr.bf16.mxu0 0
    %1301 = vmatpush1.bf16.msra.mxu0 0
    %1302 = vmatprep.subr.bf16.mxu0 0
    %1303 = vmatpush1.bf16.msra.mxu0 0
    %1304 = vmatprep.subr.bf16.mxu0 0
    %1305 = vmatpush1.bf16.msra.mxu0 0
    %1306 = vmatprep.subr.bf16.mxu0 0
    %1307 = vmatpush1.bf16.msra.mxu0 0
    %1308 = vmatprep.subr.bf16.mxu0 0
    %1309 = vmatpush1.bf16.msra.mxu0 %v1286
    %1310 = vmatprep.subr.bf16.mxu0 0
    %1311 = vmatpush2.bf16.msra.mxu0 0
    %1312 = vmatprep.subr.bf16.mxu0 0
    %1313 = vmatpush2.bf16.msra.mxu0 0
    %1314 = vmatprep.subr.bf16.mxu0 0
    %1315 = vmatpush2.bf16.msra.mxu0 0
    %1316 = vmatprep.subr.bf16.mxu0 0
    %1317 = vmatpush2.bf16.msra.mxu0 0
    %1318 = vmatprep.subr.bf16.mxu0 0
    %1319 = vmatpush2.bf16.msra.mxu0 0
    %1320 = vmatprep.subr.bf16.mxu0 0
    %1321 = vmatpush2.bf16.msra.mxu0 0
    %1322 = vmatprep.subr.bf16.mxu0 0
    %1323 = vmatpush2.bf16.msra.mxu0 0
    %1324 = vmatprep.subr.bf16.mxu0 0
    %1325 = vmatpush2.bf16.msra.mxu0 0
    %1326 = vmatprep.mubr.bf16.mxu0 0
    %1327 = vmatmul.mubr.bf16.gmra.mxu0 %v1289
    %v1328 = vpop.f32.mrf.mxu0
    %v1329 = vadd.f32 %v1269, %v1328
    %v1330 = vpop.f32.mrf.mxu0
    %v1331 = vpop.f32.mrf.mxu0
    %v1332 = vadd.f32 %v1272, %v1331
    %v1333 = vpop.f32.mrf.mxu0
    %1334 = vmatprep.mubr.bf16.mxu0 0
    %1335 = vmatmul.mubr.bf16.gmra.mxu0 %v1292
    %v1336 = vpop.f32.mrf.mxu0
    %v1337 = vadd.f32 %v1277, %v1336
    %v1338 = vpop.f32.mrf.mxu0
    %v1339 = vpop.f32.mrf.mxu0
    %v1340 = vpop.f32.mrf.mxu0
    %1341 = vdwg.mxu0
    %v1342 = vpack.c.bf16 %v897, %v892
    %v1343 = vpack.c.bf16 %v900, %v900
    %v1344 = vpack.c.bf16 %v975, %v970
    %v1345 = vpack.c.bf16 %v978, %v978
    %v1346 = vpack.c.bf16 %v1053, %v1048
    %v1347 = vpack.c.bf16 %v1056, %v1056
    %v1349 = vsel %vm507, %v1342, 0
    %v1352 = vsel %vm507, %v1343, 0
    %v1355 = vsel %vm507, %v1344, 0
    %v1358 = vsel %vm507, %v1345, 0
    %1360 = vmatprep.subr.bf16.mxu0 0
    %1361 = vmatpush1.bf16.xpose.msra.mxu0 0
    %1362 = vmatprep.subr.bf16.mxu0 0
    %1363 = vmatpush1.bf16.xpose.msra.mxu0 0
    %1364 = vmatprep.subr.bf16.mxu0 0
    %1365 = vmatpush1.bf16.xpose.msra.mxu0 0
    %1366 = vmatprep.subr.bf16.mxu0 0
    %1367 = vmatpush1.bf16.xpose.msra.mxu0 0
    %1368 = vmatprep.subr.bf16.mxu0 0
    %1369 = vmatpush1.bf16.xpose.msra.mxu0 0
    %1370 = vmatprep.subr.bf16.mxu0 0
    %1371 = vmatpush1.bf16.xpose.msra.mxu0 0
    %1372 = vmatprep.subr.bf16.mxu0 0
    %1373 = vmatpush1.bf16.xpose.msra.mxu0 %v1358
    %1374 = vmatprep.subr.bf16.mxu0 0
    %1375 = vmatpush1.bf16.xpose.msra.mxu0 %v1355
    %1376 = vmatprep.subr.bf16.mxu0 0
    %1377 = vmatpush2.bf16.xpose.msra.mxu0 0
    %1378 = vmatprep.subr.bf16.mxu0 0
    %1379 = vmatpush2.bf16.xpose.msra.mxu0 0
    %1380 = vmatprep.subr.bf16.mxu0 0
    %1381 = vmatpush2.bf16.xpose.msra.mxu0 0
    %1382 = vmatprep.subr.bf16.mxu0 0
    %1383 = vmatpush2.bf16.xpose.msra.mxu0 0
    %1384 = vmatprep.subr.bf16.mxu0 0
    %1385 = vmatpush2.bf16.xpose.msra.mxu0 0
    %1386 = vmatprep.subr.bf16.mxu0 0
    %1387 = vmatpush2.bf16.xpose.msra.mxu0 0
    %1388 = vmatprep.subr.bf16.mxu0 0
    %1389 = vmatpush2.bf16.xpose.msra.mxu0 0
    %1390 = vmatprep.subr.bf16.mxu0 0
    %1391 = vmatpush2.bf16.xpose.msra.mxu0 0
    %1392 = vmatprep.mubr.bf16.mxu0 0
    %1393 = vmatmul.mubr.bf16.gmra.mxu0 %v1349
    %v1394 = vpop.f32.mrf.mxu0
    %v1395 = vadd.f32 0.0, %v1394
    %v1396 = vpop.f32.mrf.mxu0
    %v1397 = vpop.f32.mrf.mxu0
    %v1398 = vadd.f32 0.0, %v1397
    %v1399 = vpop.f32.mrf.mxu0
    %1400 = vmatprep.mubr.bf16.mxu0 0
    %1401 = vmatmul.mubr.bf16.gmra.mxu0 %v1352
    %v1402 = vpop.f32.mrf.mxu0
    %v1403 = vadd.f32 0.0, %v1402
    %v1404 = vpop.f32.mrf.mxu0
    %v1405 = vpop.f32.mrf.mxu0
    %v1406 = vpop.f32.mrf.mxu0
    %1407 = vdwg.mxu0
    %v1408 = vsel %vm568, %v1395, -inf
    %1409 = vmax.xlane.f32.xlu0 %v1408
    %v1410 = vpop.xlane.xlu0 %1409
    %v1411 = vsel %vm568, %v1398, -inf
    %1412 = vmax.xlane.f32.xlu0 %v1411
    %v1413 = vpop.xlane.xlu0 %1412
    %v1414 = vsel %vm568, %v1403, -inf
    %1415 = vmax.xlane.f32.xlu0 %v1414
    %v1416 = vpop.xlane.xlu0 %1415
    %v1417 = vsub.f32 %v1395, %v1410
    %v1418 = vsub.f32 %v1398, %v1413
    %v1419 = vsub.f32 %v1403, %v1416
    %v1420 = vmul.f32 %v1417, 1.442695
    %v1421 = vpow.pop %v1420
    %v1422 = vmul.f32 %v1418, 1.442695
    %v1423 = vpow.pop %v1422
    %v1424 = vmul.f32 %v1419, 1.442695
    %v1425 = vpow.pop %v1424
    %v1426 = vsel %vm568, %v1421, 0.0
    %1427 = vadd.xlane.f32.xlu0 %v1426
    %v1428 = vpop.xlane.xlu0 %1427
    %v1429 = vsel %vm568, %v1423, 0.0
    %1430 = vadd.xlane.f32.xlu0 %v1429
    %v1431 = vpop.xlane.xlu0 %1430
    %v1432 = vsel %vm568, %v1425, 0.0
    %1433 = vadd.xlane.f32.xlu0 %v1432
    %v1434 = vpop.xlane.xlu0 %1433
    %v1435 = vrcp.pop %v1428
    %v1436 = vrcp.pop %v1431
    %v1437 = vrcp.pop %v1434
    %v1438 = vmul.f32 %v1421, %v1435
    %v1439 = vmul.f32 %v1423, %v1436
    %v1440 = vmul.f32 %v1425, %v1437
    %v1441 = vpack.c.bf16 %v1439, %v1438
    %v1442 = vpack.c.bf16 %v1440, %v1440
    %v1444 = vsel %vm568, %v1441, 0
    %v1447 = vsel %vm568, %v1442, 0
    %v1450 = vand.u32 %v1347, %v611
    %1452 = vmatprep.subr.bf16.mxu0 0
    %1453 = vmatpush1.bf16.msra.mxu0 0
    %1454 = vmatprep.subr.bf16.mxu0 0
    %1455 = vmatpush1.bf16.msra.mxu0 0
    %1456 = vmatprep.subr.bf16.mxu0 0
    %1457 = vmatpush1.bf16.msra.mxu0 0
    %1458 = vmatprep.subr.bf16.mxu0 0
    %1459 = vmatpush1.bf16.msra.mxu0 0
    %1460 = vmatprep.subr.bf16.mxu0 0
    %1461 = vmatpush1.bf16.msra.mxu0 0
    %1462 = vmatprep.subr.bf16.mxu0 0
    %1463 = vmatpush1.bf16.msra.mxu0 0
    %1464 = vmatprep.subr.bf16.mxu0 0
    %1465 = vmatpush1.bf16.msra.mxu0 %v1450
    %1466 = vmatprep.subr.bf16.mxu0 0
    %1467 = vmatpush1.bf16.msra.mxu0 %v1346
    %1468 = vmatprep.subr.bf16.mxu0 0
    %1469 = vmatpush2.bf16.msra.mxu0 0
    %1470 = vmatprep.subr.bf16.mxu0 0
    %1471 = vmatpush2.bf16.msra.mxu0 0
    %1472 = vmatprep.subr.bf16.mxu0 0
    %1473 = vmatpush2.bf16.msra.mxu0 0
    %1474 = vmatprep.subr.bf16.mxu0 0
    %1475 = vmatpush2.bf16.msra.mxu0 0
    %1476 = vmatprep.subr.bf16.mxu0 0
    %1477 = vmatpush2.bf16.msra.mxu0 0
    %1478 = vmatprep.subr.bf16.mxu0 0
    %1479 = vmatpush2.bf16.msra.mxu0 0
    %1480 = vmatprep.subr.bf16.mxu0 0
    %1481 = vmatpush2.bf16.msra.mxu0 0
    %1482 = vmatprep.subr.bf16.mxu0 0
    %1483 = vmatpush2.bf16.msra.mxu0 0
    %1484 = vmatprep.mubr.bf16.mxu0 0
    %1485 = vmatmul.mubr.bf16.gmra.mxu0 %v1444
    %v1486 = vpop.f32.mrf.mxu0
    %v1487 = vadd.f32 0.0, %v1486
    %v1488 = vpop.f32.mrf.mxu0
    %v1489 = vpop.f32.mrf.mxu0
    %v1490 = vadd.f32 0.0, %v1489
    %v1491 = vpop.f32.mrf.mxu0
    %1492 = vmatprep.mubr.bf16.mxu0 0
    %1493 = vmatmul.mubr.bf16.gmra.mxu0 %v1447
    %v1494 = vpop.f32.mrf.mxu0
    %v1495 = vadd.f32 0.0, %v1494
    %v1496 = vpop.f32.mrf.mxu0
    %v1497 = vpop.f32.mrf.mxu0
    %v1498 = vpop.f32.mrf.mxu0
    %1499 = vdwg.mxu0
    %v1500 = vpack.c.bf16 %v1490, %v1487
    %v1501 = vpack.c.bf16 %v1495, %v1495
    %v1503 = vsel %vm507, %v1500, 0
    %v1506 = vsel %vm507, %v1501, 0
    %1508 = vmatprep.subr.bf16.mxu0 0
    %1509 = vmatpush1.bf16.msra.mxu0 0
    %1510 = vmatprep.subr.bf16.mxu0 0
    %1511 = vmatpush1.bf16.msra.mxu0 0
    %1512 = vmatprep.subr.bf16.mxu0 0
    %1513 = vmatpush1.bf16.msra.mxu0 0
    %1514 = vmatprep.subr.bf16.mxu0 0
    %1515 = vmatpush1.bf16.msra.mxu0 0
    %1516 = vmatprep.subr.bf16.mxu0 0
    %1517 = vmatpush1.bf16.msra.mxu0 0
    %1518 = vmatprep.subr.bf16.mxu0 0
    %1519 = vmatpush1.bf16.msra.mxu0 0
    %1520 = vmatprep.subr.bf16.mxu0 0
    %1521 = vmatpush1.bf16.msra.mxu0 0
    %1522 = vmatprep.subr.bf16.mxu0 0
    %1523 = vmatpush1.bf16.msra.mxu0 %v1226
    %1524 = vmatprep.subr.bf16.mxu0 0
    %1525 = vmatpush2.bf16.msra.mxu0 0
    %1526 = vmatprep.subr.bf16.mxu0 0
    %1527 = vmatpush2.bf16.msra.mxu0 0
    %1528 = vmatprep.subr.bf16.mxu0 0
    %1529 = vmatpush2.bf16.msra.mxu0 0
    %1530 = vmatprep.subr.bf16.mxu0 0
    %1531 = vmatpush2.bf16.msra.mxu0 0
    %1532 = vmatprep.subr.bf16.mxu0 0
    %1533 = vmatpush2.bf16.msra.mxu0 0
    %1534 = vmatprep.subr.bf16.mxu0 0
    %1535 = vmatpush2.bf16.msra.mxu0 0
    %1536 = vmatprep.subr.bf16.mxu0 0
    %1537 = vmatpush2.bf16.msra.mxu0 0
    %1538 = vmatprep.subr.bf16.mxu0 0
    %1539 = vmatpush2.bf16.msra.mxu0 0
    %1540 = vmatprep.mubr.bf16.mxu0 0
    %1541 = vmatmul.mubr.bf16.gmra.mxu0 %v1503
    %v1542 = vpop.f32.mrf.mxu0
    %v1543 = vadd.f32 0.0, %v1542
    %v1544 = vpop.f32.mrf.mxu0
    %v1545 = vpop.f32.mrf.mxu0
    %v1546 = vadd.f32 0.0, %v1545
    %v1547 = vpop.f32.mrf.mxu0
    %1548 = vmatprep.mubr.bf16.mxu0 0
    %1549 = vmatmul.mubr.bf16.gmra.mxu0 %v1506
    %v1550 = vpop.f32.mrf.mxu0
    %v1551 = vadd.f32 0.0, %v1550
    %v1552 = vpop.f32.mrf.mxu0
    %v1553 = vpop.f32.mrf.mxu0
    %v1554 = vpop.f32.mrf.mxu0
    %1555 = vdwg.mxu0
    %v1557 = vsel %vm507, %v823, 0
    %v1560 = vsel %vm507, %v824, 0
    %1562 = vmatprep.subr.bf16.mxu0 0
    %1563 = vmatpush1.bf16.msra.mxu0 0
    %1564 = vmatprep.subr.bf16.mxu0 0
    %1565 = vmatpush1.bf16.msra.mxu0 0
    %1566 = vmatprep.subr.bf16.mxu0 0
    %1567 = vmatpush1.bf16.msra.mxu0 0
    %1568 = vmatprep.subr.bf16.mxu0 0
    %1569 = vmatpush1.bf16.msra.mxu0 0
    %1570 = vmatprep.subr.bf16.mxu0 0
    %1571 = vmatpush1.bf16.msra.mxu0 0
    %1572 = vmatprep.subr.bf16.mxu0 0
    %1573 = vmatpush1.bf16.msra.mxu0 0
    %1574 = vmatprep.subr.bf16.mxu0 0
    %1575 = vmatpush1.bf16.msra.mxu0 0
    %1576 = vmatprep.subr.bf16.mxu0 0
    %1577 = vmatpush1.bf16.msra.mxu0 %v1286
    %1578 = vmatprep.subr.bf16.mxu0 0
    %1579 = vmatpush2.bf16.msra.mxu0 0
    %1580 = vmatprep.subr.bf16.mxu0 0
    %1581 = vmatpush2.bf16.msra.mxu0 0
    %1582 = vmatprep.subr.bf16.mxu0 0
    %1583 = vmatpush2.bf16.msra.mxu0 0
    %1584 = vmatprep.subr.bf16.mxu0 0
    %1585 = vmatpush2.bf16.msra.mxu0 0
    %1586 = vmatprep.subr.bf16.mxu0 0
    %1587 = vmatpush2.bf16.msra.mxu0 0
    %1588 = vmatprep.subr.bf16.mxu0 0
    %1589 = vmatpush2.bf16.msra.mxu0 0
    %1590 = vmatprep.subr.bf16.mxu0 0
    %1591 = vmatpush2.bf16.msra.mxu0 0
    %1592 = vmatprep.subr.bf16.mxu0 0
    %1593 = vmatpush2.bf16.msra.mxu0 0
    %1594 = vmatprep.mubr.bf16.mxu0 0
    %1595 = vmatmul.mubr.bf16.gmra.mxu0 %v1557
    %v1596 = vpop.f32.mrf.mxu0
    %v1597 = vadd.f32 %v1543, %v1596
    %v1598 = vpop.f32.mrf.mxu0
    %v1599 = vpop.f32.mrf.mxu0
    %v1600 = vadd.f32 %v1546, %v1599
    %v1601 = vpop.f32.mrf.mxu0
    %1602 = vmatprep.mubr.bf16.mxu0 0
    %1603 = vmatmul.mubr.bf16.gmra.mxu0 %v1560
    %v1604 = vpop.f32.mrf.mxu0
    %v1605 = vadd.f32 %v1551, %v1604
    %v1606 = vpop.f32.mrf.mxu0
    %v1607 = vpop.f32.mrf.mxu0
    %v1608 = vpop.f32.mrf.mxu0
    %1609 = vdwg.mxu0
    %v1610 = vlaneseq
    %v1611 = vshrl.u32 %v1610, 7
    %v1612 = vsub.s32 0, %v1611
    %v1613 = vrot.slane %v164, %v1612
    %v1614 = vadd.f32 %v1329, %v1613
    %v1615 = vadd.f32 %v1332, %v1613
    %v1616 = vadd.f32 %v1337, %v1613
    %v1617 = vadd.f32 %v1597, %v1613
    %v1618 = vadd.f32 %v1600, %v1613
    %v1619 = vadd.f32 %v1605, %v1613
    %v1620 = vadd.f32 %v152, %v1614
    %v1621 = vadd.f32 %v153, %v1615
    %v1622 = vadd.f32 %v158, %v1616
    %v1623 = vadd.f32 %v155, %v1617
    %v1624 = vadd.f32 %v156, %v1618
    %v1625 = vadd.f32 %v158, %v1619
    %v1626 = vsel %vm169, %v1620, 0.0
    %1627 = vadd.xlane.f32.xlu0 %v1626
    %v1628 = vpop.xlane.xlu0 %1627
    %v1629 = vsel %vm169, %v1621, 0.0
    %1630 = vadd.xlane.f32.xlu0 %v1629
    %v1631 = vpop.xlane.xlu0 %1630
    %v1632 = vsel %vm169, %v1622, 0.0
    %1633 = vadd.xlane.f32.xlu0 %v1632
    %v1634 = vpop.xlane.xlu0 %1633
    %v1635 = vsel %vm169, %v1623, 0.0
    %1636 = vadd.xlane.f32.xlu0 %v1635
    %v1637 = vpop.xlane.xlu0 %1636
    %v1638 = vsel %vm169, %v1624, 0.0
    %1639 = vadd.xlane.f32.xlu0 %v1638
    %v1640 = vpop.xlane.xlu0 %1639
    %v1641 = vsel %vm169, %v1625, 0.0
    %1642 = vadd.xlane.f32.xlu0 %v1641
    %v1643 = vpop.xlane.xlu0 %1642
    %v1644 = vmul.f32 %v1628, %v185
    %v1645 = vmul.f32 %v1631, %v185
    %v1646 = vmul.f32 %v1634, %v185
    %v1647 = vmul.f32 %v1637, %v185
    %v1648 = vmul.f32 %v1640, %v185
    %v1649 = vmul.f32 %v1643, %v185
    %v1650 = vsub.f32 %v1620, %v1644
    %v1651 = vsub.f32 %v1621, %v1645
    %v1652 = vsub.f32 %v1622, %v1646
    %v1653 = vsub.f32 %v1623, %v1647
    %v1654 = vsub.f32 %v1624, %v1648
    %v1655 = vsub.f32 %v1625, %v1649
    %v1656 = vmul.f32 %v1650, %v1650
    %v1657 = vmul.f32 %v1651, %v1651
    %v1658 = vmul.f32 %v1652, %v1652
    %v1659 = vmul.f32 %v1653, %v1653
    %v1660 = vmul.f32 %v1654, %v1654
    %v1661 = vmul.f32 %v1655, %v1655
    %v1662 = vsel %vm169, %v1656, 0.0
    %1663 = vadd.xlane.f32.xlu0 %v1662
    %v1664 = vpop.xlane.xlu0 %1663
    %v1665 = vsel %vm169, %v1657, 0.0
    %1666 = vadd.xlane.f32.xlu0 %v1665
    %v1667 = vpop.xlane.xlu0 %1666
    %v1668 = vsel %vm169, %v1658, 0.0
    %1669 = vadd.xlane.f32.xlu0 %v1668
    %v1670 = vpop.xlane.xlu0 %1669
    %v1671 = vsel %vm169, %v1659, 0.0
    %1672 = vadd.xlane.f32.xlu0 %v1671
    %v1673 = vpop.xlane.xlu0 %1672
    %v1674 = vsel %vm169, %v1660, 0.0
    %1675 = vadd.xlane.f32.xlu0 %v1674
    %v1676 = vpop.xlane.xlu0 %1675
    %v1677 = vsel %vm169, %v1661, 0.0
    %1678 = vadd.xlane.f32.xlu0 %v1677
    %v1679 = vpop.xlane.xlu0 %1678
    %v1680 = vmul.f32 %v1664, %v185
    %v1681 = vmul.f32 %v1667, %v185
    %v1682 = vmul.f32 %v1670, %v185
    %v1683 = vmul.f32 %v1673, %v185
    %v1684 = vmul.f32 %v1676, %v185
    %v1685 = vmul.f32 %v1679, %v185
    %v1686 = vadd.f32 %v1680, 1e-06
    %v1687 = vadd.f32 %v1681, 1e-06
    %v1688 = vadd.f32 %v1682, 1e-06
    %v1689 = vadd.f32 %v1683, 1e-06
    %v1690 = vadd.f32 %v1684, 1e-06
    %v1691 = vadd.f32 %v1685, 1e-06
    %v1692 = vrsqrt.pop %v1686
    %v1693 = vrsqrt.pop %v1687
    %v1694 = vrsqrt.pop %v1688
    %v1695 = vrsqrt.pop %v1689
    %v1696 = vrsqrt.pop %v1690
    %v1697 = vrsqrt.pop %v1691
    %v1698 = vmul.f32 %v1650, %v1692
    %v1699 = vmul.f32 %v1651, %v1693
    %v1700 = vmul.f32 %v1652, %v1694
    %v1701 = vmul.f32 %v1653, %v1695
    %v1702 = vmul.f32 %v1654, %v1696
    %v1703 = vmul.f32 %v1655, %v1697
    %v1704 = vlaneseq
    %v1705 = vshrl.u32 %v1704, 7
    %v1706 = vsub.s32 0, %v1705
    %v1707 = vrot.slane %v165, %v1706
    %v1708 = vmul.f32 %v1698, %v1707
    %v1709 = vmul.f32 %v1699, %v1707
    %v1710 = vmul.f32 %v1700, %v1707
    %v1711 = vmul.f32 %v1701, %v1707
    %v1712 = vmul.f32 %v1702, %v1707
    %v1713 = vmul.f32 %v1703, %v1707
    %v1714 = vlaneseq
    %v1715 = vshrl.u32 %v1714, 7
    %v1716 = vsub.s32 0, %v1715
    %v1717 = vrot.slane %v166, %v1716
    %v1718 = vadd.f32 %v1708, %v1717
    %v1719 = vadd.f32 %v1709, %v1717
    %v1720 = vadd.f32 %v1710, %v1717
    %v1721 = vadd.f32 %v1711, %v1717
    %v1722 = vadd.f32 %v1712, %v1717
    %v1723 = vadd.f32 %v1713, %v1717
    %v1724 = vpack.c.bf16 %v1719, %v1718
    %v1725 = vpack.c.bf16 %v1721, %v1720
    %v1726 = vpack.c.bf16 %v1723, %v1722
    %v1727 = vld [vmem:[%s7] sm:$0xf]
    %v1728 = vld [vmem:[%s7 + $0x4] sm:$0xf]
    %v1729 = vld [vmem:[%s7 + $0x8] sm:$0xf]
    %v1730 = vld [vmem:[%s7 + $0xc] sm:$0xf]
    %v1731 = vlaneseq
    %v1732 = vshrl.u32 %v1731, 7
    %v1733 = vsub.s32 0, %v1732
    %v1734 = vrot.slane %v168, %v1733
    %v1739 = vunpack.c.l.b16 %v1727
    %v1740 = vunpack.c.l.b16 %v1728
    %v1741 = vunpack.c.l.b16 %v1729
    %v1742 = vunpack.c.l.b16 %v1730
    %v1743 = vpack.c.b16 %v1740, %v1739
    %v1744 = vpack.c.b16 %v1742, %v1741
    %v1748 = vsel %vm169, %v1724, 0
    %v1751 = vsel %vm169, %v1725, 0
    %v1754 = vsel %vm169, %v1726, 0
    %1756 = vmatprep.subr.bf16.mxu0 0
    %1757 = vmatpush1.bf16.msra.mxu0 0
    %1758 = vmatprep.subr.bf16.mxu0 0
    %1759 = vmatpush1.bf16.msra.mxu0 0
    %1760 = vmatprep.subr.bf16.mxu0 0
    %1761 = vmatpush1.bf16.msra.mxu0 0
    %1762 = vmatprep.subr.bf16.mxu0 0
    %1763 = vmatpush1.bf16.msra.mxu0 0
    %1764 = vmatprep.subr.bf16.mxu0 0
    %1765 = vmatpush1.bf16.msra.mxu0 0
    %1766 = vmatprep.subr.bf16.mxu0 0
    %1767 = vmatpush1.bf16.msra.mxu0 0
    %1768 = vmatprep.subr.bf16.mxu0 0
    %1769 = vmatpush1.bf16.msra.mxu0 %v1744
    %1770 = vmatprep.subr.bf16.mxu0 0
    %1771 = vmatpush1.bf16.msra.mxu0 %v1743
    %1772 = vmatprep.subr.bf16.mxu0 0
    %1773 = vmatpush2.bf16.msra.mxu0 0
    %1774 = vmatprep.subr.bf16.mxu0 0
    %1775 = vmatpush2.bf16.msra.mxu0 0
    %1776 = vmatprep.subr.bf16.mxu0 0
    %1777 = vmatpush2.bf16.msra.mxu0 0
    %1778 = vmatprep.subr.bf16.mxu0 0
    %1779 = vmatpush2.bf16.msra.mxu0 0
    %1780 = vmatprep.subr.bf16.mxu0 0
    %1781 = vmatpush2.bf16.msra.mxu0 0
    %1782 = vmatprep.subr.bf16.mxu0 0
    %1783 = vmatpush2.bf16.msra.mxu0 0
    %1784 = vmatprep.subr.bf16.mxu0 0
    %1785 = vmatpush2.bf16.msra.mxu0 0
    %1786 = vmatprep.subr.bf16.mxu0 0
    %1787 = vmatpush2.bf16.msra.mxu0 0
    %1788 = vmatprep.mubr.bf16.mxu0 0
    %1789 = vmatmul.mubr.bf16.gmra.mxu0 %v1748
    %v1790 = vpop.f32.mrf.mxu0
    %v1791 = vadd.f32 %v1734, %v1790
    %v1792 = vpop.f32.mrf.mxu0
    %v1793 = vpop.f32.mrf.mxu0
    %v1794 = vadd.f32 %v1734, %v1793
    %v1795 = vpop.f32.mrf.mxu0
    %1796 = vmatprep.mubr.bf16.mxu0 0
    %1797 = vmatmul.mubr.bf16.gmra.mxu0 %v1751
    %v1798 = vpop.f32.mrf.mxu0
    %v1799 = vadd.f32 %v1734, %v1798
    %v1800 = vpop.f32.mrf.mxu0
    %v1801 = vpop.f32.mrf.mxu0
    %v1802 = vadd.f32 %v1734, %v1801
    %v1803 = vpop.f32.mrf.mxu0
    %1804 = vmatprep.mubr.bf16.mxu0 0
    %1805 = vmatmul.mubr.bf16.gmra.mxu0 %v1754
    %v1806 = vpop.f32.mrf.mxu0
    %v1807 = vadd.f32 %v1734, %v1806
    %v1808 = vpop.f32.mrf.mxu0
    %v1809 = vpop.f32.mrf.mxu0
    %v1810 = vadd.f32 %v1734, %v1809
    %v1811 = vpop.f32.mrf.mxu0
    %1812 = vdwg.mxu0
    %v1813 = vmul.f32 %v1791, %v1791
    %v1814 = vmul.f32 %v1794, %v1794
    %v1815 = vmul.f32 %v1799, %v1799
    %v1816 = vmul.f32 %v1802, %v1802
    %v1817 = vmul.f32 %v1807, %v1807
    %v1818 = vmul.f32 %v1810, %v1810
    %v1819 = vmul.f32 %v1791, %v1813
    %v1820 = vmul.f32 %v1794, %v1814
    %v1821 = vmul.f32 %v1799, %v1815
    %v1822 = vmul.f32 %v1802, %v1816
    %v1823 = vmul.f32 %v1807, %v1817
    %v1824 = vmul.f32 %v1810, %v1818
    %v1825 = vmul.f32 %v1819, 0.044715
    %v1826 = vmul.f32 %v1820, 0.044715
    %v1827 = vmul.f32 %v1821, 0.044715
    %v1828 = vmul.f32 %v1822, 0.044715
    %v1829 = vmul.f32 %v1823, 0.044715
    %v1830 = vmul.f32 %v1824, 0.044715
    %v1831 = vadd.f32 %v1791, %v1825
    %v1832 = vadd.f32 %v1794, %v1826
    %v1833 = vadd.f32 %v1799, %v1827
    %v1834 = vadd.f32 %v1802, %v1828
    %v1835 = vadd.f32 %v1807, %v1829
    %v1836 = vadd.f32 %v1810, %v1830
    %v1837 = vmul.f32 %v1831, 0.7978846
    %v1838 = vmul.f32 %v1832, 0.7978846
    %v1839 = vmul.f32 %v1833, 0.7978846
    %v1840 = vmul.f32 %v1834, 0.7978846
    %v1841 = vmul.f32 %v1835, 0.7978846
    %v1842 = vmul.f32 %v1836, 0.7978846
    %v1843 = vtanh.pop %v1837
    %v1844 = vtanh.pop %v1838
    %v1845 = vtanh.pop %v1839
    %v1846 = vtanh.pop %v1840
    %v1847 = vtanh.pop %v1841
    %v1848 = vtanh.pop %v1842
    %v1849 = vadd.f32 %v1843, 1.0
    %v1850 = vadd.f32 %v1844, 1.0
    %v1851 = vadd.f32 %v1845, 1.0
    %v1852 = vadd.f32 %v1846, 1.0
    %v1853 = vadd.f32 %v1847, 1.0
    %v1854 = vadd.f32 %v1848, 1.0
    %v1855 = vmul.f32 %v1849, 0.5
    %v1856 = vmul.f32 %v1850, 0.5
    %v1857 = vmul.f32 %v1851, 0.5
    %v1858 = vmul.f32 %v1852, 0.5
    %v1859 = vmul.f32 %v1853, 0.5
    %v1860 = vmul.f32 %v1854, 0.5
    %v1861 = vmul.f32 %v1791, %v1855
    %v1862 = vmul.f32 %v1794, %v1856
    %v1863 = vmul.f32 %v1799, %v1857
    %v1864 = vmul.f32 %v1802, %v1858
    %v1865 = vmul.f32 %v1807, %v1859
    %v1866 = vmul.f32 %v1810, %v1860
    %v1867 = vpack.c.bf16 %v1862, %v1861
    %v1868 = vpack.c.bf16 %v1864, %v1863
    %v1869 = vpack.c.bf16 %v1866, %v1865
    %v1870 = vld [vmem:[%s8] sm:$0xf]
    %v1871 = vld [vmem:[%s8 + $0x4] sm:$0xf]
    %v1872 = vld [vmem:[%s8 + $0x8] sm:$0xf]
    %v1873 = vld [vmem:[%s8 + $0xc] sm:$0xf]
    %v1874 = vld [vmem:[%s8 + $0x10] sm:$0xf]
    %v1875 = vld [vmem:[%s8 + $0x14] sm:$0xf]
    %v1876 = vld [vmem:[%s8 + $0x18] sm:$0xf]
    %v1877 = vld [vmem:[%s8 + $0x1c] sm:$0xf]
    %v1878 = vlaneseq
    %v1879 = vshrl.u32 %v1878, 7
    %v1880 = vsub.s32 0, %v1879
    %v1881 = vrot.slane %v167, %v1880
    %v1890 = vunpack.c.l.b16 %v1870
    %v1891 = vunpack.c.l.b16 %v1871
    %v1892 = vunpack.c.l.b16 %v1872
    %v1893 = vunpack.c.l.b16 %v1873
    %v1894 = vunpack.c.l.b16 %v1874
    %v1895 = vunpack.c.l.b16 %v1875
    %v1896 = vunpack.c.l.b16 %v1876
    %v1897 = vunpack.c.l.b16 %v1877
    %v1898 = vpack.c.b16 %v1891, %v1890
    %v1899 = vpack.c.b16 %v1893, %v1892
    %v1900 = vpack.c.b16 %v1895, %v1894
    %v1901 = vpack.c.b16 %v1897, %v1896
    %v1907 = vsel %vm94, %v1867, 0
    %v1910 = vsel %vm94, %v1868, 0
    %v1913 = vsel %vm94, %v1869, 0
    %1915 = vmatprep.subr.bf16.mxu0 0
    %1916 = vmatpush1.bf16.msra.mxu0 0
    %1917 = vmatprep.subr.bf16.mxu0 0
    %1918 = vmatpush1.bf16.msra.mxu0 0
    %1919 = vmatprep.subr.bf16.mxu0 0
    %1920 = vmatpush1.bf16.msra.mxu0 0
    %1921 = vmatprep.subr.bf16.mxu0 0
    %1922 = vmatpush1.bf16.msra.mxu0 0
    %1923 = vmatprep.subr.bf16.mxu0 0
    %1924 = vmatpush1.bf16.msra.mxu0 %v1901
    %1925 = vmatprep.subr.bf16.mxu0 0
    %1926 = vmatpush1.bf16.msra.mxu0 %v1900
    %1927 = vmatprep.subr.bf16.mxu0 0
    %1928 = vmatpush1.bf16.msra.mxu0 %v1899
    %1929 = vmatprep.subr.bf16.mxu0 0
    %1930 = vmatpush1.bf16.msra.mxu0 %v1898
    %1931 = vmatprep.subr.bf16.mxu0 0
    %1932 = vmatpush2.bf16.msra.mxu0 0
    %1933 = vmatprep.subr.bf16.mxu0 0
    %1934 = vmatpush2.bf16.msra.mxu0 0
    %1935 = vmatprep.subr.bf16.mxu0 0
    %1936 = vmatpush2.bf16.msra.mxu0 0
    %1937 = vmatprep.subr.bf16.mxu0 0
    %1938 = vmatpush2.bf16.msra.mxu0 0
    %1939 = vmatprep.subr.bf16.mxu0 0
    %1940 = vmatpush2.bf16.msra.mxu0 0
    %1941 = vmatprep.subr.bf16.mxu0 0
    %1942 = vmatpush2.bf16.msra.mxu0 0
    %1943 = vmatprep.subr.bf16.mxu0 0
    %1944 = vmatpush2.bf16.msra.mxu0 0
    %1945 = vmatprep.subr.bf16.mxu0 0
    %1946 = vmatpush2.bf16.msra.mxu0 0
    %1947 = vmatprep.mubr.bf16.mxu0 0
    %1948 = vmatmul.mubr.bf16.gmra.mxu0 %v1907
    %v1949 = vpop.f32.mrf.mxu0
    %v1950 = vadd.f32 %v1881, %v1949
    %v1951 = vpop.f32.mrf.mxu0
    %v1952 = vpop.f32.mrf.mxu0
    %v1953 = vadd.f32 %v1881, %v1952
    %v1954 = vpop.f32.mrf.mxu0
    %1955 = vmatprep.mubr.bf16.mxu0 0
    %1956 = vmatmul.mubr.bf16.gmra.mxu0 %v1910
    %v1957 = vpop.f32.mrf.mxu0
    %v1958 = vadd.f32 %v1881, %v1957
    %v1959 = vpop.f32.mrf.mxu0
    %v1960 = vpop.f32.mrf.mxu0
    %v1961 = vadd.f32 %v1881, %v1960
    %v1962 = vpop.f32.mrf.mxu0
    %1963 = vmatprep.mubr.bf16.mxu0 0
    %1964 = vmatmul.mubr.bf16.gmra.mxu0 %v1913
    %v1965 = vpop.f32.mrf.mxu0
    %v1966 = vadd.f32 %v1881, %v1965
    %v1967 = vpop.f32.mrf.mxu0
    %v1968 = vpop.f32.mrf.mxu0
    %v1969 = vadd.f32 %v1881, %v1968
    %v1970 = vpop.f32.mrf.mxu0
    %1971 = vdwg.mxu0
    %v1972 = vadd.f32 %v1620, %v1950
    %v1973 = vadd.f32 %v1621, %v1953
    %v1974 = vadd.f32 %v1622, %v1958
    %v1975 = vadd.f32 %v1623, %v1961
    %v1976 = vadd.f32 %v1624, %v1966
    %v1977 = vadd.f32 %v1625, %v1969
    %s1978 = scalar_lea.vmem %s9, 16
    %v1979 = vld [vmem:[%s1978] sm:$0x1]
    %v1980 = vld [vmem:[%s1978 + $0x1] sm:$0x1]
    %v1981 = vld [vmem:[%s1978 + $0x2] sm:$0x1]
    %v1982 = vld [vmem:[%s1978 + $0x3] sm:$0x1]
    %v1983 = vld [vmem:[%s1978 + $0x4] sm:$0x1]
    %v1984 = vld [vmem:[%s1978 + $0x5] sm:$0x1]
    %v1985 = vld [vmem:[%s1978 + $0x6] sm:$0x1]
    %v1986 = vld [vmem:[%s1978 + $0x7] sm:$0x1]
    %v1987 = vld [vmem:[%s1978 + $0x8] sm:$0x1]
    %v1988 = vld [vmem:[%s1978 + $0x9] sm:$0x1]
    %v1989 = vsel %vm169, %v1972, 0.0
    %1990 = vadd.xlane.f32.xlu0 %v1989
    %v1991 = vpop.xlane.xlu0 %1990
    %v1992 = vsel %vm169, %v1973, 0.0
    %1993 = vadd.xlane.f32.xlu0 %v1992
    %v1994 = vpop.xlane.xlu0 %1993
    %v1995 = vsel %vm169, %v1974, 0.0
    %1996 = vadd.xlane.f32.xlu0 %v1995
    %v1997 = vpop.xlane.xlu0 %1996
    %v1998 = vsel %vm169, %v1975, 0.0
    %1999 = vadd.xlane.f32.xlu0 %v1998
    %v2000 = vpop.xlane.xlu0 %1999
    %v2001 = vsel %vm169, %v1976, 0.0
    %2002 = vadd.xlane.f32.xlu0 %v2001
    %v2003 = vpop.xlane.xlu0 %2002
    %v2004 = vsel %vm169, %v1977, 0.0
    %2005 = vadd.xlane.f32.xlu0 %v2004
    %v2006 = vpop.xlane.xlu0 %2005
    %v2007 = vmul.f32 %v1991, %v185
    %v2008 = vmul.f32 %v1994, %v185
    %v2009 = vmul.f32 %v1997, %v185
    %v2010 = vmul.f32 %v2000, %v185
    %v2011 = vmul.f32 %v2003, %v185
    %v2012 = vmul.f32 %v2006, %v185
    %v2013 = vsub.f32 %v1972, %v2007
    %v2014 = vsub.f32 %v1973, %v2008
    %v2015 = vsub.f32 %v1974, %v2009
    %v2016 = vsub.f32 %v1975, %v2010
    %v2017 = vsub.f32 %v1976, %v2011
    %v2018 = vsub.f32 %v1977, %v2012
    %v2019 = vmul.f32 %v2013, %v2013
    %v2020 = vmul.f32 %v2014, %v2014
    %v2021 = vmul.f32 %v2015, %v2015
    %v2022 = vmul.f32 %v2016, %v2016
    %v2023 = vmul.f32 %v2017, %v2017
    %v2024 = vmul.f32 %v2018, %v2018
    %v2025 = vsel %vm169, %v2019, 0.0
    %2026 = vadd.xlane.f32.xlu0 %v2025
    %v2027 = vpop.xlane.xlu0 %2026
    %v2028 = vsel %vm169, %v2020, 0.0
    %2029 = vadd.xlane.f32.xlu0 %v2028
    %v2030 = vpop.xlane.xlu0 %2029
    %v2031 = vsel %vm169, %v2021, 0.0
    %2032 = vadd.xlane.f32.xlu0 %v2031
    %v2033 = vpop.xlane.xlu0 %2032
    %v2034 = vsel %vm169, %v2022, 0.0
    %2035 = vadd.xlane.f32.xlu0 %v2034
    %v2036 = vpop.xlane.xlu0 %2035
    %v2037 = vsel %vm169, %v2023, 0.0
    %2038 = vadd.xlane.f32.xlu0 %v2037
    %v2039 = vpop.xlane.xlu0 %2038
    %v2040 = vsel %vm169, %v2024, 0.0
    %2041 = vadd.xlane.f32.xlu0 %v2040
    %v2042 = vpop.xlane.xlu0 %2041
    %v2043 = vmul.f32 %v2027, %v185
    %v2044 = vmul.f32 %v2030, %v185
    %v2045 = vmul.f32 %v2033, %v185
    %v2046 = vmul.f32 %v2036, %v185
    %v2047 = vmul.f32 %v2039, %v185
    %v2048 = vmul.f32 %v2042, %v185
    %v2049 = vadd.f32 %v2043, 1e-06
    %v2050 = vadd.f32 %v2044, 1e-06
    %v2051 = vadd.f32 %v2045, 1e-06
    %v2052 = vadd.f32 %v2046, 1e-06
    %v2053 = vadd.f32 %v2047, 1e-06
    %v2054 = vadd.f32 %v2048, 1e-06
    %v2055 = vrsqrt.pop %v2049
    %v2056 = vrsqrt.pop %v2050
    %v2057 = vrsqrt.pop %v2051
    %v2058 = vrsqrt.pop %v2052
    %v2059 = vrsqrt.pop %v2053
    %v2060 = vrsqrt.pop %v2054
    %v2061 = vmul.f32 %v2013, %v2055
    %v2062 = vmul.f32 %v2014, %v2056
    %v2063 = vmul.f32 %v2015, %v2057
    %v2064 = vmul.f32 %v2016, %v2058
    %v2065 = vmul.f32 %v2017, %v2059
    %v2066 = vmul.f32 %v2018, %v2060
    %v2067 = vlaneseq
    %v2068 = vshrl.u32 %v2067, 7
    %v2069 = vsub.s32 0, %v2068
    %v2070 = vrot.slane %v1979, %v2069
    %v2071 = vmul.f32 %v2061, %v2070
    %v2072 = vmul.f32 %v2062, %v2070
    %v2073 = vmul.f32 %v2063, %v2070
    %v2074 = vmul.f32 %v2064, %v2070
    %v2075 = vmul.f32 %v2065, %v2070
    %v2076 = vmul.f32 %v2066, %v2070
    %v2077 = vlaneseq
    %v2078 = vshrl.u32 %v2077, 7
    %v2079 = vsub.s32 0, %v2078
    %v2080 = vrot.slane %v1980, %v2079
    %v2081 = vadd.f32 %v2071, %v2080
    %v2082 = vadd.f32 %v2072, %v2080
    %v2083 = vadd.f32 %v2073, %v2080
    %v2084 = vadd.f32 %v2074, %v2080
    %v2085 = vadd.f32 %v2075, %v2080
    %v2086 = vadd.f32 %v2076, %v2080
    %v2087 = vpack.c.bf16 %v2082, %v2081
    %v2088 = vpack.c.bf16 %v2084, %v2083
    %v2089 = vpack.c.bf16 %v2086, %v2085
    %s2090 = scalar_lea.vmem %s5, 96
    %v2091 = vld [vmem:[%s2090] sm:$0xf]
    %v2092 = vld [vmem:[%s2090 + $0x4] sm:$0xf]
    %v2093 = vld [vmem:[%s2090 + $0x8] sm:$0xf]
    %v2094 = vld [vmem:[%s2090 + $0xc] sm:$0xf]
    %v2095 = vlaneseq
    %v2096 = vshrl.u32 %v2095, 7
    %v2097 = vsub.s32 0, %v2096
    %v2098 = vrot.slane %v1981, %v2097
    %v2103 = vunpack.c.l.b16 %v2091
    %v2104 = vunpack.c.l.b16 %v2092
    %v2105 = vunpack.c.l.b16 %v2093
    %v2106 = vunpack.c.l.b16 %v2094
    %v2107 = vpack.c.b16 %v2104, %v2103
    %v2108 = vpack.c.b16 %v2106, %v2105
    %v2112 = vsel %vm169, %v2087, 0
    %v2115 = vsel %vm169, %v2088, 0
    %v2118 = vsel %vm169, %v2089, 0
    %2120 = vmatprep.subr.bf16.mxu0 0
    %2121 = vmatpush1.bf16.msra.mxu0 0
    %2122 = vmatprep.subr.bf16.mxu0 0
    %2123 = vmatpush1.bf16.msra.mxu0 0
    %2124 = vmatprep.subr.bf16.mxu0 0
    %2125 = vmatpush1.bf16.msra.mxu0 0
    %2126 = vmatprep.subr.bf16.mxu0 0
    %2127 = vmatpush1.bf16.msra.mxu0 0
    %2128 = vmatprep.subr.bf16.mxu0 0
    %2129 = vmatpush1.bf16.msra.mxu0 0
    %2130 = vmatprep.subr.bf16.mxu0 0
    %2131 = vmatpush1.bf16.msra.mxu0 0
    %2132 = vmatprep.subr.bf16.mxu0 0
    %2133 = vmatpush1.bf16.msra.mxu0 %v2108
    %2134 = vmatprep.subr.bf16.mxu0 0
    %2135 = vmatpush1.bf16.msra.mxu0 %v2107
    %2136 = vmatprep.subr.bf16.mxu0 0
    %2137 = vmatpush2.bf16.msra.mxu0 0
    %2138 = vmatprep.subr.bf16.mxu0 0
    %2139 = vmatpush2.bf16.msra.mxu0 0
    %2140 = vmatprep.subr.bf16.mxu0 0
    %2141 = vmatpush2.bf16.msra.mxu0 0
    %2142 = vmatprep.subr.bf16.mxu0 0
    %2143 = vmatpush2.bf16.msra.mxu0 0
    %2144 = vmatprep.subr.bf16.mxu0 0
    %2145 = vmatpush2.bf16.msra.mxu0 0
    %2146 = vmatprep.subr.bf16.mxu0 0
    %2147 = vmatpush2.bf16.msra.mxu0 0
    %2148 = vmatprep.subr.bf16.mxu0 0
    %2149 = vmatpush2.bf16.msra.mxu0 0
    %2150 = vmatprep.subr.bf16.mxu0 0
    %2151 = vmatpush2.bf16.msra.mxu0 0
    %2152 = vmatprep.mubr.bf16.mxu0 0
    %2153 = vmatmul.mubr.bf16.gmra.mxu0 %v2112
    %v2154 = vpop.f32.mrf.mxu0
    %v2155 = vadd.f32 %v2098, %v2154
    %v2156 = vpop.f32.mrf.mxu0
    %v2157 = vpop.f32.mrf.mxu0
    %v2158 = vadd.f32 %v2098, %v2157
    %v2159 = vpop.f32.mrf.mxu0
    %2160 = vmatprep.mubr.bf16.mxu0 0
    %2161 = vmatmul.mubr.bf16.gmra.mxu0 %v2115
    %v2162 = vpop.f32.mrf.mxu0
    %v2163 = vadd.f32 %v2098, %v2162
    %v2164 = vpop.f32.mrf.mxu0
    %v2165 = vpop.f32.mrf.mxu0
    %v2166 = vadd.f32 %v2098, %v2165
    %v2167 = vpop.f32.mrf.mxu0
    %2168 = vmatprep.mubr.bf16.mxu0 0
    %2169 = vmatmul.mubr.bf16.gmra.mxu0 %v2118
    %v2170 = vpop.f32.mrf.mxu0
    %v2171 = vadd.f32 %v2098, %v2170
    %v2172 = vpop.f32.mrf.mxu0
    %v2173 = vpop.f32.mrf.mxu0
    %v2174 = vadd.f32 %v2098, %v2173
    %v2175 = vpop.f32.mrf.mxu0
    %2176 = vdwg.mxu0
    %s2177 = scalar_lea.vmem %s5, 128
    %v2178 = vld [vmem:[%s2177] sm:$0xf]
    %v2179 = vld [vmem:[%s2177 + $0x4] sm:$0xf]
    %v2180 = vld [vmem:[%s2177 + $0x8] sm:$0xf]
    %v2181 = vld [vmem:[%s2177 + $0xc] sm:$0xf]
    %v2182 = vlaneseq
    %v2183 = vshrl.u32 %v2182, 7
    %v2184 = vsub.s32 0, %v2183
    %v2185 = vrot.slane %v1982, %v2184
    %v2190 = vunpack.c.l.b16 %v2178
    %v2191 = vunpack.c.l.b16 %v2179
    %v2192 = vunpack.c.l.b16 %v2180
    %v2193 = vunpack.c.l.b16 %v2181
    %v2194 = vpack.c.b16 %v2191, %v2190
    %v2195 = vpack.c.b16 %v2193, %v2192
    %2198 = vmatprep.subr.bf16.mxu0 0
    %2199 = vmatpush1.bf16.msra.mxu0 0
    %2200 = vmatprep.subr.bf16.mxu0 0
    %2201 = vmatpush1.bf16.msra.mxu0 0
    %2202 = vmatprep.subr.bf16.mxu0 0
    %2203 = vmatpush1.bf16.msra.mxu0 0
    %2204 = vmatprep.subr.bf16.mxu0 0
    %2205 = vmatpush1.bf16.msra.mxu0 0
    %2206 = vmatprep.subr.bf16.mxu0 0
    %2207 = vmatpush1.bf16.msra.mxu0 0
    %2208 = vmatprep.subr.bf16.mxu0 0
    %2209 = vmatpush1.bf16.msra.mxu0 0
    %2210 = vmatprep.subr.bf16.mxu0 0
    %2211 = vmatpush1.bf16.msra.mxu0 %v2195
    %2212 = vmatprep.subr.bf16.mxu0 0
    %2213 = vmatpush1.bf16.msra.mxu0 %v2194
    %2214 = vmatprep.subr.bf16.mxu0 0
    %2215 = vmatpush2.bf16.msra.mxu0 0
    %2216 = vmatprep.subr.bf16.mxu0 0
    %2217 = vmatpush2.bf16.msra.mxu0 0
    %2218 = vmatprep.subr.bf16.mxu0 0
    %2219 = vmatpush2.bf16.msra.mxu0 0
    %2220 = vmatprep.subr.bf16.mxu0 0
    %2221 = vmatpush2.bf16.msra.mxu0 0
    %2222 = vmatprep.subr.bf16.mxu0 0
    %2223 = vmatpush2.bf16.msra.mxu0 0
    %2224 = vmatprep.subr.bf16.mxu0 0
    %2225 = vmatpush2.bf16.msra.mxu0 0
    %2226 = vmatprep.subr.bf16.mxu0 0
    %2227 = vmatpush2.bf16.msra.mxu0 0
    %2228 = vmatprep.subr.bf16.mxu0 0
    %2229 = vmatpush2.bf16.msra.mxu0 0
    %2230 = vmatprep.mubr.bf16.mxu0 0
    %2231 = vmatmul.mubr.bf16.gmra.mxu0 %v2112
    %v2232 = vpop.f32.mrf.mxu0
    %v2233 = vadd.f32 %v2185, %v2232
    %v2234 = vpop.f32.mrf.mxu0
    %v2235 = vpop.f32.mrf.mxu0
    %v2236 = vadd.f32 %v2185, %v2235
    %v2237 = vpop.f32.mrf.mxu0
    %2238 = vmatprep.mubr.bf16.mxu0 0
    %2239 = vmatmul.mubr.bf16.gmra.mxu0 %v2115
    %v2240 = vpop.f32.mrf.mxu0
    %v2241 = vadd.f32 %v2185, %v2240
    %v2242 = vpop.f32.mrf.mxu0
    %v2243 = vpop.f32.mrf.mxu0
    %v2244 = vadd.f32 %v2185, %v2243
    %v2245 = vpop.f32.mrf.mxu0
    %2246 = vmatprep.mubr.bf16.mxu0 0
    %2247 = vmatmul.mubr.bf16.gmra.mxu0 %v2118
    %v2248 = vpop.f32.mrf.mxu0
    %v2249 = vadd.f32 %v2185, %v2248
    %v2250 = vpop.f32.mrf.mxu0
    %v2251 = vpop.f32.mrf.mxu0
    %v2252 = vadd.f32 %v2185, %v2251
    %v2253 = vpop.f32.mrf.mxu0
    %2254 = vdwg.mxu0
    %s2255 = scalar_lea.vmem %s5, 160
    %v2256 = vld [vmem:[%s2255] sm:$0xf]
    %v2257 = vld [vmem:[%s2255 + $0x4] sm:$0xf]
    %v2258 = vld [vmem:[%s2255 + $0x8] sm:$0xf]
    %v2259 = vld [vmem:[%s2255 + $0xc] sm:$0xf]
    %v2260 = vlaneseq
    %v2261 = vshrl.u32 %v2260, 7
    %v2262 = vsub.s32 0, %v2261
    %v2263 = vrot.slane %v1983, %v2262
    %v2268 = vunpack.c.l.b16 %v2256
    %v2269 = vunpack.c.l.b16 %v2257
    %v2270 = vunpack.c.l.b16 %v2258
    %v2271 = vunpack.c.l.b16 %v2259
    %v2272 = vpack.c.b16 %v2269, %v2268
    %v2273 = vpack.c.b16 %v2271, %v2270
    %2276 = vmatprep.subr.bf16.mxu0 0
    %2277 = vmatpush1.bf16.msra.mxu0 0
    %2278 = vmatprep.subr.bf16.mxu0 0
    %2279 = vmatpush1.bf16.msra.mxu0 0
    %2280 = vmatprep.subr.bf16.mxu0 0
    %2281 = vmatpush1.bf16.msra.mxu0 0
    %2282 = vmatprep.subr.bf16.mxu0 0
    %2283 = vmatpush1.bf16.msra.mxu0 0
    %2284 = vmatprep.subr.bf16.mxu0 0
    %2285 = vmatpush1.bf16.msra.mxu0 0
    %2286 = vmatprep.subr.bf16.mxu0 0
    %2287 = vmatpush1.bf16.msra.mxu0 0
    %2288 = vmatprep.subr.bf16.mxu0 0
    %2289 = vmatpush1.bf16.msra.mxu0 %v2273
    %2290 = vmatprep.subr.bf16.mxu0 0
    %2291 = vmatpush1.bf16.msra.mxu0 %v2272
    %2292 = vmatprep.subr.bf16.mxu0 0
    %2293 = vmatpush2.bf16.msra.mxu0 0
    %2294 = vmatprep.subr.bf16.mxu0 0
    %2295 = vmatpush2.bf16.msra.mxu0 0
    %2296 = vmatprep.subr.bf16.mxu0 0
    %2297 = vmatpush2.bf16.msra.mxu0 0
    %2298 = vmatprep.subr.bf16.mxu0 0
    %2299 = vmatpush2.bf16.msra.mxu0 0
    %2300 = vmatprep.subr.bf16.mxu0 0
    %2301 = vmatpush2.bf16.msra.mxu0 0
    %2302 = vmatprep.subr.bf16.mxu0 0
    %2303 = vmatpush2.bf16.msra.mxu0 0
    %2304 = vmatprep.subr.bf16.mxu0 0
    %2305 = vmatpush2.bf16.msra.mxu0 0
    %2306 = vmatprep.subr.bf16.mxu0 0
    %2307 = vmatpush2.bf16.msra.mxu0 0
    %2308 = vmatprep.mubr.bf16.mxu0 0
    %2309 = vmatmul.mubr.bf16.gmra.mxu0 %v2112
    %v2310 = vpop.f32.mrf.mxu0
    %v2311 = vadd.f32 %v2263, %v2310
    %v2312 = vpop.f32.mrf.mxu0
    %v2313 = vpop.f32.mrf.mxu0
    %v2314 = vadd.f32 %v2263, %v2313
    %v2315 = vpop.f32.mrf.mxu0
    %2316 = vmatprep.mubr.bf16.mxu0 0
    %2317 = vmatmul.mubr.bf16.gmra.mxu0 %v2115
    %v2318 = vpop.f32.mrf.mxu0
    %v2319 = vadd.f32 %v2263, %v2318
    %v2320 = vpop.f32.mrf.mxu0
    %v2321 = vpop.f32.mrf.mxu0
    %v2322 = vadd.f32 %v2263, %v2321
    %v2323 = vpop.f32.mrf.mxu0
    %2324 = vmatprep.mubr.bf16.mxu0 0
    %2325 = vmatmul.mubr.bf16.gmra.mxu0 %v2118
    %v2326 = vpop.f32.mrf.mxu0
    %v2327 = vadd.f32 %v2263, %v2326
    %v2328 = vpop.f32.mrf.mxu0
    %v2329 = vpop.f32.mrf.mxu0
    %v2330 = vadd.f32 %v2263, %v2329
    %v2331 = vpop.f32.mrf.mxu0
    %2332 = vdwg.mxu0
    %s2333 = scalar_lea.vmem %s6, 16
    %v2334 = vld [vmem:[%s2333] sm:$0xf]
    %v2335 = vld [vmem:[%s2333 + $0x4] sm:$0xf]
    %v2336 = vpack.c.bf16 %v2158, %v2155
    %v2337 = vpack.c.bf16 %v2163, %v2163
    %v2338 = vpack.c.bf16 %v2236, %v2233
    %v2339 = vpack.c.bf16 %v2241, %v2241
    %v2340 = vpack.c.bf16 %v2314, %v2311
    %v2341 = vpack.c.bf16 %v2319, %v2319
    %v2343 = vsel %vm507, %v2336, 0
    %v2346 = vsel %vm507, %v2337, 0
    %v2349 = vsel %vm507, %v2338, 0
    %v2352 = vsel %vm507, %v2339, 0
    %2354 = vmatprep.subr.bf16.mxu0 0
    %2355 = vmatpush1.bf16.xpose.msra.mxu0 0
    %2356 = vmatprep.subr.bf16.mxu0 0
    %2357 = vmatpush1.bf16.xpose.msra.mxu0 0
    %2358 = vmatprep.subr.bf16.mxu0 0
    %2359 = vmatpush1.bf16.xpose.msra.mxu0 0
    %2360 = vmatprep.subr.bf16.mxu0 0
    %2361 = vmatpush1.bf16.xpose.msra.mxu0 0
    %2362 = vmatprep.subr.bf16.mxu0 0
    %2363 = vmatpush1.bf16.xpose.msra.mxu0 0
    %2364 = vmatprep.subr.bf16.mxu0 0
    %2365 = vmatpush1.bf16.xpose.msra.mxu0 0
    %2366 = vmatprep.subr.bf16.mxu0 0
    %2367 = vmatpush1.bf16.xpose.msra.mxu0 %v2352
    %2368 = vmatprep.subr.bf16.mxu0 0
    %2369 = vmatpush1.bf16.xpose.msra.mxu0 %v2349
    %2370 = vmatprep.subr.bf16.mxu0 0
    %2371 = vmatpush2.bf16.xpose.msra.mxu0 0
    %2372 = vmatprep.subr.bf16.mxu0 0
    %2373 = vmatpush2.bf16.xpose.msra.mxu0 0
    %2374 = vmatprep.subr.bf16.mxu0 0
    %2375 = vmatpush2.bf16.xpose.msra.mxu0 0
    %2376 = vmatprep.subr.bf16.mxu0 0
    %2377 = vmatpush2.bf16.xpose.msra.mxu0 0
    %2378 = vmatprep.subr.bf16.mxu0 0
    %2379 = vmatpush2.bf16.xpose.msra.mxu0 0
    %2380 = vmatprep.subr.bf16.mxu0 0
    %2381 = vmatpush2.bf16.xpose.msra.mxu0 0
    %2382 = vmatprep.subr.bf16.mxu0 0
    %2383 = vmatpush2.bf16.xpose.msra.mxu0 0
    %2384 = vmatprep.subr.bf16.mxu0 0
    %2385 = vmatpush2.bf16.xpose.msra.mxu0 0
    %2386 = vmatprep.mubr.bf16.mxu0 0
    %2387 = vmatmul.mubr.bf16.gmra.mxu0 %v2343
    %v2388 = vpop.f32.mrf.mxu0
    %v2389 = vadd.f32 0.0, %v2388
    %v2390 = vpop.f32.mrf.mxu0
    %v2391 = vpop.f32.mrf.mxu0
    %v2392 = vadd.f32 0.0, %v2391
    %v2393 = vpop.f32.mrf.mxu0
    %2394 = vmatprep.mubr.bf16.mxu0 0
    %2395 = vmatmul.mubr.bf16.gmra.mxu0 %v2346
    %v2396 = vpop.f32.mrf.mxu0
    %v2397 = vadd.f32 0.0, %v2396
    %v2398 = vpop.f32.mrf.mxu0
    %v2399 = vpop.f32.mrf.mxu0
    %v2400 = vpop.f32.mrf.mxu0
    %2401 = vdwg.mxu0
    %v2402 = vsel %vm568, %v2389, -inf
    %2403 = vmax.xlane.f32.xlu0 %v2402
    %v2404 = vpop.xlane.xlu0 %2403
    %v2405 = vsel %vm568, %v2392, -inf
    %2406 = vmax.xlane.f32.xlu0 %v2405
    %v2407 = vpop.xlane.xlu0 %2406
    %v2408 = vsel %vm568, %v2397, -inf
    %2409 = vmax.xlane.f32.xlu0 %v2408
    %v2410 = vpop.xlane.xlu0 %2409
    %v2411 = vsub.f32 %v2389, %v2404
    %v2412 = vsub.f32 %v2392, %v2407
    %v2413 = vsub.f32 %v2397, %v2410
    %v2414 = vmul.f32 %v2411, 1.442695
    %v2415 = vpow.pop %v2414
    %v2416 = vmul.f32 %v2412, 1.442695
    %v2417 = vpow.pop %v2416
    %v2418 = vmul.f32 %v2413, 1.442695
    %v2419 = vpow.pop %v2418
    %v2420 = vsel %vm568, %v2415, 0.0
    %2421 = vadd.xlane.f32.xlu0 %v2420
    %v2422 = vpop.xlane.xlu0 %2421
    %v2423 = vsel %vm568, %v2417, 0.0
    %2424 = vadd.xlane.f32.xlu0 %v2423
    %v2425 = vpop.xlane.xlu0 %2424
    %v2426 = vsel %vm568, %v2419, 0.0
    %2427 = vadd.xlane.f32.xlu0 %v2426
    %v2428 = vpop.xlane.xlu0 %2427
    %v2429 = vrcp.pop %v2422
    %v2430 = vrcp.pop %v2425
    %v2431 = vrcp.pop %v2428
    %v2432 = vmul.f32 %v2415, %v2429
    %v2433 = vmul.f32 %v2417, %v2430
    %v2434 = vmul.f32 %v2419, %v2431
    %v2435 = vpack.c.bf16 %v2433, %v2432
    %v2436 = vpack.c.bf16 %v2434, %v2434
    %v2438 = vsel %vm568, %v2435, 0
    %v2441 = vsel %vm568, %v2436, 0
    %v2444 = vand.u32 %v2341, %v611
    %2446 = vmatprep.subr.bf16.mxu0 0
    %2447 = vmatpush1.bf16.msra.mxu0 0
    %2448 = vmatprep.subr.bf16.mxu0 0
    %2449 = vmatpush1.bf16.msra.mxu0 0
    %2450 = vmatprep.subr.bf16.mxu0 0
    %2451 = vmatpush1.bf16.msra.mxu0 0
    %2452 = vmatprep.subr.bf16.mxu0 0
    %2453 = vmatpush1.bf16.msra.mxu0 0
    %2454 = vmatprep.subr.bf16.mxu0 0
    %2455 = vmatpush1.bf16.msra.mxu0 0
    %2456 = vmatprep.subr.bf16.mxu0 0
    %2457 = vmatpush1.bf16.msra.mxu0 0
    %2458 = vmatprep.subr.bf16.mxu0 0
    %2459 = vmatpush1.bf16.msra.mxu0 %v2444
    %2460 = vmatprep.subr.bf16.mxu0 0
    %2461 = vmatpush1.bf16.msra.mxu0 %v2340
    %2462 = vmatprep.subr.bf16.mxu0 0
    %2463 = vmatpush2.bf16.msra.mxu0 0
    %2464 = vmatprep.subr.bf16.mxu0 0
    %2465 = vmatpush2.bf16.msra.mxu0 0
    %2466 = vmatprep.subr.bf16.mxu0 0
    %2467 = vmatpush2.bf16.msra.mxu0 0
    %2468 = vmatprep.subr.bf16.mxu0 0
    %2469 = vmatpush2.bf16.msra.mxu0 0
    %2470 = vmatprep.subr.bf16.mxu0 0
    %2471 = vmatpush2.bf16.msra.mxu0 0
    %2472 = vmatprep.subr.bf16.mxu0 0
    %2473 = vmatpush2.bf16.msra.mxu0 0
    %2474 = vmatprep.subr.bf16.mxu0 0
    %2475 = vmatpush2.bf16.msra.mxu0 0
    %2476 = vmatprep.subr.bf16.mxu0 0
    %2477 = vmatpush2.bf16.msra.mxu0 0
    %2478 = vmatprep.mubr.bf16.mxu0 0
    %2479 = vmatmul.mubr.bf16.gmra.mxu0 %v2438
    %v2480 = vpop.f32.mrf.mxu0
    %v2481 = vadd.f32 0.0, %v2480
    %v2482 = vpop.f32.mrf.mxu0
    %v2483 = vpop.f32.mrf.mxu0
    %v2484 = vadd.f32 0.0, %v2483
    %v2485 = vpop.f32.mrf.mxu0
    %2486 = vmatprep.mubr.bf16.mxu0 0
    %2487 = vmatmul.mubr.bf16.gmra.mxu0 %v2441
    %v2488 = vpop.f32.mrf.mxu0
    %v2489 = vadd.f32 0.0, %v2488
    %v2490 = vpop.f32.mrf.mxu0
    %v2491 = vpop.f32.mrf.mxu0
    %v2492 = vpop.f32.mrf.mxu0
    %2493 = vdwg.mxu0
    %v2494 = vpack.c.bf16 %v2484, %v2481
    %v2495 = vpack.c.bf16 %v2489, %v2489
    %v2496 = vpack.c.bf16 %v2171, %v2166
    %v2497 = vpack.c.bf16 %v2174, %v2174
    %v2498 = vpack.c.bf16 %v2249, %v2244
    %v2499 = vpack.c.bf16 %v2252, %v2252
    %v2500 = vpack.c.bf16 %v2327, %v2322
    %v2501 = vpack.c.bf16 %v2330, %v2330
    %v2503 = vsel %vm507, %v2496, 0
    %v2506 = vsel %vm507, %v2497, 0
    %v2509 = vsel %vm507, %v2498, 0
    %v2512 = vsel %vm507, %v2499, 0
    %2514 = vmatprep.subr.bf16.mxu0 0
    %2515 = vmatpush1.bf16.xpose.msra.mxu0 0
    %2516 = vmatprep.subr.bf16.mxu0 0
    %2517 = vmatpush1.bf16.xpose.msra.mxu0 0
    %2518 = vmatprep.subr.bf16.mxu0 0
    %2519 = vmatpush1.bf16.xpose.msra.mxu0 0
    %2520 = vmatprep.subr.bf16.mxu0 0
    %2521 = vmatpush1.bf16.xpose.msra.mxu0 0
    %2522 = vmatprep.subr.bf16.mxu0 0
    %2523 = vmatpush1.bf16.xpose.msra.mxu0 0
    %2524 = vmatprep.subr.bf16.mxu0 0
    %2525 = vmatpush1.bf16.xpose.msra.mxu0 0
    %2526 = vmatprep.subr.bf16.mxu0 0
    %2527 = vmatpush1.bf16.xpose.msra.mxu0 %v2512
    %2528 = vmatprep.subr.bf16.mxu0 0
    %2529 = vmatpush1.bf16.xpose.msra.mxu0 %v2509
    %2530 = vmatprep.subr.bf16.mxu0 0
    %2531 = vmatpush2.bf16.xpose.msra.mxu0 0
    %2532 = vmatprep.subr.bf16.mxu0 0
    %2533 = vmatpush2.bf16.xpose.msra.mxu0 0
    %2534 = vmatprep.subr.bf16.mxu0 0
    %2535 = vmatpush2.bf16.xpose.msra.mxu0 0
    %2536 = vmatprep.subr.bf16.mxu0 0
    %2537 = vmatpush2.bf16.xpose.msra.mxu0 0
    %2538 = vmatprep.subr.bf16.mxu0 0
    %2539 = vmatpush2.bf16.xpose.msra.mxu0 0
    %2540 = vmatprep.subr.bf16.mxu0 0
    %2541 = vmatpush2.bf16.xpose.msra.mxu0 0
    %2542 = vmatprep.subr.bf16.mxu0 0
    %2543 = vmatpush2.bf16.xpose.msra.mxu0 0
    %2544 = vmatprep.subr.bf16.mxu0 0
    %2545 = vmatpush2.bf16.xpose.msra.mxu0 0
    %2546 = vmatprep.mubr.bf16.mxu0 0
    %2547 = vmatmul.mubr.bf16.gmra.mxu0 %v2503
    %v2548 = vpop.f32.mrf.mxu0
    %v2549 = vadd.f32 0.0, %v2548
    %v2550 = vpop.f32.mrf.mxu0
    %v2551 = vpop.f32.mrf.mxu0
    %v2552 = vadd.f32 0.0, %v2551
    %v2553 = vpop.f32.mrf.mxu0
    %2554 = vmatprep.mubr.bf16.mxu0 0
    %2555 = vmatmul.mubr.bf16.gmra.mxu0 %v2506
    %v2556 = vpop.f32.mrf.mxu0
    %v2557 = vadd.f32 0.0, %v2556
    %v2558 = vpop.f32.mrf.mxu0
    %v2559 = vpop.f32.mrf.mxu0
    %v2560 = vpop.f32.mrf.mxu0
    %2561 = vdwg.mxu0
    %v2562 = vsel %vm568, %v2549, -inf
    %2563 = vmax.xlane.f32.xlu0 %v2562
    %v2564 = vpop.xlane.xlu0 %2563
    %v2565 = vsel %vm568, %v2552, -inf
    %2566 = vmax.xlane.f32.xlu0 %v2565
    %v2567 = vpop.xlane.xlu0 %2566
    %v2568 = vsel %vm568, %v2557, -inf
    %2569 = vmax.xlane.f32.xlu0 %v2568
    %v2570 = vpop.xlane.xlu0 %2569
    %v2571 = vsub.f32 %v2549, %v2564
    %v2572 = vsub.f32 %v2552, %v2567
    %v2573 = vsub.f32 %v2557, %v2570
    %v2574 = vmul.f32 %v2571, 1.442695
    %v2575 = vpow.pop %v2574
    %v2576 = vmul.f32 %v2572, 1.442695
    %v2577 = vpow.pop %v2576
    %v2578 = vmul.f32 %v2573, 1.442695
    %v2579 = vpow.pop %v2578
    %v2580 = vsel %vm568, %v2575, 0.0
    %2581 = vadd.xlane.f32.xlu0 %v2580
    %v2582 = vpop.xlane.xlu0 %2581
    %v2583 = vsel %vm568, %v2577, 0.0
    %2584 = vadd.xlane.f32.xlu0 %v2583
    %v2585 = vpop.xlane.xlu0 %2584
    %v2586 = vsel %vm568, %v2579, 0.0
    %2587 = vadd.xlane.f32.xlu0 %v2586
    %v2588 = vpop.xlane.xlu0 %2587
    %v2589 = vrcp.pop %v2582
    %v2590 = vrcp.pop %v2585
    %v2591 = vrcp.pop %v2588
    %v2592 = vmul.f32 %v2575, %v2589
    %v2593 = vmul.f32 %v2577, %v2590
    %v2594 = vmul.f32 %v2579, %v2591
    %v2595 = vpack.c.bf16 %v2593, %v2592
    %v2596 = vpack.c.bf16 %v2594, %v2594
    %v2598 = vsel %vm568, %v2595, 0
    %v2601 = vsel %vm568, %v2596, 0
    %v2604 = vand.u32 %v2501, %v611
    %2606 = vmatprep.subr.bf16.mxu0 0
    %2607 = vmatpush1.bf16.msra.mxu0 0
    %2608 = vmatprep.subr.bf16.mxu0 0
    %2609 = vmatpush1.bf16.msra.mxu0 0
    %2610 = vmatprep.subr.bf16.mxu0 0
    %2611 = vmatpush1.bf16.msra.mxu0 0
    %2612 = vmatprep.subr.bf16.mxu0 0
    %2613 = vmatpush1.bf16.msra.mxu0 0
    %2614 = vmatprep.subr.bf16.mxu0 0
    %2615 = vmatpush1.bf16.msra.mxu0 0
    %2616 = vmatprep.subr.bf16.mxu0 0
    %2617 = vmatpush1.bf16.msra.mxu0 0
    %2618 = vmatprep.subr.bf16.mxu0 0
    %2619 = vmatpush1.bf16.msra.mxu0 %v2604
    %2620 = vmatprep.subr.bf16.mxu0 0
    %2621 = vmatpush1.bf16.msra.mxu0 %v2500
    %2622 = vmatprep.subr.bf16.mxu0 0
    %2623 = vmatpush2.bf16.msra.mxu0 0
    %2624 = vmatprep.subr.bf16.mxu0 0
    %2625 = vmatpush2.bf16.msra.mxu0 0
    %2626 = vmatprep.subr.bf16.mxu0 0
    %2627 = vmatpush2.bf16.msra.mxu0 0
    %2628 = vmatprep.subr.bf16.mxu0 0
    %2629 = vmatpush2.bf16.msra.mxu0 0
    %2630 = vmatprep.subr.bf16.mxu0 0
    %2631 = vmatpush2.bf16.msra.mxu0 0
    %2632 = vmatprep.subr.bf16.mxu0 0
    %2633 = vmatpush2.bf16.msra.mxu0 0
    %2634 = vmatprep.subr.bf16.mxu0 0
    %2635 = vmatpush2.bf16.msra.mxu0 0
    %2636 = vmatprep.subr.bf16.mxu0 0
    %2637 = vmatpush2.bf16.msra.mxu0 0
    %2638 = vmatprep.mubr.bf16.mxu0 0
    %2639 = vmatmul.mubr.bf16.gmra.mxu0 %v2598
    %v2640 = vpop.f32.mrf.mxu0
    %v2641 = vadd.f32 0.0, %v2640
    %v2642 = vpop.f32.mrf.mxu0
    %v2643 = vpop.f32.mrf.mxu0
    %v2644 = vadd.f32 0.0, %v2643
    %v2645 = vpop.f32.mrf.mxu0
    %2646 = vmatprep.mubr.bf16.mxu0 0
    %2647 = vmatmul.mubr.bf16.gmra.mxu0 %v2601
    %v2648 = vpop.f32.mrf.mxu0
    %v2649 = vadd.f32 0.0, %v2648
    %v2650 = vpop.f32.mrf.mxu0
    %v2651 = vpop.f32.mrf.mxu0
    %v2652 = vpop.f32.mrf.mxu0
    %2653 = vdwg.mxu0
    %v2654 = vpack.c.bf16 %v2644, %v2641
    %v2655 = vpack.c.bf16 %v2649, %v2649
    %s2656 = scalar_lea.vmem %s5, 112
    %v2657 = vld [vmem:[%s2656] sm:$0xf]
    %v2658 = vld [vmem:[%s2656 + $0x4] sm:$0xf]
    %v2659 = vld [vmem:[%s2656 + $0x8] sm:$0xf]
    %v2660 = vld [vmem:[%s2656 + $0xc] sm:$0xf]
    %v2665 = vunpack.c.l.b16 %v2657
    %v2666 = vunpack.c.l.b16 %v2658
    %v2667 = vunpack.c.l.b16 %v2659
    %v2668 = vunpack.c.l.b16 %v2660
    %v2669 = vpack.c.b16 %v2666, %v2665
    %v2670 = vpack.c.b16 %v2668, %v2667
    %2674 = vrot.lane.b32.xlu0 %v2098, 112
    %v2675 = vpop.permute.xlu0 %2674
    %2677 = vmatprep.subr.bf16.mxu0 0
    %2678 = vmatpush1.bf16.msra.mxu0 0
    %2679 = vmatprep.subr.bf16.mxu0 0
    %2680 = vmatpush1.bf16.msra.mxu0 0
    %2681 = vmatprep.subr.bf16.mxu0 0
    %2682 = vmatpush1.bf16.msra.mxu0 0
    %2683 = vmatprep.subr.bf16.mxu0 0
    %2684 = vmatpush1.bf16.msra.mxu0 0
    %2685 = vmatprep.subr.bf16.mxu0 0
    %2686 = vmatpush1.bf16.msra.mxu0 0
    %2687 = vmatprep.subr.bf16.mxu0 0
    %2688 = vmatpush1.bf16.msra.mxu0 0
    %2689 = vmatprep.subr.bf16.mxu0 0
    %2690 = vmatpush1.bf16.msra.mxu0 %v2670
    %2691 = vmatprep.subr.bf16.mxu0 0
    %2692 = vmatpush1.bf16.msra.mxu0 %v2669
    %2693 = vmatprep.subr.bf16.mxu0 0
    %2694 = vmatpush2.bf16.msra.mxu0 0
    %2695 = vmatprep.subr.bf16.mxu0 0
    %2696 = vmatpush2.bf16.msra.mxu0 0
    %2697 = vmatprep.subr.bf16.mxu0 0
    %2698 = vmatpush2.bf16.msra.mxu0 0
    %2699 = vmatprep.subr.bf16.mxu0 0
    %2700 = vmatpush2.bf16.msra.mxu0 0
    %2701 = vmatprep.subr.bf16.mxu0 0
    %2702 = vmatpush2.bf16.msra.mxu0 0
    %2703 = vmatprep.subr.bf16.mxu0 0
    %2704 = vmatpush2.bf16.msra.mxu0 0
    %2705 = vmatprep.subr.bf16.mxu0 0
    %2706 = vmatpush2.bf16.msra.mxu0 0
    %2707 = vmatprep.subr.bf16.mxu0 0
    %2708 = vmatpush2.bf16.msra.mxu0 0
    %2709 = vmatprep.mubr.bf16.mxu0 0
    %2710 = vmatmul.mubr.bf16.gmra.mxu0 %v2112
    %v2711 = vpop.f32.mrf.mxu0
    %v2712 = vadd.f32 %v2675, %v2711
    %v2713 = vpop.f32.mrf.mxu0
    %v2714 = vpop.f32.mrf.mxu0
    %v2715 = vadd.f32 %v2675, %v2714
    %v2716 = vpop.f32.mrf.mxu0
    %2717 = vmatprep.mubr.bf16.mxu0 0
    %2718 = vmatmul.mubr.bf16.gmra.mxu0 %v2115
    %v2719 = vpop.f32.mrf.mxu0
    %v2720 = vadd.f32 %v2675, %v2719
    %v2721 = vpop.f32.mrf.mxu0
    %v2722 = vpop.f32.mrf.mxu0
    %v2723 = vadd.f32 %v2675, %v2722
    %v2724 = vpop.f32.mrf.mxu0
    %2725 = vmatprep.mubr.bf16.mxu0 0
    %2726 = vmatmul.mubr.bf16.gmra.mxu0 %v2118
    %v2727 = vpop.f32.mrf.mxu0
    %v2728 = vadd.f32 %v2675, %v2727
    %v2729 = vpop.f32.mrf.mxu0
    %v2730 = vpop.f32.mrf.mxu0
    %v2731 = vadd.f32 %v2675, %v2730
    %v2732 = vpop.f32.mrf.mxu0
    %2733 = vdwg.mxu0
    %s2734 = scalar_lea.vmem %s5, 144
    %v2735 = vld [vmem:[%s2734] sm:$0xf]
    %v2736 = vld [vmem:[%s2734 + $0x4] sm:$0xf]
    %v2737 = vld [vmem:[%s2734 + $0x8] sm:$0xf]
    %v2738 = vld [vmem:[%s2734 + $0xc] sm:$0xf]
    %v2743 = vunpack.c.l.b16 %v2735
    %v2744 = vunpack.c.l.b16 %v2736
    %v2745 = vunpack.c.l.b16 %v2737
    %v2746 = vunpack.c.l.b16 %v2738
    %v2747 = vpack.c.b16 %v2744, %v2743
    %v2748 = vpack.c.b16 %v2746, %v2745
    %2752 = vrot.lane.b32.xlu0 %v2185, 112
    %v2753 = vpop.permute.xlu0 %2752
    %2755 = vmatprep.subr.bf16.mxu0 0
    %2756 = vmatpush1.bf16.msra.mxu0 0
    %2757 = vmatprep.subr.bf16.mxu0 0
    %2758 = vmatpush1.bf16.msra.mxu0 0
    %2759 = vmatprep.subr.bf16.mxu0 0
    %2760 = vmatpush1.bf16.msra.mxu0 0
    %2761 = vmatprep.subr.bf16.mxu0 0
    %2762 = vmatpush1.bf16.msra.mxu0 0
    %2763 = vmatprep.subr.bf16.mxu0 0
    %2764 = vmatpush1.bf16.msra.mxu0 0
    %2765 = vmatprep.subr.bf16.mxu0 0
    %2766 = vmatpush1.bf16.msra.mxu0 0
    %2767 = vmatprep.subr.bf16.mxu0 0
    %2768 = vmatpush1.bf16.msra.mxu0 %v2748
    %2769 = vmatprep.subr.bf16.mxu0 0
    %2770 = vmatpush1.bf16.msra.mxu0 %v2747
    %2771 = vmatprep.subr.bf16.mxu0 0
    %2772 = vmatpush2.bf16.msra.mxu0 0
    %2773 = vmatprep.subr.bf16.mxu0 0
    %2774 = vmatpush2.bf16.msra.mxu0 0
    %2775 = vmatprep.subr.bf16.mxu0 0
    %2776 = vmatpush2.bf16.msra.mxu0 0
    %2777 = vmatprep.subr.bf16.mxu0 0
    %2778 = vmatpush2.bf16.msra.mxu0 0
    %2779 = vmatprep.subr.bf16.mxu0 0
    %2780 = vmatpush2.bf16.msra.mxu0 0
    %2781 = vmatprep.subr.bf16.mxu0 0
    %2782 = vmatpush2.bf16.msra.mxu0 0
    %2783 = vmatprep.subr.bf16.mxu0 0
    %2784 = vmatpush2.bf16.msra.mxu0 0
    %2785 = vmatprep.subr.bf16.mxu0 0
    %2786 = vmatpush2.bf16.msra.mxu0 0
    %2787 = vmatprep.mubr.bf16.mxu0 0
    %2788 = vmatmul.mubr.bf16.gmra.mxu0 %v2112
    %v2789 = vpop.f32.mrf.mxu0
    %v2790 = vadd.f32 %v2753, %v2789
    %v2791 = vpop.f32.mrf.mxu0
    %v2792 = vpop.f32.mrf.mxu0
    %v2793 = vadd.f32 %v2753, %v2792
    %v2794 = vpop.f32.mrf.mxu0
    %2795 = vmatprep.mubr.bf16.mxu0 0
    %2796 = vmatmul.mubr.bf16.gmra.mxu0 %v2115
    %v2797 = vpop.f32.mrf.mxu0
    %v2798 = vadd.f32 %v2753, %v2797
    %v2799 = vpop.f32.mrf.mxu0
    %v2800 = vpop.f32.mrf.mxu0
    %v2801 = vadd.f32 %v2753, %v2800
    %v2802 = vpop.f32.mrf.mxu0
    %2803 = vmatprep.mubr.bf16.mxu0 0
    %2804 = vmatmul.mubr.bf16.gmra.mxu0 %v2118
    %v2805 = vpop.f32.mrf.mxu0
    %v2806 = vadd.f32 %v2753, %v2805
    %v2807 = vpop.f32.mrf.mxu0
    %v2808 = vpop.f32.mrf.mxu0
    %v2809 = vadd.f32 %v2753, %v2808
    %v2810 = vpop.f32.mrf.mxu0
    %2811 = vdwg.mxu0
    %s2812 = scalar_lea.vmem %s5, 176
    %v2813 = vld [vmem:[%s2812] sm:$0xf]
    %v2814 = vld [vmem:[%s2812 + $0x4] sm:$0xf]
    %v2815 = vld [vmem:[%s2812 + $0x8] sm:$0xf]
    %v2816 = vld [vmem:[%s2812 + $0xc] sm:$0xf]
    %v2821 = vunpack.c.l.b16 %v2813
    %v2822 = vunpack.c.l.b16 %v2814
    %v2823 = vunpack.c.l.b16 %v2815
    %v2824 = vunpack.c.l.b16 %v2816
    %v2825 = vpack.c.b16 %v2822, %v2821
    %v2826 = vpack.c.b16 %v2824, %v2823
    %2830 = vrot.lane.b32.xlu0 %v2263, 112
    %v2831 = vpop.permute.xlu0 %2830
    %2833 = vmatprep.subr.bf16.mxu0 0
    %2834 = vmatpush1.bf16.msra.mxu0 0
    %2835 = vmatprep.subr.bf16.mxu0 0
    %2836 = vmatpush1.bf16.msra.mxu0 0
    %2837 = vmatprep.subr.bf16.mxu0 0
    %2838 = vmatpush1.bf16.msra.mxu0 0
    %2839 = vmatprep.subr.bf16.mxu0 0
    %2840 = vmatpush1.bf16.msra.mxu0 0
    %2841 = vmatprep.subr.bf16.mxu0 0
    %2842 = vmatpush1.bf16.msra.mxu0 0
    %2843 = vmatprep.subr.bf16.mxu0 0
    %2844 = vmatpush1.bf16.msra.mxu0 0
    %2845 = vmatprep.subr.bf16.mxu0 0
    %2846 = vmatpush1.bf16.msra.mxu0 %v2826
    %2847 = vmatprep.subr.bf16.mxu0 0
    %2848 = vmatpush1.bf16.msra.mxu0 %v2825
    %2849 = vmatprep.subr.bf16.mxu0 0
    %2850 = vmatpush2.bf16.msra.mxu0 0
    %2851 = vmatprep.subr.bf16.mxu0 0
    %2852 = vmatpush2.bf16.msra.mxu0 0
    %2853 = vmatprep.subr.bf16.mxu0 0
    %2854 = vmatpush2.bf16.msra.mxu0 0
    %2855 = vmatprep.subr.bf16.mxu0 0
    %2856 = vmatpush2.bf16.msra.mxu0 0
    %2857 = vmatprep.subr.bf16.mxu0 0
    %2858 = vmatpush2.bf16.msra.mxu0 0
    %2859 = vmatprep.subr.bf16.mxu0 0
    %2860 = vmatpush2.bf16.msra.mxu0 0
    %2861 = vmatprep.subr.bf16.mxu0 0
    %2862 = vmatpush2.bf16.msra.mxu0 0
    %2863 = vmatprep.subr.bf16.mxu0 0
    %2864 = vmatpush2.bf16.msra.mxu0 0
    %2865 = vmatprep.mubr.bf16.mxu0 0
    %2866 = vmatmul.mubr.bf16.gmra.mxu0 %v2112
    %v2867 = vpop.f32.mrf.mxu0
    %v2868 = vadd.f32 %v2831, %v2867
    %v2869 = vpop.f32.mrf.mxu0
    %v2870 = vpop.f32.mrf.mxu0
    %v2871 = vadd.f32 %v2831, %v2870
    %v2872 = vpop.f32.mrf.mxu0
    %2873 = vmatprep.mubr.bf16.mxu0 0
    %2874 = vmatmul.mubr.bf16.gmra.mxu0 %v2115
    %v2875 = vpop.f32.mrf.mxu0
    %v2876 = vadd.f32 %v2831, %v2875
    %v2877 = vpop.f32.mrf.mxu0
    %v2878 = vpop.f32.mrf.mxu0
    %v2879 = vadd.f32 %v2831, %v2878
    %v2880 = vpop.f32.mrf.mxu0
    %2881 = vmatprep.mubr.bf16.mxu0 0
    %2882 = vmatmul.mubr.bf16.gmra.mxu0 %v2118
    %v2883 = vpop.f32.mrf.mxu0
    %v2884 = vadd.f32 %v2831, %v2883
    %v2885 = vpop.f32.mrf.mxu0
    %v2886 = vpop.f32.mrf.mxu0
    %v2887 = vadd.f32 %v2831, %v2886
    %v2888 = vpop.f32.mrf.mxu0
    %2889 = vdwg.mxu0
    %s2890 = scalar_lea.vmem %s6, 24
    %v2891 = vld [vmem:[%s2890] sm:$0xf]
    %v2892 = vld [vmem:[%s2890 + $0x4] sm:$0xf]
    %v2893 = vpack.c.bf16 %v2715, %v2712
    %v2894 = vpack.c.bf16 %v2720, %v2720
    %v2895 = vpack.c.bf16 %v2793, %v2790
    %v2896 = vpack.c.bf16 %v2798, %v2798
    %v2897 = vpack.c.bf16 %v2871, %v2868
    %v2898 = vpack.c.bf16 %v2876, %v2876
    %v2900 = vsel %vm507, %v2893, 0
    %v2903 = vsel %vm507, %v2894, 0
    %v2906 = vsel %vm507, %v2895, 0
    %v2909 = vsel %vm507, %v2896, 0
    %2911 = vmatprep.subr.bf16.mxu0 0
    %2912 = vmatpush1.bf16.xpose.msra.mxu0 0
    %2913 = vmatprep.subr.bf16.mxu0 0
    %2914 = vmatpush1.bf16.xpose.msra.mxu0 0
    %2915 = vmatprep.subr.bf16.mxu0 0
    %2916 = vmatpush1.bf16.xpose.msra.mxu0 0
    %2917 = vmatprep.subr.bf16.mxu0 0
    %2918 = vmatpush1.bf16.xpose.msra.mxu0 0
    %2919 = vmatprep.subr.bf16.mxu0 0
    %2920 = vmatpush1.bf16.xpose.msra.mxu0 0
    %2921 = vmatprep.subr.bf16.mxu0 0
    %2922 = vmatpush1.bf16.xpose.msra.mxu0 0
    %2923 = vmatprep.subr.bf16.mxu0 0
    %2924 = vmatpush1.bf16.xpose.msra.mxu0 %v2909
    %2925 = vmatprep.subr.bf16.mxu0 0
    %2926 = vmatpush1.bf16.xpose.msra.mxu0 %v2906
    %2927 = vmatprep.subr.bf16.mxu0 0
    %2928 = vmatpush2.bf16.xpose.msra.mxu0 0
    %2929 = vmatprep.subr.bf16.mxu0 0
    %2930 = vmatpush2.bf16.xpose.msra.mxu0 0
    %2931 = vmatprep.subr.bf16.mxu0 0
    %2932 = vmatpush2.bf16.xpose.msra.mxu0 0
    %2933 = vmatprep.subr.bf16.mxu0 0
    %2934 = vmatpush2.bf16.xpose.msra.mxu0 0
    %2935 = vmatprep.subr.bf16.mxu0 0
    %2936 = vmatpush2.bf16.xpose.msra.mxu0 0
    %2937 = vmatprep.subr.bf16.mxu0 0
    %2938 = vmatpush2.bf16.xpose.msra.mxu0 0
    %2939 = vmatprep.subr.bf16.mxu0 0
    %2940 = vmatpush2.bf16.xpose.msra.mxu0 0
    %2941 = vmatprep.subr.bf16.mxu0 0
    %2942 = vmatpush2.bf16.xpose.msra.mxu0 0
    %2943 = vmatprep.mubr.bf16.mxu0 0
    %2944 = vmatmul.mubr.bf16.gmra.mxu0 %v2900
    %v2945 = vpop.f32.mrf.mxu0
    %v2946 = vadd.f32 0.0, %v2945
    %v2947 = vpop.f32.mrf.mxu0
    %v2948 = vpop.f32.mrf.mxu0
    %v2949 = vadd.f32 0.0, %v2948
    %v2950 = vpop.f32.mrf.mxu0
    %2951 = vmatprep.mubr.bf16.mxu0 0
    %2952 = vmatmul.mubr.bf16.gmra.mxu0 %v2903
    %v2953 = vpop.f32.mrf.mxu0
    %v2954 = vadd.f32 0.0, %v2953
    %v2955 = vpop.f32.mrf.mxu0
    %v2956 = vpop.f32.mrf.mxu0
    %v2957 = vpop.f32.mrf.mxu0
    %2958 = vdwg.mxu0
    %v2959 = vsel %vm568, %v2946, -inf
    %2960 = vmax.xlane.f32.xlu0 %v2959
    %v2961 = vpop.xlane.xlu0 %2960
    %v2962 = vsel %vm568, %v2949, -inf
    %2963 = vmax.xlane.f32.xlu0 %v2962
    %v2964 = vpop.xlane.xlu0 %2963
    %v2965 = vsel %vm568, %v2954, -inf
    %2966 = vmax.xlane.f32.xlu0 %v2965
    %v2967 = vpop.xlane.xlu0 %2966
    %v2968 = vsub.f32 %v2946, %v2961
    %v2969 = vsub.f32 %v2949, %v2964
    %v2970 = vsub.f32 %v2954, %v2967
    %v2971 = vmul.f32 %v2968, 1.442695
    %v2972 = vpow.pop %v2971
    %v2973 = vmul.f32 %v2969, 1.442695
    %v2974 = vpow.pop %v2973
    %v2975 = vmul.f32 %v2970, 1.442695
    %v2976 = vpow.pop %v2975
    %v2977 = vsel %vm568, %v2972, 0.0
    %2978 = vadd.xlane.f32.xlu0 %v2977
    %v2979 = vpop.xlane.xlu0 %2978
    %v2980 = vsel %vm568, %v2974, 0.0
    %2981 = vadd.xlane.f32.xlu0 %v2980
    %v2982 = vpop.xlane.xlu0 %2981
    %v2983 = vsel %vm568, %v2976, 0.0
    %2984 = vadd.xlane.f32.xlu0 %v2983
    %v2985 = vpop.xlane.xlu0 %2984
    %v2986 = vrcp.pop %v2979
    %v2987 = vrcp.pop %v2982
    %v2988 = vrcp.pop %v2985
    %v2989 = vmul.f32 %v2972, %v2986
    %v2990 = vmul.f32 %v2974, %v2987
    %v2991 = vmul.f32 %v2976, %v2988
    %v2992 = vpack.c.bf16 %v2990, %v2989
    %v2993 = vpack.c.bf16 %v2991, %v2991
    %v2995 = vsel %vm568, %v2992, 0
    %v2998 = vsel %vm568, %v2993, 0
    %v3001 = vand.u32 %v2898, %v611
    %3003 = vmatprep.subr.bf16.mxu0 0
    %3004 = vmatpush1.bf16.msra.mxu0 0
    %3005 = vmatprep.subr.bf16.mxu0 0
    %3006 = vmatpush1.bf16.msra.mxu0 0
    %3007 = vmatprep.subr.bf16.mxu0 0
    %3008 = vmatpush1.bf16.msra.mxu0 0
    %3009 = vmatprep.subr.bf16.mxu0 0
    %3010 = vmatpush1.bf16.msra.mxu0 0
    %3011 = vmatprep.subr.bf16.mxu0 0
    %3012 = vmatpush1.bf16.msra.mxu0 0
    %3013 = vmatprep.subr.bf16.mxu0 0
    %3014 = vmatpush1.bf16.msra.mxu0 0
    %3015 = vmatprep.subr.bf16.mxu0 0
    %3016 = vmatpush1.bf16.msra.mxu0 %v3001
    %3017 = vmatprep.subr.bf16.mxu0 0
    %3018 = vmatpush1.bf16.msra.mxu0 %v2897
    %3019 = vmatprep.subr.bf16.mxu0 0
    %3020 = vmatpush2.bf16.msra.mxu0 0
    %3021 = vmatprep.subr.bf16.mxu0 0
    %3022 = vmatpush2.bf16.msra.mxu0 0
    %3023 = vmatprep.subr.bf16.mxu0 0
    %3024 = vmatpush2.bf16.msra.mxu0 0
    %3025 = vmatprep.subr.bf16.mxu0 0
    %3026 = vmatpush2.bf16.msra.mxu0 0
    %3027 = vmatprep.subr.bf16.mxu0 0
    %3028 = vmatpush2.bf16.msra.mxu0 0
    %3029 = vmatprep.subr.bf16.mxu0 0
    %3030 = vmatpush2.bf16.msra.mxu0 0
    %3031 = vmatprep.subr.bf16.mxu0 0
    %3032 = vmatpush2.bf16.msra.mxu0 0
    %3033 = vmatprep.subr.bf16.mxu0 0
    %3034 = vmatpush2.bf16.msra.mxu0 0
    %3035 = vmatprep.mubr.bf16.mxu0 0
    %3036 = vmatmul.mubr.bf16.gmra.mxu0 %v2995
    %v3037 = vpop.f32.mrf.mxu0
    %v3038 = vadd.f32 0.0, %v3037
    %v3039 = vpop.f32.mrf.mxu0
    %v3040 = vpop.f32.mrf.mxu0
    %v3041 = vadd.f32 0.0, %v3040
    %v3042 = vpop.f32.mrf.mxu0
    %3043 = vmatprep.mubr.bf16.mxu0 0
    %3044 = vmatmul.mubr.bf16.gmra.mxu0 %v2998
    %v3045 = vpop.f32.mrf.mxu0
    %v3046 = vadd.f32 0.0, %v3045
    %v3047 = vpop.f32.mrf.mxu0
    %v3048 = vpop.f32.mrf.mxu0
    %v3049 = vpop.f32.mrf.mxu0
    %3050 = vdwg.mxu0
    %v3051 = vpack.c.bf16 %v3041, %v3038
    %v3052 = vpack.c.bf16 %v3046, %v3046
    %v3055 = vunpack.c.l.b16 %v2891
    %v3056 = vunpack.c.l.b16 %v2892
    %v3057 = vpack.c.b16 %v3056, %v3055
    %v3060 = vsel %vm507, %v3051, 0
    %v3063 = vsel %vm507, %v3052, 0
    %3065 = vmatprep.subr.bf16.mxu0 0
    %3066 = vmatpush1.bf16.msra.mxu0 0
    %3067 = vmatprep.subr.bf16.mxu0 0
    %3068 = vmatpush1.bf16.msra.mxu0 0
    %3069 = vmatprep.subr.bf16.mxu0 0
    %3070 = vmatpush1.bf16.msra.mxu0 0
    %3071 = vmatprep.subr.bf16.mxu0 0
    %3072 = vmatpush1.bf16.msra.mxu0 0
    %3073 = vmatprep.subr.bf16.mxu0 0
    %3074 = vmatpush1.bf16.msra.mxu0 0
    %3075 = vmatprep.subr.bf16.mxu0 0
    %3076 = vmatpush1.bf16.msra.mxu0 0
    %3077 = vmatprep.subr.bf16.mxu0 0
    %3078 = vmatpush1.bf16.msra.mxu0 0
    %3079 = vmatprep.subr.bf16.mxu0 0
    %3080 = vmatpush1.bf16.msra.mxu0 %v3057
    %3081 = vmatprep.subr.bf16.mxu0 0
    %3082 = vmatpush2.bf16.msra.mxu0 0
    %3083 = vmatprep.subr.bf16.mxu0 0
    %3084 = vmatpush2.bf16.msra.mxu0 0
    %3085 = vmatprep.subr.bf16.mxu0 0
    %3086 = vmatpush2.bf16.msra.mxu0 0
    %3087 = vmatprep.subr.bf16.mxu0 0
    %3088 = vmatpush2.bf16.msra.mxu0 0
    %3089 = vmatprep.subr.bf16.mxu0 0
    %3090 = vmatpush2.bf16.msra.mxu0 0
    %3091 = vmatprep.subr.bf16.mxu0 0
    %3092 = vmatpush2.bf16.msra.mxu0 0
    %3093 = vmatprep.subr.bf16.mxu0 0
    %3094 = vmatpush2.bf16.msra.mxu0 0
    %3095 = vmatprep.subr.bf16.mxu0 0
    %3096 = vmatpush2.bf16.msra.mxu0 0
    %3097 = vmatprep.mubr.bf16.mxu0 0
    %3098 = vmatmul.mubr.bf16.gmra.mxu0 %v3060
    %v3099 = vpop.f32.mrf.mxu0
    %v3100 = vadd.f32 0.0, %v3099
    %v3101 = vpop.f32.mrf.mxu0
    %v3102 = vpop.f32.mrf.mxu0
    %v3103 = vadd.f32 0.0, %v3102
    %v3104 = vpop.f32.mrf.mxu0
    %3105 = vmatprep.mubr.bf16.mxu0 0
    %3106 = vmatmul.mubr.bf16.gmra.mxu0 %v3063
    %v3107 = vpop.f32.mrf.mxu0
    %v3108 = vadd.f32 0.0, %v3107
    %v3109 = vpop.f32.mrf.mxu0
    %v3110 = vpop.f32.mrf.mxu0
    %v3111 = vpop.f32.mrf.mxu0
    %3112 = vdwg.mxu0
    %v3115 = vunpack.c.l.b16 %v2334
    %v3116 = vunpack.c.l.b16 %v2335
    %v3117 = vpack.c.b16 %v3116, %v3115
    %v3120 = vsel %vm507, %v2494, 0
    %v3123 = vsel %vm507, %v2495, 0
    %3125 = vmatprep.subr.bf16.mxu0 0
    %3126 = vmatpush1.bf16.msra.mxu0 0
    %3127 = vmatprep.subr.bf16.mxu0 0
    %3128 = vmatpush1.bf16.msra.mxu0 0
    %3129 = vmatprep.subr.bf16.mxu0 0
    %3130 = vmatpush1.bf16.msra.mxu0 0
    %3131 = vmatprep.subr.bf16.mxu0 0
    %3132 = vmatpush1.bf16.msra.mxu0 0
    %3133 = vmatprep.subr.bf16.mxu0 0
    %3134 = vmatpush1.bf16.msra.mxu0 0
    %3135 = vmatprep.subr.bf16.mxu0 0
    %3136 = vmatpush1.bf16.msra.mxu0 0
    %3137 = vmatprep.subr.bf16.mxu0 0
    %3138 = vmatpush1.bf16.msra.mxu0 0
    %3139 = vmatprep.subr.bf16.mxu0 0
    %3140 = vmatpush1.bf16.msra.mxu0 %v3117
    %3141 = vmatprep.subr.bf16.mxu0 0
    %3142 = vmatpush2.bf16.msra.mxu0 0
    %3143 = vmatprep.subr.bf16.mxu0 0
    %3144 = vmatpush2.bf16.msra.mxu0 0
    %3145 = vmatprep.subr.bf16.mxu0 0
    %3146 = vmatpush2.bf16.msra.mxu0 0
    %3147 = vmatprep.subr.bf16.mxu0 0
    %3148 = vmatpush2.bf16.msra.mxu0 0
    %3149 = vmatprep.subr.bf16.mxu0 0
    %3150 = vmatpush2.bf16.msra.mxu0 0
    %3151 = vmatprep.subr.bf16.mxu0 0
    %3152 = vmatpush2.bf16.msra.mxu0 0
    %3153 = vmatprep.subr.bf16.mxu0 0
    %3154 = vmatpush2.bf16.msra.mxu0 0
    %3155 = vmatprep.subr.bf16.mxu0 0
    %3156 = vmatpush2.bf16.msra.mxu0 0
    %3157 = vmatprep.mubr.bf16.mxu0 0
    %3158 = vmatmul.mubr.bf16.gmra.mxu0 %v3120
    %v3159 = vpop.f32.mrf.mxu0
    %v3160 = vadd.f32 %v3100, %v3159
    %v3161 = vpop.f32.mrf.mxu0
    %v3162 = vpop.f32.mrf.mxu0
    %v3163 = vadd.f32 %v3103, %v3162
    %v3164 = vpop.f32.mrf.mxu0
    %3165 = vmatprep.mubr.bf16.mxu0 0
    %3166 = vmatmul.mubr.bf16.gmra.mxu0 %v3123
    %v3167 = vpop.f32.mrf.mxu0
    %v3168 = vadd.f32 %v3108, %v3167
    %v3169 = vpop.f32.mrf.mxu0
    %v3170 = vpop.f32.mrf.mxu0
    %v3171 = vpop.f32.mrf.mxu0
    %3172 = vdwg.mxu0
    %v3173 = vpack.c.bf16 %v2728, %v2723
    %v3174 = vpack.c.bf16 %v2731, %v2731
    %v3175 = vpack.c.bf16 %v2806, %v2801
    %v3176 = vpack.c.bf16 %v2809, %v2809
    %v3177 = vpack.c.bf16 %v2884, %v2879
    %v3178 = vpack.c.bf16 %v2887, %v2887
    %v3180 = vsel %vm507, %v3173, 0
    %v3183 = vsel %vm507, %v3174, 0
    %v3186 = vsel %vm507, %v3175, 0
    %v3189 = vsel %vm507, %v3176, 0
    %3191 = vmatprep.subr.bf16.mxu0 0
    %3192 = vmatpush1.bf16.xpose.msra.mxu0 0
    %3193 = vmatprep.subr.bf16.mxu0 0
    %3194 = vmatpush1.bf16.xpose.msra.mxu0 0
    %3195 = vmatprep.subr.bf16.mxu0 0
    %3196 = vmatpush1.bf16.xpose.msra.mxu0 0
    %3197 = vmatprep.subr.bf16.mxu0 0
    %3198 = vmatpush1.bf16.xpose.msra.mxu0 0
    %3199 = vmatprep.subr.bf16.mxu0 0
    %3200 = vmatpush1.bf16.xpose.msra.mxu0 0
    %3201 = vmatprep.subr.bf16.mxu0 0
    %3202 = vmatpush1.bf16.xpose.msra.mxu0 0
    %3203 = vmatprep.subr.bf16.mxu0 0
    %3204 = vmatpush1.bf16.xpose.msra.mxu0 %v3189
    %3205 = vmatprep.subr.bf16.mxu0 0
    %3206 = vmatpush1.bf16.xpose.msra.mxu0 %v3186
    %3207 = vmatprep.subr.bf16.mxu0 0
    %3208 = vmatpush2.bf16.xpose.msra.mxu0 0
    %3209 = vmatprep.subr.bf16.mxu0 0
    %3210 = vmatpush2.bf16.xpose.msra.mxu0 0
    %3211 = vmatprep.subr.bf16.mxu0 0
    %3212 = vmatpush2.bf16.xpose.msra.mxu0 0
    %3213 = vmatprep.subr.bf16.mxu0 0
    %3214 = vmatpush2.bf16.xpose.msra.mxu0 0
    %3215 = vmatprep.subr.bf16.mxu0 0
    %3216 = vmatpush2.bf16.xpose.msra.mxu0 0
    %3217 = vmatprep.subr.bf16.mxu0 0
    %3218 = vmatpush2.bf16.xpose.msra.mxu0 0
    %3219 = vmatprep.subr.bf16.mxu0 0
    %3220 = vmatpush2.bf16.xpose.msra.mxu0 0
    %3221 = vmatprep.subr.bf16.mxu0 0
    %3222 = vmatpush2.bf16.xpose.msra.mxu0 0
    %3223 = vmatprep.mubr.bf16.mxu0 0
    %3224 = vmatmul.mubr.bf16.gmra.mxu0 %v3180
    %v3225 = vpop.f32.mrf.mxu0
    %v3226 = vadd.f32 0.0, %v3225
    %v3227 = vpop.f32.mrf.mxu0
    %v3228 = vpop.f32.mrf.mxu0
    %v3229 = vadd.f32 0.0, %v3228
    %v3230 = vpop.f32.mrf.mxu0
    %3231 = vmatprep.mubr.bf16.mxu0 0
    %3232 = vmatmul.mubr.bf16.gmra.mxu0 %v3183
    %v3233 = vpop.f32.mrf.mxu0
    %v3234 = vadd.f32 0.0, %v3233
    %v3235 = vpop.f32.mrf.mxu0
    %v3236 = vpop.f32.mrf.mxu0
    %v3237 = vpop.f32.mrf.mxu0
    %3238 = vdwg.mxu0
    %v3239 = vsel %vm568, %v3226, -inf
    %3240 = vmax.xlane.f32.xlu0 %v3239
    %v3241 = vpop.xlane.xlu0 %3240
    %v3242 = vsel %vm568, %v3229, -inf
    %3243 = vmax.xlane.f32.xlu0 %v3242
    %v3244 = vpop.xlane.xlu0 %3243
    %v3245 = vsel %vm568, %v3234, -inf
    %3246 = vmax.xlane.f32.xlu0 %v3245
    %v3247 = vpop.xlane.xlu0 %3246
    %v3248 = vsub.f32 %v3226, %v3241
    %v3249 = vsub.f32 %v3229, %v3244
    %v3250 = vsub.f32 %v3234, %v3247
    %v3251 = vmul.f32 %v3248, 1.442695
    %v3252 = vpow.pop %v3251
    %v3253 = vmul.f32 %v3249, 1.442695
    %v3254 = vpow.pop %v3253
    %v3255 = vmul.f32 %v3250, 1.442695
    %v3256 = vpow.pop %v3255
    %v3257 = vsel %vm568, %v3252, 0.0
    %3258 = vadd.xlane.f32.xlu0 %v3257
    %v3259 = vpop.xlane.xlu0 %3258
    %v3260 = vsel %vm568, %v3254, 0.0
    %3261 = vadd.xlane.f32.xlu0 %v3260
    %v3262 = vpop.xlane.xlu0 %3261
    %v3263 = vsel %vm568, %v3256, 0.0
    %3264 = vadd.xlane.f32.xlu0 %v3263
    %v3265 = vpop.xlane.xlu0 %3264
    %v3266 = vrcp.pop %v3259
    %v3267 = vrcp.pop %v3262
    %v3268 = vrcp.pop %v3265
    %v3269 = vmul.f32 %v3252, %v3266
    %v3270 = vmul.f32 %v3254, %v3267
    %v3271 = vmul.f32 %v3256, %v3268
    %v3272 = vpack.c.bf16 %v3270, %v3269
    %v3273 = vpack.c.bf16 %v3271, %v3271
    %v3275 = vsel %vm568, %v3272, 0
    %v3278 = vsel %vm568, %v3273, 0
    %v3281 = vand.u32 %v3178, %v611
    %3283 = vmatprep.subr.bf16.mxu0 0
    %3284 = vmatpush1.bf16.msra.mxu0 0
    %3285 = vmatprep.subr.bf16.mxu0 0
    %3286 = vmatpush1.bf16.msra.mxu0 0
    %3287 = vmatprep.subr.bf16.mxu0 0
    %3288 = vmatpush1.bf16.msra.mxu0 0
    %3289 = vmatprep.subr.bf16.mxu0 0
    %3290 = vmatpush1.bf16.msra.mxu0 0
    %3291 = vmatprep.subr.bf16.mxu0 0
    %3292 = vmatpush1.bf16.msra.mxu0 0
    %3293 = vmatprep.subr.bf16.mxu0 0
    %3294 = vmatpush1.bf16.msra.mxu0 0
    %3295 = vmatprep.subr.bf16.mxu0 0
    %3296 = vmatpush1.bf16.msra.mxu0 %v3281
    %3297 = vmatprep.subr.bf16.mxu0 0
    %3298 = vmatpush1.bf16.msra.mxu0 %v3177
    %3299 = vmatprep.subr.bf16.mxu0 0
    %3300 = vmatpush2.bf16.msra.mxu0 0
    %3301 = vmatprep.subr.bf16.mxu0 0
    %3302 = vmatpush2.bf16.msra.mxu0 0
    %3303 = vmatprep.subr.bf16.mxu0 0
    %3304 = vmatpush2.bf16.msra.mxu0 0
    %3305 = vmatprep.subr.bf16.mxu0 0
    %3306 = vmatpush2.bf16.msra.mxu0 0
    %3307 = vmatprep.subr.bf16.mxu0 0
    %3308 = vmatpush2.bf16.msra.mxu0 0
    %3309 = vmatprep.subr.bf16.mxu0 0
    %3310 = vmatpush2.bf16.msra.mxu0 0
    %3311 = vmatprep.subr.bf16.mxu0 0
    %3312 = vmatpush2.bf16.msra.mxu0 0
    %3313 = vmatprep.subr.bf16.mxu0 0
    %3314 = vmatpush2.bf16.msra.mxu0 0
    %3315 = vmatprep.mubr.bf16.mxu0 0
    %3316 = vmatmul.mubr.bf16.gmra.mxu0 %v3275
    %v3317 = vpop.f32.mrf.mxu0
    %v3318 = vadd.f32 0.0, %v3317
    %v3319 = vpop.f32.mrf.mxu0
    %v3320 = vpop.f32.mrf.mxu0
    %v3321 = vadd.f32 0.0, %v3320
    %v3322 = vpop.f32.mrf.mxu0
    %3323 = vmatprep.mubr.bf16.mxu0 0
    %3324 = vmatmul.mubr.bf16.gmra.mxu0 %v3278
    %v3325 = vpop.f32.mrf.mxu0
    %v3326 = vadd.f32 0.0, %v3325
    %v3327 = vpop.f32.mrf.mxu0
    %v3328 = vpop.f32.mrf.mxu0
    %v3329 = vpop.f32.mrf.mxu0
    %3330 = vdwg.mxu0
    %v3331 = vpack.c.bf16 %v3321, %v3318
    %v3332 = vpack.c.bf16 %v3326, %v3326
    %v3334 = vsel %vm507, %v3331, 0
    %v3337 = vsel %vm507, %v3332, 0
    %3339 = vmatprep.subr.bf16.mxu0 0
    %3340 = vmatpush1.bf16.msra.mxu0 0
    %3341 = vmatprep.subr.bf16.mxu0 0
    %3342 = vmatpush1.bf16.msra.mxu0 0
    %3343 = vmatprep.subr.bf16.mxu0 0
    %3344 = vmatpush1.bf16.msra.mxu0 0
    %3345 = vmatprep.subr.bf16.mxu0 0
    %3346 = vmatpush1.bf16.msra.mxu0 0
    %3347 = vmatprep.subr.bf16.mxu0 0
    %3348 = vmatpush1.bf16.msra.mxu0 0
    %3349 = vmatprep.subr.bf16.mxu0 0
    %3350 = vmatpush1.bf16.msra.mxu0 0
    %3351 = vmatprep.subr.bf16.mxu0 0
    %3352 = vmatpush1.bf16.msra.mxu0 0
    %3353 = vmatprep.subr.bf16.mxu0 0
    %3354 = vmatpush1.bf16.msra.mxu0 %v3057
    %3355 = vmatprep.subr.bf16.mxu0 0
    %3356 = vmatpush2.bf16.msra.mxu0 0
    %3357 = vmatprep.subr.bf16.mxu0 0
    %3358 = vmatpush2.bf16.msra.mxu0 0
    %3359 = vmatprep.subr.bf16.mxu0 0
    %3360 = vmatpush2.bf16.msra.mxu0 0
    %3361 = vmatprep.subr.bf16.mxu0 0
    %3362 = vmatpush2.bf16.msra.mxu0 0
    %3363 = vmatprep.subr.bf16.mxu0 0
    %3364 = vmatpush2.bf16.msra.mxu0 0
    %3365 = vmatprep.subr.bf16.mxu0 0
    %3366 = vmatpush2.bf16.msra.mxu0 0
    %3367 = vmatprep.subr.bf16.mxu0 0
    %3368 = vmatpush2.bf16.msra.mxu0 0
    %3369 = vmatprep.subr.bf16.mxu0 0
    %3370 = vmatpush2.bf16.msra.mxu0 0
    %3371 = vmatprep.mubr.bf16.mxu0 0
    %3372 = vmatmul.mubr.bf16.gmra.mxu0 %v3334
    %v3373 = vpop.f32.mrf.mxu0
    %v3374 = vadd.f32 0.0, %v3373
    %v3375 = vpop.f32.mrf.mxu0
    %v3376 = vpop.f32.mrf.mxu0
    %v3377 = vadd.f32 0.0, %v3376
    %v3378 = vpop.f32.mrf.mxu0
    %3379 = vmatprep.mubr.bf16.mxu0 0
    %3380 = vmatmul.mubr.bf16.gmra.mxu0 %v3337
    %v3381 = vpop.f32.mrf.mxu0
    %v3382 = vadd.f32 0.0, %v3381
    %v3383 = vpop.f32.mrf.mxu0
    %v3384 = vpop.f32.mrf.mxu0
    %v3385 = vpop.f32.mrf.mxu0
    %3386 = vdwg.mxu0
    %v3388 = vsel %vm507, %v2654, 0
    %v3391 = vsel %vm507, %v2655, 0
    %3393 = vmatprep.subr.bf16.mxu0 0
    %3394 = vmatpush1.bf16.msra.mxu0 0
    %3395 = vmatprep.subr.bf16.mxu0 0
    %3396 = vmatpush1.bf16.msra.mxu0 0
    %3397 = vmatprep.subr.bf16.mxu0 0
    %3398 = vmatpush1.bf16.msra.mxu0 0
    %3399 = vmatprep.subr.bf16.mxu0 0
    %3400 = vmatpush1.bf16.msra.mxu0 0
    %3401 = vmatprep.subr.bf16.mxu0 0
    %3402 = vmatpush1.bf16.msra.mxu0 0
    %3403 = vmatprep.subr.bf16.mxu0 0
    %3404 = vmatpush1.bf16.msra.mxu0 0
    %3405 = vmatprep.subr.bf16.mxu0 0
    %3406 = vmatpush1.bf16.msra.mxu0 0
    %3407 = vmatprep.subr.bf16.mxu0 0
    %3408 = vmatpush1.bf16.msra.mxu0 %v3117
    %3409 = vmatprep.subr.bf16.mxu0 0
    %3410 = vmatpush2.bf16.msra.mxu0 0
    %3411 = vmatprep.subr.bf16.mxu0 0
    %3412 = vmatpush2.bf16.msra.mxu0 0
    %3413 = vmatprep.subr.bf16.mxu0 0
    %3414 = vmatpush2.bf16.msra.mxu0 0
    %3415 = vmatprep.subr.bf16.mxu0 0
    %3416 = vmatpush2.bf16.msra.mxu0 0
    %3417 = vmatprep.subr.bf16.mxu0 0
    %3418 = vmatpush2.bf16.msra.mxu0 0
    %3419 = vmatprep.subr.bf16.mxu0 0
    %3420 = vmatpush2.bf16.msra.mxu0 0
    %3421 = vmatprep.subr.bf16.mxu0 0
    %3422 = vmatpush2.bf16.msra.mxu0 0
    %3423 = vmatprep.subr.bf16.mxu0 0
    %3424 = vmatpush2.bf16.msra.mxu0 0
    %3425 = vmatprep.mubr.bf16.mxu0 0
    %3426 = vmatmul.mubr.bf16.gmra.mxu0 %v3388
    %v3427 = vpop.f32.mrf.mxu0
    %v3428 = vadd.f32 %v3374, %v3427
    %v3429 = vpop.f32.mrf.mxu0
    %v3430 = vpop.f32.mrf.mxu0
    %v3431 = vadd.f32 %v3377, %v3430
    %v3432 = vpop.f32.mrf.mxu0
    %3433 = vmatprep.mubr.bf16.mxu0 0
    %3434 = vmatmul.mubr.bf16.gmra.mxu0 %v3391
    %v3435 = vpop.f32.mrf.mxu0
    %v3436 = vadd.f32 %v3382, %v3435
    %v3437 = vpop.f32.mrf.mxu0
    %v3438 = vpop.f32.mrf.mxu0
    %v3439 = vpop.f32.mrf.mxu0
    %3440 = vdwg.mxu0
    %v3441 = vlaneseq
    %v3442 = vshrl.u32 %v3441, 7
    %v3443 = vsub.s32 0, %v3442
    %v3444 = vrot.slane %v1984, %v3443
    %v3445 = vadd.f32 %v3160, %v3444
    %v3446 = vadd.f32 %v3163, %v3444
    %v3447 = vadd.f32 %v3168, %v3444
    %v3448 = vadd.f32 %v3428, %v3444
    %v3449 = vadd.f32 %v3431, %v3444
    %v3450 = vadd.f32 %v3436, %v3444
    %v3451 = vadd.f32 %v1972, %v3445
    %v3452 = vadd.f32 %v1973, %v3446
    %v3453 = vadd.f32 %v1974, %v3447
    %v3454 = vadd.f32 %v1975, %v3448
    %v3455 = vadd.f32 %v1976, %v3449
    %v3456 = vadd.f32 %v1977, %v3450
    %v3457 = vsel %vm169, %v3451, 0.0
    %3458 = vadd.xlane.f32.xlu0 %v3457
    %v3459 = vpop.xlane.xlu0 %3458
    %v3460 = vsel %vm169, %v3452, 0.0
    %3461 = vadd.xlane.f32.xlu0 %v3460
    %v3462 = vpop.xlane.xlu0 %3461
    %v3463 = vsel %vm169, %v3453, 0.0
    %3464 = vadd.xlane.f32.xlu0 %v3463
    %v3465 = vpop.xlane.xlu0 %3464
    %v3466 = vsel %vm169, %v3454, 0.0
    %3467 = vadd.xlane.f32.xlu0 %v3466
    %v3468 = vpop.xlane.xlu0 %3467
    %v3469 = vsel %vm169, %v3455, 0.0
    %3470 = vadd.xlane.f32.xlu0 %v3469
    %v3471 = vpop.xlane.xlu0 %3470
    %v3472 = vsel %vm169, %v3456, 0.0
    %3473 = vadd.xlane.f32.xlu0 %v3472
    %v3474 = vpop.xlane.xlu0 %3473
    %v3475 = vmul.f32 %v3459, %v185
    %v3476 = vmul.f32 %v3462, %v185
    %v3477 = vmul.f32 %v3465, %v185
    %v3478 = vmul.f32 %v3468, %v185
    %v3479 = vmul.f32 %v3471, %v185
    %v3480 = vmul.f32 %v3474, %v185
    %v3481 = vsub.f32 %v3451, %v3475
    %v3482 = vsub.f32 %v3452, %v3476
    %v3483 = vsub.f32 %v3453, %v3477
    %v3484 = vsub.f32 %v3454, %v3478
    %v3485 = vsub.f32 %v3455, %v3479
    %v3486 = vsub.f32 %v3456, %v3480
    %v3487 = vmul.f32 %v3481, %v3481
    %v3488 = vmul.f32 %v3482, %v3482
    %v3489 = vmul.f32 %v3483, %v3483
    %v3490 = vmul.f32 %v3484, %v3484
    %v3491 = vmul.f32 %v3485, %v3485
    %v3492 = vmul.f32 %v3486, %v3486
    %v3493 = vsel %vm169, %v3487, 0.0
    %3494 = vadd.xlane.f32.xlu0 %v3493
    %v3495 = vpop.xlane.xlu0 %3494
    %v3496 = vsel %vm169, %v3488, 0.0
    %3497 = vadd.xlane.f32.xlu0 %v3496
    %v3498 = vpop.xlane.xlu0 %3497
    %v3499 = vsel %vm169, %v3489, 0.0
    %3500 = vadd.xlane.f32.xlu0 %v3499
    %v3501 = vpop.xlane.xlu0 %3500
    %v3502 = vsel %vm169, %v3490, 0.0
    %3503 = vadd.xlane.f32.xlu0 %v3502
    %v3504 = vpop.xlane.xlu0 %3503
    %v3505 = vsel %vm169, %v3491, 0.0
    %3506 = vadd.xlane.f32.xlu0 %v3505
    %v3507 = vpop.xlane.xlu0 %3506
    %v3508 = vsel %vm169, %v3492, 0.0
    %3509 = vadd.xlane.f32.xlu0 %v3508
    %v3510 = vpop.xlane.xlu0 %3509
    %v3511 = vmul.f32 %v3495, %v185
    %v3512 = vmul.f32 %v3498, %v185
    %v3513 = vmul.f32 %v3501, %v185
    %v3514 = vmul.f32 %v3504, %v185
    %v3515 = vmul.f32 %v3507, %v185
    %v3516 = vmul.f32 %v3510, %v185
    %v3517 = vadd.f32 %v3511, 1e-06
    %v3518 = vadd.f32 %v3512, 1e-06
    %v3519 = vadd.f32 %v3513, 1e-06
    %v3520 = vadd.f32 %v3514, 1e-06
    %v3521 = vadd.f32 %v3515, 1e-06
    %v3522 = vadd.f32 %v3516, 1e-06
    %v3523 = vrsqrt.pop %v3517
    %v3524 = vrsqrt.pop %v3518
    %v3525 = vrsqrt.pop %v3519
    %v3526 = vrsqrt.pop %v3520
    %v3527 = vrsqrt.pop %v3521
    %v3528 = vrsqrt.pop %v3522
    %v3529 = vmul.f32 %v3481, %v3523
    %v3530 = vmul.f32 %v3482, %v3524
    %v3531 = vmul.f32 %v3483, %v3525
    %v3532 = vmul.f32 %v3484, %v3526
    %v3533 = vmul.f32 %v3485, %v3527
    %v3534 = vmul.f32 %v3486, %v3528
    %v3535 = vlaneseq
    %v3536 = vshrl.u32 %v3535, 7
    %v3537 = vsub.s32 0, %v3536
    %v3538 = vrot.slane %v1985, %v3537
    %v3539 = vmul.f32 %v3529, %v3538
    %v3540 = vmul.f32 %v3530, %v3538
    %v3541 = vmul.f32 %v3531, %v3538
    %v3542 = vmul.f32 %v3532, %v3538
    %v3543 = vmul.f32 %v3533, %v3538
    %v3544 = vmul.f32 %v3534, %v3538
    %v3545 = vlaneseq
    %v3546 = vshrl.u32 %v3545, 7
    %v3547 = vsub.s32 0, %v3546
    %v3548 = vrot.slane %v1986, %v3547
    %v3549 = vadd.f32 %v3539, %v3548
    %v3550 = vadd.f32 %v3540, %v3548
    %v3551 = vadd.f32 %v3541, %v3548
    %v3552 = vadd.f32 %v3542, %v3548
    %v3553 = vadd.f32 %v3543, %v3548
    %v3554 = vadd.f32 %v3544, %v3548
    %v3555 = vpack.c.bf16 %v3550, %v3549
    %v3556 = vpack.c.bf16 %v3552, %v3551
    %v3557 = vpack.c.bf16 %v3554, %v3553
    %s3558 = scalar_lea.vmem %s7, 16
    %v3559 = vld [vmem:[%s3558] sm:$0xf]
    %v3560 = vld [vmem:[%s3558 + $0x4] sm:$0xf]
    %v3561 = vld [vmem:[%s3558 + $0x8] sm:$0xf]
    %v3562 = vld [vmem:[%s3558 + $0xc] sm:$0xf]
    %v3563 = vlaneseq
    %v3564 = vshrl.u32 %v3563, 7
    %v3565 = vsub.s32 0, %v3564
    %v3566 = vrot.slane %v1988, %v3565
    %v3571 = vunpack.c.l.b16 %v3559
    %v3572 = vunpack.c.l.b16 %v3560
    %v3573 = vunpack.c.l.b16 %v3561
    %v3574 = vunpack.c.l.b16 %v3562
    %v3575 = vpack.c.b16 %v3572, %v3571
    %v3576 = vpack.c.b16 %v3574, %v3573
    %v3580 = vsel %vm169, %v3555, 0
    %v3583 = vsel %vm169, %v3556, 0
    %v3586 = vsel %vm169, %v3557, 0
    %3588 = vmatprep.subr.bf16.mxu0 0
    %3589 = vmatpush1.bf16.msra.mxu0 0
    %3590 = vmatprep.subr.bf16.mxu0 0
    %3591 = vmatpush1.bf16.msra.mxu0 0
    %3592 = vmatprep.subr.bf16.mxu0 0
    %3593 = vmatpush1.bf16.msra.mxu0 0
    %3594 = vmatprep.subr.bf16.mxu0 0
    %3595 = vmatpush1.bf16.msra.mxu0 0
    %3596 = vmatprep.subr.bf16.mxu0 0
    %3597 = vmatpush1.bf16.msra.mxu0 0
    %3598 = vmatprep.subr.bf16.mxu0 0
    %3599 = vmatpush1.bf16.msra.mxu0 0
    %3600 = vmatprep.subr.bf16.mxu0 0
    %3601 = vmatpush1.bf16.msra.mxu0 %v3576
    %3602 = vmatprep.subr.bf16.mxu0 0
    %3603 = vmatpush1.bf16.msra.mxu0 %v3575
    %3604 = vmatprep.subr.bf16.mxu0 0
    %3605 = vmatpush2.bf16.msra.mxu0 0
    %3606 = vmatprep.subr.bf16.mxu0 0
    %3607 = vmatpush2.bf16.msra.mxu0 0
    %3608 = vmatprep.subr.bf16.mxu0 0
    %3609 = vmatpush2.bf16.msra.mxu0 0
    %3610 = vmatprep.subr.bf16.mxu0 0
    %3611 = vmatpush2.bf16.msra.mxu0 0
    %3612 = vmatprep.subr.bf16.mxu0 0
    %3613 = vmatpush2.bf16.msra.mxu0 0
    %3614 = vmatprep.subr.bf16.mxu0 0
    %3615 = vmatpush2.bf16.msra.mxu0 0
    %3616 = vmatprep.subr.bf16.mxu0 0
    %3617 = vmatpush2.bf16.msra.mxu0 0
    %3618 = vmatprep.subr.bf16.mxu0 0
    %3619 = vmatpush2.bf16.msra.mxu0 0
    %3620 = vmatprep.mubr.bf16.mxu0 0
    %3621 = vmatmul.mubr.bf16.gmra.mxu0 %v3580
    %v3622 = vpop.f32.mrf.mxu0
    %v3623 = vadd.f32 %v3566, %v3622
    %v3624 = vpop.f32.mrf.mxu0
    %v3625 = vpop.f32.mrf.mxu0
    %v3626 = vadd.f32 %v3566, %v3625
    %v3627 = vpop.f32.mrf.mxu0
    %3628 = vmatprep.mubr.bf16.mxu0 0
    %3629 = vmatmul.mubr.bf16.gmra.mxu0 %v3583
    %v3630 = vpop.f32.mrf.mxu0
    %v3631 = vadd.f32 %v3566, %v3630
    %v3632 = vpop.f32.mrf.mxu0
    %v3633 = vpop.f32.mrf.mxu0
    %v3634 = vadd.f32 %v3566, %v3633
    %v3635 = vpop.f32.mrf.mxu0
    %3636 = vmatprep.mubr.bf16.mxu0 0
    %3637 = vmatmul.mubr.bf16.gmra.mxu0 %v3586
    %v3638 = vpop.f32.mrf.mxu0
    %v3639 = vadd.f32 %v3566, %v3638
    %v3640 = vpop.f32.mrf.mxu0
    %v3641 = vpop.f32.mrf.mxu0
    %v3642 = vadd.f32 %v3566, %v3641
    %v3643 = vpop.f32.mrf.mxu0
    %3644 = vdwg.mxu0
    %v3645 = vmul.f32 %v3623, %v3623
    %v3646 = vmul.f32 %v3626, %v3626
    %v3647 = vmul.f32 %v3631, %v3631
    %v3648 = vmul.f32 %v3634, %v3634
    %v3649 = vmul.f32 %v3639, %v3639
    %v3650 = vmul.f32 %v3642, %v3642
    %v3651 = vmul.f32 %v3623, %v3645
    %v3652 = vmul.f32 %v3626, %v3646
    %v3653 = vmul.f32 %v3631, %v3647
    %v3654 = vmul.f32 %v3634, %v3648
    %v3655 = vmul.f32 %v3639, %v3649
    %v3656 = vmul.f32 %v3642, %v3650
    %v3657 = vmul.f32 %v3651, 0.044715
    %v3658 = vmul.f32 %v3652, 0.044715
    %v3659 = vmul.f32 %v3653, 0.044715
    %v3660 = vmul.f32 %v3654, 0.044715
    %v3661 = vmul.f32 %v3655, 0.044715
    %v3662 = vmul.f32 %v3656, 0.044715
    %v3663 = vadd.f32 %v3623, %v3657
    %v3664 = vadd.f32 %v3626, %v3658
    %v3665 = vadd.f32 %v3631, %v3659
    %v3666 = vadd.f32 %v3634, %v3660
    %v3667 = vadd.f32 %v3639, %v3661
    %v3668 = vadd.f32 %v3642, %v3662
    %v3669 = vmul.f32 %v3663, 0.7978846
    %v3670 = vmul.f32 %v3664, 0.7978846
    %v3671 = vmul.f32 %v3665, 0.7978846
    %v3672 = vmul.f32 %v3666, 0.7978846
    %v3673 = vmul.f32 %v3667, 0.7978846
    %v3674 = vmul.f32 %v3668, 0.7978846
    %v3675 = vtanh.pop %v3669
    %v3676 = vtanh.pop %v3670
    %v3677 = vtanh.pop %v3671
    %v3678 = vtanh.pop %v3672
    %v3679 = vtanh.pop %v3673
    %v3680 = vtanh.pop %v3674
    %v3681 = vadd.f32 %v3675, 1.0
    %v3682 = vadd.f32 %v3676, 1.0
    %v3683 = vadd.f32 %v3677, 1.0
    %v3684 = vadd.f32 %v3678, 1.0
    %v3685 = vadd.f32 %v3679, 1.0
    %v3686 = vadd.f32 %v3680, 1.0
    %v3687 = vmul.f32 %v3681, 0.5
    %v3688 = vmul.f32 %v3682, 0.5
    %v3689 = vmul.f32 %v3683, 0.5
    %v3690 = vmul.f32 %v3684, 0.5
    %v3691 = vmul.f32 %v3685, 0.5
    %v3692 = vmul.f32 %v3686, 0.5
    %v3693 = vmul.f32 %v3623, %v3687
    %v3694 = vmul.f32 %v3626, %v3688
    %v3695 = vmul.f32 %v3631, %v3689
    %v3696 = vmul.f32 %v3634, %v3690
    %v3697 = vmul.f32 %v3639, %v3691
    %v3698 = vmul.f32 %v3642, %v3692
    %v3699 = vpack.c.bf16 %v3694, %v3693
    %v3700 = vpack.c.bf16 %v3696, %v3695
    %v3701 = vpack.c.bf16 %v3698, %v3697
    %s3702 = scalar_lea.vmem %s8, 32
    %v3703 = vld [vmem:[%s3702] sm:$0xf]
    %v3704 = vld [vmem:[%s3702 + $0x4] sm:$0xf]
    %v3705 = vld [vmem:[%s3702 + $0x8] sm:$0xf]
    %v3706 = vld [vmem:[%s3702 + $0xc] sm:$0xf]
    %v3707 = vld [vmem:[%s3702 + $0x10] sm:$0xf]
    %v3708 = vld [vmem:[%s3702 + $0x14] sm:$0xf]
    %v3709 = vld [vmem:[%s3702 + $0x18] sm:$0xf]
    %v3710 = vld [vmem:[%s3702 + $0x1c] sm:$0xf]
    %v3711 = vlaneseq
    %v3712 = vshrl.u32 %v3711, 7
    %v3713 = vsub.s32 0, %v3712
    %v3714 = vrot.slane %v1987, %v3713
    %v3723 = vunpack.c.l.b16 %v3703
    %v3724 = vunpack.c.l.b16 %v3704
    %v3725 = vunpack.c.l.b16 %v3705
    %v3726 = vunpack.c.l.b16 %v3706
    %v3727 = vunpack.c.l.b16 %v3707
    %v3728 = vunpack.c.l.b16 %v3708
    %v3729 = vunpack.c.l.b16 %v3709
    %v3730 = vunpack.c.l.b16 %v3710
    %v3731 = vpack.c.b16 %v3724, %v3723
    %v3732 = vpack.c.b16 %v3726, %v3725
    %v3733 = vpack.c.b16 %v3728, %v3727
    %v3734 = vpack.c.b16 %v3730, %v3729
    %v3740 = vsel %vm94, %v3699, 0
    %v3743 = vsel %vm94, %v3700, 0
    %v3746 = vsel %vm94, %v3701, 0
    %3748 = vmatprep.subr.bf16.mxu0 0
    %3749 = vmatpush1.bf16.msra.mxu0 0
    %3750 = vmatprep.subr.bf16.mxu0 0
    %3751 = vmatpush1.bf16.msra.mxu0 0
    %3752 = vmatprep.subr.bf16.mxu0 0
    %3753 = vmatpush1.bf16.msra.mxu0 0
    %3754 = vmatprep.subr.bf16.mxu0 0
    %3755 = vmatpush1.bf16.msra.mxu0 0
    %3756 = vmatprep.subr.bf16.mxu0 0
    %3757 = vmatpush1.bf16.msra.mxu0 %v3734
    %3758 = vmatprep.subr.bf16.mxu0 0
    %3759 = vmatpush1.bf16.msra.mxu0 %v3733
    %3760 = vmatprep.subr.bf16.mxu0 0
    %3761 = vmatpush1.bf16.msra.mxu0 %v3732
    %3762 = vmatprep.subr.bf16.mxu0 0
    %3763 = vmatpush1.bf16.msra.mxu0 %v3731
    %3764 = vmatprep.subr.bf16.mxu0 0
    %3765 = vmatpush2.bf16.msra.mxu0 0
    %3766 = vmatprep.subr.bf16.mxu0 0
    %3767 = vmatpush2.bf16.msra.mxu0 0
    %3768 = vmatprep.subr.bf16.mxu0 0
    %3769 = vmatpush2.bf16.msra.mxu0 0
    %3770 = vmatprep.subr.bf16.mxu0 0
    %3771 = vmatpush2.bf16.msra.mxu0 0
    %3772 = vmatprep.subr.bf16.mxu0 0
    %3773 = vmatpush2.bf16.msra.mxu0 0
    %3774 = vmatprep.subr.bf16.mxu0 0
    %3775 = vmatpush2.bf16.msra.mxu0 0
    %3776 = vmatprep.subr.bf16.mxu0 0
    %3777 = vmatpush2.bf16.msra.mxu0 0
    %3778 = vmatprep.subr.bf16.mxu0 0
    %3779 = vmatpush2.bf16.msra.mxu0 0
    %3780 = vmatprep.mubr.bf16.mxu0 0
    %3781 = vmatmul.mubr.bf16.gmra.mxu0 %v3740
    %v3782 = vpop.f32.mrf.mxu0
    %v3783 = vadd.f32 %v3714, %v3782
    %v3784 = vpop.f32.mrf.mxu0
    %v3785 = vpop.f32.mrf.mxu0
    %v3786 = vadd.f32 %v3714, %v3785
    %v3787 = vpop.f32.mrf.mxu0
    %3788 = vmatprep.mubr.bf16.mxu0 0
    %3789 = vmatmul.mubr.bf16.gmra.mxu0 %v3743
    %v3790 = vpop.f32.mrf.mxu0
    %v3791 = vadd.f32 %v3714, %v3790
    %v3792 = vpop.f32.mrf.mxu0
    %v3793 = vpop.f32.mrf.mxu0
    %v3794 = vadd.f32 %v3714, %v3793
    %v3795 = vpop.f32.mrf.mxu0
    %3796 = vmatprep.mubr.bf16.mxu0 0
    %3797 = vmatmul.mubr.bf16.gmra.mxu0 %v3746
    %v3798 = vpop.f32.mrf.mxu0
    %v3799 = vadd.f32 %v3714, %v3798
    %v3800 = vpop.f32.mrf.mxu0
    %v3801 = vpop.f32.mrf.mxu0
    %v3802 = vadd.f32 %v3714, %v3801
    %v3803 = vpop.f32.mrf.mxu0
    %3804 = vdwg.mxu0
    %v3805 = vadd.f32 %v3451, %v3783
    %v3806 = vadd.f32 %v3452, %v3786
    %v3807 = vadd.f32 %v3453, %v3791
    %v3808 = vadd.f32 %v3454, %v3794
    %v3809 = vadd.f32 %v3455, %v3799
    %v3810 = vadd.f32 %v3456, %v3802
    %v3811 = vld [vmem:[%s10] sm:$0x1]
    %v3812 = vld [vmem:[%s10 + $0x1] sm:$0x1]
    %v3813 = vsel %vm169, %v3805, 0.0
    %3814 = vadd.xlane.f32.xlu0 %v3813
    %v3815 = vpop.xlane.xlu0 %3814
    %v3816 = vsel %vm169, %v3806, 0.0
    %3817 = vadd.xlane.f32.xlu0 %v3816
    %v3818 = vpop.xlane.xlu0 %3817
    %v3819 = vsel %vm169, %v3807, 0.0
    %3820 = vadd.xlane.f32.xlu0 %v3819
    %v3821 = vpop.xlane.xlu0 %3820
    %v3822 = vsel %vm169, %v3808, 0.0
    %3823 = vadd.xlane.f32.xlu0 %v3822
    %v3824 = vpop.xlane.xlu0 %3823
    %v3825 = vsel %vm169, %v3809, 0.0
    %3826 = vadd.xlane.f32.xlu0 %v3825
    %v3827 = vpop.xlane.xlu0 %3826
    %v3828 = vsel %vm169, %v3810, 0.0
    %3829 = vadd.xlane.f32.xlu0 %v3828
    %v3830 = vpop.xlane.xlu0 %3829
    %v3831 = vmul.f32 %v3815, %v185
    %v3832 = vmul.f32 %v3818, %v185
    %v3833 = vmul.f32 %v3821, %v185
    %v3834 = vmul.f32 %v3824, %v185
    %v3835 = vmul.f32 %v3827, %v185
    %v3836 = vmul.f32 %v3830, %v185
    %v3837 = vsub.f32 %v3805, %v3831
    %v3838 = vsub.f32 %v3806, %v3832
    %v3839 = vsub.f32 %v3807, %v3833
    %v3840 = vsub.f32 %v3808, %v3834
    %v3841 = vsub.f32 %v3809, %v3835
    %v3842 = vsub.f32 %v3810, %v3836
    %v3843 = vmul.f32 %v3837, %v3837
    %v3844 = vmul.f32 %v3838, %v3838
    %v3845 = vmul.f32 %v3839, %v3839
    %v3846 = vmul.f32 %v3840, %v3840
    %v3847 = vmul.f32 %v3841, %v3841
    %v3848 = vmul.f32 %v3842, %v3842
    %v3849 = vsel %vm169, %v3843, 0.0
    %3850 = vadd.xlane.f32.xlu0 %v3849
    %v3851 = vpop.xlane.xlu0 %3850
    %v3852 = vsel %vm169, %v3844, 0.0
    %3853 = vadd.xlane.f32.xlu0 %v3852
    %v3854 = vpop.xlane.xlu0 %3853
    %v3855 = vsel %vm169, %v3845, 0.0
    %3856 = vadd.xlane.f32.xlu0 %v3855
    %v3857 = vpop.xlane.xlu0 %3856
    %v3858 = vsel %vm169, %v3846, 0.0
    %3859 = vadd.xlane.f32.xlu0 %v3858
    %v3860 = vpop.xlane.xlu0 %3859
    %v3861 = vsel %vm169, %v3847, 0.0
    %3862 = vadd.xlane.f32.xlu0 %v3861
    %v3863 = vpop.xlane.xlu0 %3862
    %v3864 = vsel %vm169, %v3848, 0.0
    %3865 = vadd.xlane.f32.xlu0 %v3864
    %v3866 = vpop.xlane.xlu0 %3865
    %v3867 = vmul.f32 %v3851, %v185
    %v3868 = vmul.f32 %v3854, %v185
    %v3869 = vmul.f32 %v3857, %v185
    %v3870 = vmul.f32 %v3860, %v185
    %v3871 = vmul.f32 %v3863, %v185
    %v3872 = vmul.f32 %v3866, %v185
    %v3873 = vadd.f32 %v3867, 1e-06
    %v3874 = vadd.f32 %v3868, 1e-06
    %v3875 = vadd.f32 %v3869, 1e-06
    %v3876 = vadd.f32 %v3870, 1e-06
    %v3877 = vadd.f32 %v3871, 1e-06
    %v3878 = vadd.f32 %v3872, 1e-06
    %v3879 = vrsqrt.pop %v3873
    %v3880 = vrsqrt.pop %v3874
    %v3881 = vrsqrt.pop %v3875
    %v3882 = vrsqrt.pop %v3876
    %v3883 = vrsqrt.pop %v3877
    %v3884 = vrsqrt.pop %v3878
    %v3885 = vmul.f32 %v3837, %v3879
    %v3886 = vmul.f32 %v3838, %v3880
    %v3887 = vmul.f32 %v3839, %v3881
    %v3888 = vmul.f32 %v3840, %v3882
    %v3889 = vmul.f32 %v3841, %v3883
    %v3890 = vmul.f32 %v3842, %v3884
    %v3891 = vlaneseq
    %v3892 = vshrl.u32 %v3891, 7
    %v3893 = vsub.s32 0, %v3892
    %v3894 = vrot.slane %v3811, %v3893
    %v3895 = vmul.f32 %v3885, %v3894
    %v3896 = vmul.f32 %v3886, %v3894
    %v3897 = vmul.f32 %v3887, %v3894
    %v3898 = vmul.f32 %v3888, %v3894
    %v3899 = vmul.f32 %v3889, %v3894
    %v3900 = vmul.f32 %v3890, %v3894
    %v3901 = vlaneseq
    %v3902 = vshrl.u32 %v3901, 7
    %v3903 = vsub.s32 0, %v3902
    %v3904 = vrot.slane %v3812, %v3903
    %v3905 = vadd.f32 %v3895, %v3904
    %v3906 = vadd.f32 %v3896, %v3904
    %v3907 = vadd.f32 %v3897, %v3904
    %v3908 = vadd.f32 %v3898, %v3904
    %v3909 = vadd.f32 %v3899, %v3904
    %v3910 = vadd.f32 %v3900, %v3904
    %v3911 = vld [vmem:[%s10 + $0x2] sm:$0x1]
    %v3912 = vpack.c.bf16 %v3911, %v3911
    %v3913 = vld [vmem:[%s10 + $0x3] sm:$0x1]
    %v3914 = vld [vmem:[%s10 + $0x4] sm:$0x1]
    %v3915 = vld [vmem:[%s10 + $0x5] sm:$0x1]
    %v3916 = vld [vmem:[%s10 + $0x6] sm:$0x1]
    %v3917 = vld [vmem:[%s10 + $0x7] sm:$0x1]
    %v3918 = vld [vmem:[%s11] sm:$0xf]
    %v3919 = vld [vmem:[%s11 + $0x4] sm:$0xf]
    %v3920 = vld [vmem:[%s11 + $0x8] sm:$0xf]
    %v3921 = vld [vmem:[%s11 + $0xc] sm:$0xf]
    %v3922 = vld [vmem:[%s11 + $0x10] sm:$0xf]
    %v3923 = vld [vmem:[%s11 + $0x14] sm:$0xf]
    %v3924 = vld [vmem:[%s11 + $0x18] sm:$0xf]
    %v3925 = vld [vmem:[%s11 + $0x1c] sm:$0xf]
    %v3926 = vpack.c.bf16 %v3906, %v3905
    %3928 = vset.pattern.permute.xlu0 0
    %3929 = vperm.xlu0 %3928, %v3913
    %v3930 = vpop.permute.xlu0 %3929
    %v3933 = vsel %vm169, %v3912, 0
    %v3936 = vsel %vm169, %v3926, 0
    %3938 = vmatprep.subr.bf16.mxu0 0
    %3939 = vmatpush1.bf16.xpose.msra.mxu0 0
    %3940 = vmatprep.subr.bf16.mxu0 0
    %3941 = vmatpush1.bf16.xpose.msra.mxu0 0
    %3942 = vmatprep.subr.bf16.mxu0 0
    %3943 = vmatpush1.bf16.xpose.msra.mxu0 0
    %3944 = vmatprep.subr.bf16.mxu0 0
    %3945 = vmatpush1.bf16.xpose.msra.mxu0 0
    %3946 = vmatprep.subr.bf16.mxu0 0
    %3947 = vmatpush1.bf16.xpose.msra.mxu0 0
    %3948 = vmatprep.subr.bf16.mxu0 0
    %3949 = vmatpush1.bf16.xpose.msra.mxu0 0
    %3950 = vmatprep.subr.bf16.mxu0 0
    %3951 = vmatpush1.bf16.xpose.msra.mxu0 0
    %3952 = vmatprep.subr.bf16.mxu0 0
    %3953 = vmatpush1.bf16.xpose.msra.mxu0 %v3936
    %3954 = vmatprep.subr.bf16.mxu0 0
    %3955 = vmatpush2.bf16.xpose.msra.mxu0 0
    %3956 = vmatprep.subr.bf16.mxu0 0
    %3957 = vmatpush2.bf16.xpose.msra.mxu0 0
    %3958 = vmatprep.subr.bf16.mxu0 0
    %3959 = vmatpush2.bf16.xpose.msra.mxu0 0
    %3960 = vmatprep.subr.bf16.mxu0 0
    %3961 = vmatpush2.bf16.xpose.msra.mxu0 0
    %3962 = vmatprep.subr.bf16.mxu0 0
    %3963 = vmatpush2.bf16.xpose.msra.mxu0 0
    %3964 = vmatprep.subr.bf16.mxu0 0
    %3965 = vmatpush2.bf16.xpose.msra.mxu0 0
    %3966 = vmatprep.subr.bf16.mxu0 0
    %3967 = vmatpush2.bf16.xpose.msra.mxu0 0
    %3968 = vmatprep.subr.bf16.mxu0 0
    %3969 = vmatpush2.bf16.xpose.msra.mxu0 0
    %3970 = vmatprep.mubr.bf16.mxu0 0
    %3971 = vmatmul.mubr.bf16.gmra.mxu0 %v3933
    %v3972 = vpop.f32.mrf.mxu0
    %v3973 = vadd.f32 %v3930, %v3972
    %v3974 = vpop.f32.mrf.mxu0
    %v3975 = vpop.f32.mrf.mxu0
    %v3976 = vpop.f32.mrf.mxu0
    %3977 = vdwg.mxu0
    %vm3978 = vcmask 122880
    %v3979 = vsel %vm3978, %v3973, -inf
    %3980 = vmax.xlane.f32.xlu0 %v3979
    %v3981 = vpop.xlane.xlu0 %3980
    %v3982 = vsub.f32 %v3973, %v3981
    %v3983 = vmul.f32 %v3982, 1.442695
    %v3984 = vpow.pop %v3983
    %v3985 = vsel %vm3978, %v3984, 0.0
    %3986 = vadd.xlane.f32.xlu0 %v3985
    %v3987 = vpop.xlane.xlu0 %3986
    %v3988 = vrcp.pop %v3987
    %v3989 = vmul.f32 %v3984, %v3988
    %v3990 = vpack.c.bf16 %v3989, %v3989
    %v3992 = vsel %vm507, %v3990, 0
    %3994 = vmatprep.subr.bf16.mxu0 0
    %3995 = vmatpush1.bf16.msra.mxu0 0
    %3996 = vmatprep.subr.bf16.mxu0 0
    %3997 = vmatpush1.bf16.msra.mxu0 0
    %3998 = vmatprep.subr.bf16.mxu0 0
    %3999 = vmatpush1.bf16.msra.mxu0 0
    %4000 = vmatprep.subr.bf16.mxu0 0
    %4001 = vmatpush1.bf16.msra.mxu0 0
    %4002 = vmatprep.subr.bf16.mxu0 0
    %4003 = vmatpush1.bf16.msra.mxu0 0
    %4004 = vmatprep.subr.bf16.mxu0 0
    %4005 = vmatpush1.bf16.msra.mxu0 0
    %4006 = vmatprep.subr.bf16.mxu0 0
    %4007 = vmatpush1.bf16.msra.mxu0 0
    %4008 = vmatprep.subr.bf16.mxu0 0
    %4009 = vmatpush1.bf16.msra.mxu0 %v3926
    %4010 = vmatprep.subr.bf16.mxu0 0
    %4011 = vmatpush2.bf16.msra.mxu0 0
    %4012 = vmatprep.subr.bf16.mxu0 0
    %4013 = vmatpush2.bf16.msra.mxu0 0
    %4014 = vmatprep.subr.bf16.mxu0 0
    %4015 = vmatpush2.bf16.msra.mxu0 0
    %4016 = vmatprep.subr.bf16.mxu0 0
    %4017 = vmatpush2.bf16.msra.mxu0 0
    %4018 = vmatprep.subr.bf16.mxu0 0
    %4019 = vmatpush2.bf16.msra.mxu0 0
    %4020 = vmatprep.subr.bf16.mxu0 0
    %4021 = vmatpush2.bf16.msra.mxu0 0
    %4022 = vmatprep.subr.bf16.mxu0 0
    %4023 = vmatpush2.bf16.msra.mxu0 0
    %4024 = vmatprep.subr.bf16.mxu0 0
    %4025 = vmatpush2.bf16.msra.mxu0 0
    %4026 = vmatprep.mubr.bf16.mxu0 0
    %4027 = vmatmul.mubr.bf16.gmra.mxu0 %v3992
    %v4028 = vpop.f32.mrf.mxu0
    %v4029 = vadd.f32 0.0, %v4028
    %v4030 = vpop.f32.mrf.mxu0
    %v4031 = vpop.f32.mrf.mxu0
    %v4032 = vpop.f32.mrf.mxu0
    %4033 = vdwg.mxu0
    %vm4034 = vcmask 253952
    %v4035 = vsel %vm4034, %v3907, 0.0
    %4036 = vadd.xlane.f32.xlu0 %v4035
    %v4037 = vpop.xlane.xlu0 %4036
    %v4038 = vsel %vm4034, %v4029, 0.0
    %4039 = vadd.xlane.f32.xlu0 %v4038
    %v4040 = vpop.xlane.xlu0 %4039
    %v4041 = vadd.f32 %v4037, %v4040
    %v4042 = vmul.f32 %v3907, %v3907
    %v4043 = vsel %vm4034, %v4042, 0.0
    %4044 = vadd.xlane.f32.xlu0 %v4043
    %v4045 = vpop.xlane.xlu0 %4044
    %v4046 = vmul.f32 %v4029, %v4029
    %v4047 = vsel %vm4034, %v4046, 0.0
    %4048 = vadd.xlane.f32.xlu0 %v4047
    %v4049 = vpop.xlane.xlu0 %4048
    %v4050 = vadd.f32 %v4045, %v4049
    %v4051 = vrcp.pop 64.0
    %v4052 = vmul.f32 %v4041, %v4051
    %v4053 = vmul.f32 %v4050, %v4051
    %v4054 = vmul.f32 %v4052, %v4052
    %v4055 = vsub.f32 %v4053, %v4054
    %v4056 = vadd.f32 %v4055, 1e-05
    %v4057 = vrsqrt.pop %v4056
    %v4058 = vsub.f32 %v3907, %v4052
    %v4059 = vmul.f32 %v4058, %v4057
    %v4060 = vmul.f32 %v4059, %v3914
    %v4061 = vadd.f32 %v4060, %v3915
    %v4062 = vsub.f32 %v4029, %v4052
    %v4063 = vmul.f32 %v4062, %v4057
    %4065 = vrot.lane.b32.xlu0 %v3914, 96
    %v4066 = vpop.permute.xlu0 %4065
    %v4068 = vmul.f32 %v4063, %v4066
    %4070 = vrot.lane.b32.xlu0 %v3915, 96
    %v4071 = vpop.permute.xlu0 %4070
    %v4073 = vadd.f32 %v4068, %v4071
    %v4074 = vpack.c.bf16 %v4061, %v4061
    %v4075 = vpack.c.bf16 %v4073, %v4073
    %v4080 = vunpack.c.l.b16 %v3922
    %v4081 = vunpack.c.l.b16 %v3923
    %v4082 = vunpack.c.l.b16 %v3924
    %v4083 = vunpack.c.l.b16 %v3925
    %v4084 = vpack.c.b16 %v4081, %v4080
    %v4085 = vpack.c.b16 %v4083, %v4082
    %v4089 = vsel %vm169, %v4075, 0
    %4091 = vmatprep.subr.bf16.mxu0 0
    %4092 = vmatpush1.bf16.msra.mxu0 0
    %4093 = vmatprep.subr.bf16.mxu0 0
    %4094 = vmatpush1.bf16.msra.mxu0 0
    %4095 = vmatprep.subr.bf16.mxu0 0
    %4096 = vmatpush1.bf16.msra.mxu0 0
    %4097 = vmatprep.subr.bf16.mxu0 0
    %4098 = vmatpush1.bf16.msra.mxu0 0
    %4099 = vmatprep.subr.bf16.mxu0 0
    %4100 = vmatpush1.bf16.msra.mxu0 0
    %4101 = vmatprep.subr.bf16.mxu0 0
    %4102 = vmatpush1.bf16.msra.mxu0 0
    %4103 = vmatprep.subr.bf16.mxu0 0
    %4104 = vmatpush1.bf16.msra.mxu0 %v4085
    %4105 = vmatprep.subr.bf16.mxu0 0
    %4106 = vmatpush1.bf16.msra.mxu0 %v4084
    %4107 = vmatprep.subr.bf16.mxu0 0
    %4108 = vmatpush2.bf16.msra.mxu0 0
    %4109 = vmatprep.subr.bf16.mxu0 0
    %4110 = vmatpush2.bf16.msra.mxu0 0
    %4111 = vmatprep.subr.bf16.mxu0 0
    %4112 = vmatpush2.bf16.msra.mxu0 0
    %4113 = vmatprep.subr.bf16.mxu0 0
    %4114 = vmatpush2.bf16.msra.mxu0 0
    %4115 = vmatprep.subr.bf16.mxu0 0
    %4116 = vmatpush2.bf16.msra.mxu0 0
    %4117 = vmatprep.subr.bf16.mxu0 0
    %4118 = vmatpush2.bf16.msra.mxu0 0
    %4119 = vmatprep.subr.bf16.mxu0 0
    %4120 = vmatpush2.bf16.msra.mxu0 0
    %4121 = vmatprep.subr.bf16.mxu0 0
    %4122 = vmatpush2.bf16.msra.mxu0 0
    %4123 = vmatprep.mubr.bf16.mxu0 0
    %4124 = vmatmul.mubr.bf16.gmra.mxu0 %v4089
    %v4125 = vpop.f32.mrf.mxu0
    %v4126 = vadd.f32 0.0, %v4125
    %v4127 = vpop.f32.mrf.mxu0
    %v4128 = vpop.f32.mrf.mxu0
    %v4129 = vpop.f32.mrf.mxu0
    %4130 = vdwg.mxu0
    %v4135 = vunpack.c.l.b16 %v3918
    %v4136 = vunpack.c.l.b16 %v3919
    %v4137 = vunpack.c.l.b16 %v3920
    %v4138 = vunpack.c.l.b16 %v3921
    %v4139 = vpack.c.b16 %v4136, %v4135
    %v4140 = vpack.c.b16 %v4138, %v4137
    %v4144 = vsel %vm169, %v4074, 0
    %4146 = vmatprep.subr.bf16.mxu0 0
    %4147 = vmatpush1.bf16.msra.mxu0 0
    %4148 = vmatprep.subr.bf16.mxu0 0
    %4149 = vmatpush1.bf16.msra.mxu0 0
    %4150 = vmatprep.subr.bf16.mxu0 0
    %4151 = vmatpush1.bf16.msra.mxu0 0
    %4152 = vmatprep.subr.bf16.mxu0 0
    %4153 = vmatpush1.bf16.msra.mxu0 0
    %4154 = vmatprep.subr.bf16.mxu0 0
    %4155 = vmatpush1.bf16.msra.mxu0 0
    %4156 = vmatprep.subr.bf16.mxu0 0
    %4157 = vmatpush1.bf16.msra.mxu0 0
    %4158 = vmatprep.subr.bf16.mxu0 0
    %4159 = vmatpush1.bf16.msra.mxu0 %v4140
    %4160 = vmatprep.subr.bf16.mxu0 0
    %4161 = vmatpush1.bf16.msra.mxu0 %v4139
    %4162 = vmatprep.subr.bf16.mxu0 0
    %4163 = vmatpush2.bf16.msra.mxu0 0
    %4164 = vmatprep.subr.bf16.mxu0 0
    %4165 = vmatpush2.bf16.msra.mxu0 0
    %4166 = vmatprep.subr.bf16.mxu0 0
    %4167 = vmatpush2.bf16.msra.mxu0 0
    %4168 = vmatprep.subr.bf16.mxu0 0
    %4169 = vmatpush2.bf16.msra.mxu0 0
    %4170 = vmatprep.subr.bf16.mxu0 0
    %4171 = vmatpush2.bf16.msra.mxu0 0
    %4172 = vmatprep.subr.bf16.mxu0 0
    %4173 = vmatpush2.bf16.msra.mxu0 0
    %4174 = vmatprep.subr.bf16.mxu0 0
    %4175 = vmatpush2.bf16.msra.mxu0 0
    %4176 = vmatprep.subr.bf16.mxu0 0
    %4177 = vmatpush2.bf16.msra.mxu0 0
    %4178 = vmatprep.mubr.bf16.mxu0 0
    %4179 = vmatmul.mubr.bf16.gmra.mxu0 %v4144
    %v4180 = vpop.f32.mrf.mxu0
    %v4181 = vadd.f32 %v4126, %v4180
    %v4182 = vpop.f32.mrf.mxu0
    %v4183 = vpop.f32.mrf.mxu0
    %v4184 = vpop.f32.mrf.mxu0
    %4185 = vdwg.mxu0
    %v4186 = vadd.f32 %v4181, %v3916
    %v4187 = vmax.f32 %v4186, 0.0
    %v4188 = vpack.c.bf16 %v4187, %v4187
    %v4189 = vld [vmem:[%s12] sm:$0xf]
    %v4190 = vld [vmem:[%s12 + $0x4] sm:$0xf]
    %v4191 = vld [vmem:[%s12 + $0x8] sm:$0xf]
    %v4192 = vld [vmem:[%s12 + $0xc] sm:$0xf]
    %v4193 = vld [vmem:[%s12 + $0x10] sm:$0xf]
    %v4194 = vld [vmem:[%s12 + $0x14] sm:$0xf]
    %v4195 = vld [vmem:[%s12 + $0x18] sm:$0xf]
    %v4196 = vld [vmem:[%s12 + $0x1c] sm:$0xf]
    %v4205 = vunpack.c.l.b16 %v4189
    %v4206 = vunpack.c.l.b16 %v4190
    %v4207 = vunpack.c.l.b16 %v4191
    %v4208 = vunpack.c.l.b16 %v4192
    %v4209 = vunpack.c.l.b16 %v4193
    %v4210 = vunpack.c.l.b16 %v4194
    %v4211 = vunpack.c.l.b16 %v4195
    %v4212 = vunpack.c.l.b16 %v4196
    %v4213 = vpack.c.b16 %v4206, %v4205
    %v4214 = vpack.c.b16 %v4208, %v4207
    %v4215 = vpack.c.b16 %v4210, %v4209
    %v4216 = vpack.c.b16 %v4212, %v4211
    %v4222 = vsel %vm94, %v4188, 0
    %4224 = vmatprep.subr.bf16.mxu0 0
    %4225 = vmatpush1.bf16.msra.mxu0 0
    %4226 = vmatprep.subr.bf16.mxu0 0
    %4227 = vmatpush1.bf16.msra.mxu0 0
    %4228 = vmatprep.subr.bf16.mxu0 0
    %4229 = vmatpush1.bf16.msra.mxu0 0
    %4230 = vmatprep.subr.bf16.mxu0 0
    %4231 = vmatpush1.bf16.msra.mxu0 0
    %4232 = vmatprep.subr.bf16.mxu0 0
    %4233 = vmatpush1.bf16.msra.mxu0 %v4216
    %4234 = vmatprep.subr.bf16.mxu0 0
    %4235 = vmatpush1.bf16.msra.mxu0 %v4215
    %4236 = vmatprep.subr.bf16.mxu0 0
    %4237 = vmatpush1.bf16.msra.mxu0 %v4214
    %4238 = vmatprep.subr.bf16.mxu0 0
    %4239 = vmatpush1.bf16.msra.mxu0 %v4213
    %4240 = vmatprep.subr.bf16.mxu0 0
    %4241 = vmatpush2.bf16.msra.mxu0 0
    %4242 = vmatprep.subr.bf16.mxu0 0
    %4243 = vmatpush2.bf16.msra.mxu0 0
    %4244 = vmatprep.subr.bf16.mxu0 0
    %4245 = vmatpush2.bf16.msra.mxu0 0
    %4246 = vmatprep.subr.bf16.mxu0 0
    %4247 = vmatpush2.bf16.msra.mxu0 0
    %4248 = vmatprep.subr.bf16.mxu0 0
    %4249 = vmatpush2.bf16.msra.mxu0 0
    %4250 = vmatprep.subr.bf16.mxu0 0
    %4251 = vmatpush2.bf16.msra.mxu0 0
    %4252 = vmatprep.subr.bf16.mxu0 0
    %4253 = vmatpush2.bf16.msra.mxu0 0
    %4254 = vmatprep.subr.bf16.mxu0 0
    %4255 = vmatpush2.bf16.msra.mxu0 0
    %4256 = vmatprep.mubr.bf16.mxu0 0
    %4257 = vmatmul.mubr.bf16.gmra.mxu0 %v4222
    %v4258 = vpop.f32.mrf.mxu0
    %v4259 = vadd.f32 %v3917, %v4258
    %v4260 = vpop.f32.mrf.mxu0
    %v4261 = vpop.f32.mrf.mxu0
    %v4262 = vpop.f32.mrf.mxu0
    %4263 = vdwg.mxu0
    %v4264 = vpack.c.bf16 %v3909, %v3908
    %v4266 = vsel %vm169, %v4264, 0
    %4268 = vmatprep.subr.bf16.mxu0 0
    %4269 = vmatpush1.bf16.xpose.msra.mxu0 0
    %4270 = vmatprep.subr.bf16.mxu0 0
    %4271 = vmatpush1.bf16.xpose.msra.mxu0 0
    %4272 = vmatprep.subr.bf16.mxu0 0
    %4273 = vmatpush1.bf16.xpose.msra.mxu0 0
    %4274 = vmatprep.subr.bf16.mxu0 0
    %4275 = vmatpush1.bf16.xpose.msra.mxu0 0
    %4276 = vmatprep.subr.bf16.mxu0 0
    %4277 = vmatpush1.bf16.xpose.msra.mxu0 0
    %4278 = vmatprep.subr.bf16.mxu0 0
    %4279 = vmatpush1.bf16.xpose.msra.mxu0 0
    %4280 = vmatprep.subr.bf16.mxu0 0
    %4281 = vmatpush1.bf16.xpose.msra.mxu0 0
    %4282 = vmatprep.subr.bf16.mxu0 0
    %4283 = vmatpush1.bf16.xpose.msra.mxu0 %v4266
    %4284 = vmatprep.subr.bf16.mxu0 0
    %4285 = vmatpush2.bf16.xpose.msra.mxu0 0
    %4286 = vmatprep.subr.bf16.mxu0 0
    %4287 = vmatpush2.bf16.xpose.msra.mxu0 0
    %4288 = vmatprep.subr.bf16.mxu0 0
    %4289 = vmatpush2.bf16.xpose.msra.mxu0 0
    %4290 = vmatprep.subr.bf16.mxu0 0
    %4291 = vmatpush2.bf16.xpose.msra.mxu0 0
    %4292 = vmatprep.subr.bf16.mxu0 0
    %4293 = vmatpush2.bf16.xpose.msra.mxu0 0
    %4294 = vmatprep.subr.bf16.mxu0 0
    %4295 = vmatpush2.bf16.xpose.msra.mxu0 0
    %4296 = vmatprep.subr.bf16.mxu0 0
    %4297 = vmatpush2.bf16.xpose.msra.mxu0 0
    %4298 = vmatprep.subr.bf16.mxu0 0
    %4299 = vmatpush2.bf16.xpose.msra.mxu0 0
    %4300 = vmatprep.mubr.bf16.mxu0 0
    %4301 = vmatmul.mubr.bf16.gmra.mxu0 %v3933
    %v4302 = vpop.f32.mrf.mxu0
    %v4303 = vadd.f32 %v3930, %v4302
    %v4304 = vpop.f32.mrf.mxu0
    %v4305 = vpop.f32.mrf.mxu0
    %v4306 = vpop.f32.mrf.mxu0
    %4307 = vdwg.mxu0
    %v4308 = vsel %vm3978, %v4303, -inf
    %4309 = vmax.xlane.f32.xlu0 %v4308
    %v4310 = vpop.xlane.xlu0 %4309
    %v4311 = vsub.f32 %v4303, %v4310
    %v4312 = vmul.f32 %v4311, 1.442695
    %v4313 = vpow.pop %v4312
    %v4314 = vsel %vm3978, %v4313, 0.0
    %4315 = vadd.xlane.f32.xlu0 %v4314
    %v4316 = vpop.xlane.xlu0 %4315
    %v4317 = vrcp.pop %v4316
    %v4318 = vmul.f32 %v4313, %v4317
    %v4319 = vpack.c.bf16 %v4318, %v4318
    %v4321 = vsel %vm507, %v4319, 0
    %4323 = vmatprep.subr.bf16.mxu0 0
    %4324 = vmatpush1.bf16.msra.mxu0 0
    %4325 = vmatprep.subr.bf16.mxu0 0
    %4326 = vmatpush1.bf16.msra.mxu0 0
    %4327 = vmatprep.subr.bf16.mxu0 0
    %4328 = vmatpush1.bf16.msra.mxu0 0
    %4329 = vmatprep.subr.bf16.mxu0 0
    %4330 = vmatpush1.bf16.msra.mxu0 0
    %4331 = vmatprep.subr.bf16.mxu0 0
    %4332 = vmatpush1.bf16.msra.mxu0 0
    %4333 = vmatprep.subr.bf16.mxu0 0
    %4334 = vmatpush1.bf16.msra.mxu0 0
    %4335 = vmatprep.subr.bf16.mxu0 0
    %4336 = vmatpush1.bf16.msra.mxu0 0
    %4337 = vmatprep.subr.bf16.mxu0 0
    %4338 = vmatpush1.bf16.msra.mxu0 %v4264
    %4339 = vmatprep.subr.bf16.mxu0 0
    %4340 = vmatpush2.bf16.msra.mxu0 0
    %4341 = vmatprep.subr.bf16.mxu0 0
    %4342 = vmatpush2.bf16.msra.mxu0 0
    %4343 = vmatprep.subr.bf16.mxu0 0
    %4344 = vmatpush2.bf16.msra.mxu0 0
    %4345 = vmatprep.subr.bf16.mxu0 0
    %4346 = vmatpush2.bf16.msra.mxu0 0
    %4347 = vmatprep.subr.bf16.mxu0 0
    %4348 = vmatpush2.bf16.msra.mxu0 0
    %4349 = vmatprep.subr.bf16.mxu0 0
    %4350 = vmatpush2.bf16.msra.mxu0 0
    %4351 = vmatprep.subr.bf16.mxu0 0
    %4352 = vmatpush2.bf16.msra.mxu0 0
    %4353 = vmatprep.subr.bf16.mxu0 0
    %4354 = vmatpush2.bf16.msra.mxu0 0
    %4355 = vmatprep.mubr.bf16.mxu0 0
    %4356 = vmatmul.mubr.bf16.gmra.mxu0 %v4321
    %v4357 = vpop.f32.mrf.mxu0
    %v4358 = vadd.f32 0.0, %v4357
    %v4359 = vpop.f32.mrf.mxu0
    %v4360 = vpop.f32.mrf.mxu0
    %v4361 = vpop.f32.mrf.mxu0
    %4362 = vdwg.mxu0
    %v4363 = vsel %vm4034, %v3910, 0.0
    %4364 = vadd.xlane.f32.xlu0 %v4363
    %v4365 = vpop.xlane.xlu0 %4364
    %v4366 = vsel %vm4034, %v4358, 0.0
    %4367 = vadd.xlane.f32.xlu0 %v4366
    %v4368 = vpop.xlane.xlu0 %4367
    %v4369 = vadd.f32 %v4365, %v4368
    %v4370 = vmul.f32 %v3910, %v3910
    %v4371 = vsel %vm4034, %v4370, 0.0
    %4372 = vadd.xlane.f32.xlu0 %v4371
    %v4373 = vpop.xlane.xlu0 %4372
    %v4374 = vmul.f32 %v4358, %v4358
    %v4375 = vsel %vm4034, %v4374, 0.0
    %4376 = vadd.xlane.f32.xlu0 %v4375
    %v4377 = vpop.xlane.xlu0 %4376
    %v4378 = vadd.f32 %v4373, %v4377
    %v4379 = vmul.f32 %v4369, %v4051
    %v4380 = vmul.f32 %v4378, %v4051
    %v4381 = vmul.f32 %v4379, %v4379
    %v4382 = vsub.f32 %v4380, %v4381
    %v4383 = vadd.f32 %v4382, 1e-05
    %v4384 = vrsqrt.pop %v4383
    %v4385 = vsub.f32 %v3910, %v4379
    %v4386 = vmul.f32 %v4385, %v4384
    %v4387 = vmul.f32 %v4386, %v3914
    %v4388 = vadd.f32 %v4387, %v3915
    %v4389 = vsub.f32 %v4358, %v4379
    %v4390 = vmul.f32 %v4389, %v4384
    %v4391 = vmul.f32 %v4390, %v4066
    %v4392 = vadd.f32 %v4391, %v4071
    %v4393 = vpack.c.bf16 %v4388, %v4388
    %v4394 = vpack.c.bf16 %v4392, %v4392
    %v4396 = vsel %vm169, %v4394, 0
    %4398 = vmatprep.subr.bf16.mxu0 0
    %4399 = vmatpush1.bf16.msra.mxu0 0
    %4400 = vmatprep.subr.bf16.mxu0 0
    %4401 = vmatpush1.bf16.msra.mxu0 0
    %4402 = vmatprep.subr.bf16.mxu0 0
    %4403 = vmatpush1.bf16.msra.mxu0 0
    %4404 = vmatprep.subr.bf16.mxu0 0
    %4405 = vmatpush1.bf16.msra.mxu0 0
    %4406 = vmatprep.subr.bf16.mxu0 0
    %4407 = vmatpush1.bf16.msra.mxu0 0
    %4408 = vmatprep.subr.bf16.mxu0 0
    %4409 = vmatpush1.bf16.msra.mxu0 0
    %4410 = vmatprep.subr.bf16.mxu0 0
    %4411 = vmatpush1.bf16.msra.mxu0 %v4085
    %4412 = vmatprep.subr.bf16.mxu0 0
    %4413 = vmatpush1.bf16.msra.mxu0 %v4084
    %4414 = vmatprep.subr.bf16.mxu0 0
    %4415 = vmatpush2.bf16.msra.mxu0 0
    %4416 = vmatprep.subr.bf16.mxu0 0
    %4417 = vmatpush2.bf16.msra.mxu0 0
    %4418 = vmatprep.subr.bf16.mxu0 0
    %4419 = vmatpush2.bf16.msra.mxu0 0
    %4420 = vmatprep.subr.bf16.mxu0 0
    %4421 = vmatpush2.bf16.msra.mxu0 0
    %4422 = vmatprep.subr.bf16.mxu0 0
    %4423 = vmatpush2.bf16.msra.mxu0 0
    %4424 = vmatprep.subr.bf16.mxu0 0
    %4425 = vmatpush2.bf16.msra.mxu0 0
    %4426 = vmatprep.subr.bf16.mxu0 0
    %4427 = vmatpush2.bf16.msra.mxu0 0
    %4428 = vmatprep.subr.bf16.mxu0 0
    %4429 = vmatpush2.bf16.msra.mxu0 0
    %4430 = vmatprep.mubr.bf16.mxu0 0
    %4431 = vmatmul.mubr.bf16.gmra.mxu0 %v4396
    %v4432 = vpop.f32.mrf.mxu0
    %v4433 = vadd.f32 0.0, %v4432
    %v4434 = vpop.f32.mrf.mxu0
    %v4435 = vpop.f32.mrf.mxu0
    %v4436 = vpop.f32.mrf.mxu0
    %4437 = vdwg.mxu0
    %v4439 = vsel %vm169, %v4393, 0
    %4441 = vmatprep.subr.bf16.mxu0 0
    %4442 = vmatpush1.bf16.msra.mxu0 0
    %4443 = vmatprep.subr.bf16.mxu0 0
    %4444 = vmatpush1.bf16.msra.mxu0 0
    %4445 = vmatprep.subr.bf16.mxu0 0
    %4446 = vmatpush1.bf16.msra.mxu0 0
    %4447 = vmatprep.subr.bf16.mxu0 0
    %4448 = vmatpush1.bf16.msra.mxu0 0
    %4449 = vmatprep.subr.bf16.mxu0 0
    %4450 = vmatpush1.bf16.msra.mxu0 0
    %4451 = vmatprep.subr.bf16.mxu0 0
    %4452 = vmatpush1.bf16.msra.mxu0 0
    %4453 = vmatprep.subr.bf16.mxu0 0
    %4454 = vmatpush1.bf16.msra.mxu0 %v4140
    %4455 = vmatprep.subr.bf16.mxu0 0
    %4456 = vmatpush1.bf16.msra.mxu0 %v4139
    %4457 = vmatprep.subr.bf16.mxu0 0
    %4458 = vmatpush2.bf16.msra.mxu0 0
    %4459 = vmatprep.subr.bf16.mxu0 0
    %4460 = vmatpush2.bf16.msra.mxu0 0
    %4461 = vmatprep.subr.bf16.mxu0 0
    %4462 = vmatpush2.bf16.msra.mxu0 0
    %4463 = vmatprep.subr.bf16.mxu0 0
    %4464 = vmatpush2.bf16.msra.mxu0 0
    %4465 = vmatprep.subr.bf16.mxu0 0
    %4466 = vmatpush2.bf16.msra.mxu0 0
    %4467 = vmatprep.subr.bf16.mxu0 0
    %4468 = vmatpush2.bf16.msra.mxu0 0
    %4469 = vmatprep.subr.bf16.mxu0 0
    %4470 = vmatpush2.bf16.msra.mxu0 0
    %4471 = vmatprep.subr.bf16.mxu0 0
    %4472 = vmatpush2.bf16.msra.mxu0 0
    %4473 = vmatprep.mubr.bf16.mxu0 0
    %4474 = vmatmul.mubr.bf16.gmra.mxu0 %v4439
    %v4475 = vpop.f32.mrf.mxu0
    %v4476 = vadd.f32 %v4433, %v4475
    %v4477 = vpop.f32.mrf.mxu0
    %v4478 = vpop.f32.mrf.mxu0
    %v4479 = vpop.f32.mrf.mxu0
    %4480 = vdwg.mxu0
    %v4481 = vadd.f32 %v4476, %v3916
    %v4482 = vmax.f32 %v4481, 0.0
    %v4483 = vpack.c.bf16 %v4482, %v4482
    %v4485 = vsel %vm94, %v4483, 0
    %4487 = vmatprep.subr.bf16.mxu0 0
    %4488 = vmatpush1.bf16.msra.mxu0 0
    %4489 = vmatprep.subr.bf16.mxu0 0
    %4490 = vmatpush1.bf16.msra.mxu0 0
    %4491 = vmatprep.subr.bf16.mxu0 0
    %4492 = vmatpush1.bf16.msra.mxu0 0
    %4493 = vmatprep.subr.bf16.mxu0 0
    %4494 = vmatpush1.bf16.msra.mxu0 0
    %4495 = vmatprep.subr.bf16.mxu0 0
    %4496 = vmatpush1.bf16.msra.mxu0 %v4216
    %4497 = vmatprep.subr.bf16.mxu0 0
    %4498 = vmatpush1.bf16.msra.mxu0 %v4215
    %4499 = vmatprep.subr.bf16.mxu0 0
    %4500 = vmatpush1.bf16.msra.mxu0 %v4214
    %4501 = vmatprep.subr.bf16.mxu0 0
    %4502 = vmatpush1.bf16.msra.mxu0 %v4213
    %4503 = vmatprep.subr.bf16.mxu0 0
    %4504 = vmatpush2.bf16.msra.mxu0 0
    %4505 = vmatprep.subr.bf16.mxu0 0
    %4506 = vmatpush2.bf16.msra.mxu0 0
    %4507 = vmatprep.subr.bf16.mxu0 0
    %4508 = vmatpush2.bf16.msra.mxu0 0
    %4509 = vmatprep.subr.bf16.mxu0 0
    %4510 = vmatpush2.bf16.msra.mxu0 0
    %4511 = vmatprep.subr.bf16.mxu0 0
    %4512 = vmatpush2.bf16.msra.mxu0 0
    %4513 = vmatprep.subr.bf16.mxu0 0
    %4514 = vmatpush2.bf16.msra.mxu0 0
    %4515 = vmatprep.subr.bf16.mxu0 0
    %4516 = vmatpush2.bf16.msra.mxu0 0
    %4517 = vmatprep.subr.bf16.mxu0 0
    %4518 = vmatpush2.bf16.msra.mxu0 0
    %4519 = vmatprep.mubr.bf16.mxu0 0
    %4520 = vmatmul.mubr.bf16.gmra.mxu0 %v4485
    %v4521 = vpop.f32.mrf.mxu0
    %v4522 = vadd.f32 %v3917, %v4521
    %v4523 = vpop.f32.mrf.mxu0
    %v4524 = vpop.f32.mrf.mxu0
    %v4525 = vpop.f32.mrf.mxu0
    %4526 = vdwg.mxu0
    %v4528 = vrot.slane %v4522, 7
    %v4530 = vsel %vm157, %v4259, %v4528
    %vm4531 = vcmask 9216
    %4532 = vst.msk [vmem:[#allocation2] sm:$0x3] %vm4531, %v4530
    %v4534 = vrot.slane %v4318, 7
    %v4536 = vsel %vm157, %v3989, %v4534
    %vm4537 = vcmask 123904
    %4538 = vst.msk [vmem:[#allocation4] sm:$0x3] %vm4537, %v4536
    // Predicated region
    $region54: #{vit_gradcam_forward.1} parent=1 // pred_check
      _
    $region55: #{vit_gradcam_forward.1} parent=1 // pred_check_branch
      %4540 = sbr.rel (0) target = $region57
    $region56: #{vit_gradcam_forward.1} parent=1 // pred_region
      %s4542 = ssub.s32 32, 32
      %4543 = vsyncadd [#allocation3], %s4542
      %s4545 = sshll.u32 [#allocation2], 4
      %s4546 = int_to_ptr.vmem [resolvable:$true] %s4545
      %4548 = dma.vmem_to_hbm [thread:$0]  %s4546, 32, %s13, [#allocation3]
    $region57: #{vit_gradcam_forward.1} parent=1 // pred_fallthru
      _
    // Predicated region
    $region58: #{vit_gradcam_forward.1} parent=1 // pred_check
      _
    $region59: #{vit_gradcam_forward.1} parent=1 // pred_check_branch
      %4550 = sbr.rel (0) target = $region61
    $region60: #{vit_gradcam_forward.1} parent=1 // pred_region
      %s4552 = ssub.s32 32, 32
      %4553 = vsyncadd [#allocation5], %s4552
      %s4555 = sshll.u32 [#allocation4], 4
      %s4556 = int_to_ptr.vmem [resolvable:$true] %s4555
      %4558 = dma.vmem_to_hbm [thread:$0]  %s4556, 32, %s14, [#allocation5]
    $region61: #{vit_gradcam_forward.1} parent=1 // pred_fallthru
      _
    // Predicated region
    $region62: #{vit_gradcam_forward.1} parent=1 // pred_check
      _
    $region63: #{vit_gradcam_forward.1} parent=1 // pred_check_branch
      %4560 = sbr.rel (0) target = $region65
    $region64: #{vit_gradcam_forward.1} parent=1 // pred_region
      %4561 = dma.done [#allocation3], 32
    $region65: #{vit_gradcam_forward.1} parent=1 // pred_fallthru
      _
    // Predicated region
    $region66: #{vit_gradcam_forward.1} parent=1 // pred_check
      _
    $region67: #{vit_gradcam_forward.1} parent=1 // pred_check_branch
      %4563 = sbr.rel (0) target = $region69
    $region68: #{vit_gradcam_forward.1} parent=1 // pred_region
      %4564 = dma.done [#allocation5], 32
    $region69: #{vit_gradcam_forward.1} parent=1 // pred_fallthru
      _
    %4565 = vsyncpa [#allocation3], 1
    %4566 = vsyncpa [#allocation5], 1

</llo_original>
